<compile_context>
chip_gen: v7x
topology: tpu7x:2x2x1
jax: 0.10.0
libtpu: 0.0.40
codegen_flags: <defaults>
</compile_context>

<pallas_src>
import math
import numpy as np
import jax
import jax.numpy as jnp
from jax import lax
from jax.experimental import pallas as pl
from jax.experimental.pallas import tpu as pltpu

LN_EPS = 1e-5
MASK_NEG = -10000.0


# ----------------------------------------------------------------------------
# In-kernel helpers (traced inside the Pallas kernel)
# ----------------------------------------------------------------------------
def _gelu(x):
    # OpenAI tanh-approx gelu (matches the PyTorch `gelu` / `gelu_jit`).
    return 0.5 * x * (1.0 + jnp.tanh(0.7978845608028654 * x * (1.0 + 0.044715 * x * x)))


def _layernorm(v, g, b):
    mu = jnp.mean(v, axis=-1, keepdims=True)
    var = jnp.mean((v - mu) ** 2, axis=-1, keepdims=True)
    return (v - mu) * lax.rsqrt(var + LN_EPS) * g + b


# ----------------------------------------------------------------------------
# Fused whole-transformer kernel: grid = (batch_block, layer)
# ----------------------------------------------------------------------------
def make_transformer_kernel(num_heads, head_dim, b_tile, seq):
    H = num_heads * head_dim

    def kernel(mask_idx_ref,                       # scalar-prefetch (SMEM), used by index_maps
               x_ref, mask_ref,
               ln1g, ln1b, wqkv, bqkv, wo, bo,
               ln2g, ln2b, w1, b1, w2, b2,
               fin_g, fin_b,
               out_ref, carry_ref, qkv_ref, ctx_ref):
        del mask_idx_ref  # consumed by the mask BlockSpec index_map
        layer = pl.program_id(1)

        # Initialize the per-batch-block activation carry from the input at layer 0.
        @pl.when(layer == 0)
        def _():
            carry_ref[...] = x_ref[...]

        x = carry_ref[...]                          # (Bt, S, H) f32 carried across layers

        # --- input layernorm (f32 stats) + QKV projection (bf16 MXU, f32 accumulate) ---
        # 1/sqrt(head_dim) is pre-folded into the Q columns of w_qkv at init.
        ln1 = _layernorm(x, ln1g[0], ln1b[0])
        ln1_2d = ln1.reshape(b_tile * seq, H).astype(jnp.bfloat16)
        qkv = jnp.dot(ln1_2d, wqkv[0], preferred_element_type=jnp.float32) + bqkv[0]
        # Stage QKV in bf16 VMEM scratch; per-head slices below are cheap ref views.
        qkv_ref[...] = qkv.astype(jnp.bfloat16).reshape(b_tile, seq, 3 * H)

        # --- per-head masked attention; context written into bf16 VMEM scratch ---
        # TODO(synk): at 16+ heads / production S, convert to a (lane-aligned) grouped
        # head loop with KV blocking (flash-style) instead of this unrolled toy loop.
        for h in range(num_heads):
            lo = h * head_dim
            q_h = qkv_ref[:, :, lo:lo + head_dim]                    # (Bt,S,hd) bf16
            k_h = qkv_ref[:, :, H + lo:H + lo + head_dim]
            v_h = qkv_ref[:, :, 2 * H + lo:2 * H + lo + head_dim]
            # contraction over the last dim of both operands -> no explicit K transpose
            s = jnp.einsum('bqd,bkd->bqk', q_h, k_h,
                           preferred_element_type=jnp.float32)       # (Bt,S,S) f32
            # additive mask read straight from the ref: 0 keeps, -10000 masks
            s = s + mask_ref[0].astype(jnp.float32)
            s = s - jnp.max(s, axis=-1, keepdims=True)
            p = jnp.exp(s)
            p = p * pl.reciprocal(jnp.sum(p, axis=-1, keepdims=True), approx=True)
            ctx = jnp.einsum('bqk,bkd->bqd', p.astype(jnp.bfloat16), v_h,
                             preferred_element_type=jnp.float32)
            ctx_ref[:, :, lo:lo + head_dim] = ctx.astype(jnp.bfloat16)

        # --- attention output projection + residual ---
        attn = jnp.dot(ctx_ref[...].reshape(b_tile * seq, H), wo[0],
                       preferred_element_type=jnp.float32) + bo[0]
        res1 = x + attn.reshape(b_tile, seq, H)

        # --- post-attention layernorm + MLP + residual ---
        ln2 = _layernorm(res1, ln2g[0], ln2b[0])
        h1 = _gelu(jnp.dot(ln2.reshape(b_tile * seq, H).astype(jnp.bfloat16), w1[0],
                           preferred_element_type=jnp.float32) + b1[0])
        h2 = jnp.dot(h1.astype(jnp.bfloat16), w2[0],
                     preferred_element_type=jnp.float32) + b2[0]
        y = res1 + h2.reshape(b_tile, seq, H)
        carry_ref[...] = y

        # --- final layernorm fused into the last layer iteration ---
        @pl.when(layer == pl.num_programs(1) - 1)
        def _():
            out_ref[...] = _layernorm(y, fin_g[...], fin_b[...]).astype(out_ref.dtype)

    return kernel


def run_transformer(mask_idx, x, masks, params, final_g, final_b, num_heads, b_tile):
    B, S, H = x.shape
    L = int(mask_idx.shape[0])
    head_dim = H // num_heads
    kernel = make_transformer_kernel(num_heads, head_dim, b_tile, S)

    wlist = [params["ln1_g"], params["ln1_b"], params["w_qkv"], params["b_qkv"],
             params["w_o"], params["b_o"], params["ln2_g"], params["ln2_b"],
             params["w_1"], params["b_1"], params["w_2"], params["b_2"]]

    # index_maps receive the scalar-prefetch ref as a trailing positional arg.
    per_batch = lambda b, l, idx: (b, 0, 0)       # x / out: fixed across the layer axis
    per_layer = lambda b, l, idx: (l, 0, 0)       # per-layer weights: prefetched along l
    per_mask = lambda b, l, idx: (idx[l], 0, 0)   # deduped mask picked by per-layer index
    const2d = lambda b, l, idx: (0, 0)            # final layernorm params

    in_specs = [pl.BlockSpec((b_tile, S, H), per_batch),   # x (read once per batch block)
                pl.BlockSpec((1, S, S), per_mask)]         # deduped additive mask
    in_specs += [pl.BlockSpec((1,) + w.shape[1:], per_layer) for w in wlist]
    in_specs += [pl.BlockSpec(final_g.shape, const2d),
                 pl.BlockSpec(final_b.shape, const2d)]

    # Advisory cost hint for XLA scheduling around the fused call.
    flops = int(B) * L * (24 * S * H * H + 4 * S * S * H)
    transcendentals = int(B) * L * (num_heads * S * S + 4 * S * H)
    bytes_accessed = (L * 12 * H * H * 2          # bf16 weights
                      + L * 14 * H * 4            # biases / layernorm params
                      + 3 * S * S * 2             # deduped bf16 additive masks
                      + 2 * int(B) * S * H * 4)   # x in + out

    return pl.pallas_call(
        kernel,
        out_shape=jax.ShapeDtypeStruct((B, S, H), x.dtype),
        grid_spec=pltpu.PrefetchScalarGridSpec(
            num_scalar_prefetch=1,
            grid=(B // b_tile, L),
            in_specs=in_specs,
            out_specs=pl.BlockSpec((b_tile, S, H), per_batch),
            scratch_shapes=[pltpu.VMEM((b_tile, S, H), jnp.float32),        # activation carry
                            pltpu.VMEM((b_tile, S, 3 * H), jnp.bfloat16),   # staged QKV
                            pltpu.VMEM((b_tile, S, H), jnp.bfloat16)]),     # attention ctx
        compiler_params=pltpu.CompilerParams(
            dimension_semantics=("parallel", "arbitrary"),
            # TODO(synk): per-generation tune (v6e ~96-112 MiB; v7x needs weight N/K tiling);
            # 64 MiB is safe on all of v5e/v6e/v7x and well above the toy requirement.
            vmem_limit_bytes=64 * 1024 * 1024),
        cost_estimate=pl.CostEstimate(flops=flops, transcendentals=transcendentals,
                                      bytes_accessed=bytes_accessed),
    )(mask_idx, x, masks, *wlist, final_g, final_b)


# ----------------------------------------------------------------------------
# Sparse attention masks (ruDALL-E B.1) -- buffer setup, plain numpy glue
# ----------------------------------------------------------------------------
def get_row_mask(text_tokens, image_tokens_per_dim):
    size = text_tokens + image_tokens_per_dim ** 2
    mask = np.tril(np.ones((size, size), dtype=np.float32))
    step = image_tokens_per_dim + 1
    for col in range(text_tokens, size):
        mask[col + step:, col] = 0.0
    return mask


def get_col_mask(text_tokens, image_tokens_per_dim):
    size = text_tokens + image_tokens_per_dim ** 2
    mask = np.tril(np.ones((size, size), dtype=np.float32))
    step = image_tokens_per_dim - 1
    for col in range(text_tokens, size):
        for i in range(1, size, step + 1):
            mask[col + i: col + i + step, col] = 0.0
    return mask


def get_conv_mask(text_tokens, image_tokens_per_dim, kernel=11):
    size = text_tokens + image_tokens_per_dim ** 2
    mask = np.tril(np.ones((size, size), dtype=np.float32))
    shift = kernel // 2
    for pos in range(text_tokens, size):
        mask[pos + 1:, pos] = 0.0
        pixel_id = pos - text_tokens
        row = pixel_id // image_tokens_per_dim
        col = pixel_id % image_tokens_per_dim
        for r in range(-shift, shift + 1):
            for c in range(-shift, shift + 1):
                c_abs = max(min(c + col, image_tokens_per_dim - 1), 0)
                r_abs = max(min(r + row, image_tokens_per_dim - 1), 0)
                cell_id = r_abs * image_tokens_per_dim + c_abs + 1
                if text_tokens + cell_id > pos:
                    mask[text_tokens + cell_id - 1, pos] = 1.0
    return mask


# ----------------------------------------------------------------------------
# Transformer (parameter setup + mask dedup/precombination are plain JAX/numpy glue)
# ----------------------------------------------------------------------------
class PallasTransformer:
    def __init__(self, num_layers, hidden_size, num_attention_heads,
                 num_text_tokens_in_sequence, num_image_tokens_per_dim, key):
        self.num_layers = num_layers
        self.hidden_size = hidden_size
        self.num_heads = num_attention_heads
        head_dim = hidden_size // num_attention_heads

        # Only the 3 distinct (causal full_mask * sparse layer mask) combinations exist;
        # store them ONCE as an additive (0 / -10000) bf16 stack and select per layer
        # by an int32 index (scalar-prefetched, drives the mask BlockSpec index_map).
        row = get_row_mask(num_text_tokens_in_sequence, num_image_tokens_per_dim)
        col = get_col_mask(num_text_tokens_in_sequence, num_image_tokens_per_dim)
        conv = get_conv_mask(num_text_tokens_in_sequence, num_image_tokens_per_dim)
        total = num_text_tokens_in_sequence + num_image_tokens_per_dim ** 2
        full = np.tril(np.ones((total, total), dtype=np.float32))
        stacked = np.stack([full * row, full * col, full * conv])        # (3, S, S) 0/1
        additive = np.where(stacked > 0.0, 0.0, MASK_NEG).astype(np.float32)
        self.masks_add = jnp.asarray(additive, dtype=jnp.bfloat16)       # (3, S, S)

        idx = []
        for i in range(num_layers):
            if (i - 1) % 4 == 0:
                idx.append(1)                   # col mask
            elif i != num_layers - 1:
                idx.append(0)                   # row mask
            else:
                idx.append(2)                   # conv mask
        self.mask_idx = jnp.asarray(idx, dtype=jnp.int32)                # (L,)

        # Deterministic parameter init, stacked across layers (leading layer axis) so a
        # single pallas_call pipelines weight DMA along the layer grid axis.
        H = hidden_size
        L = num_layers
        std = 0.02
        q_scale = 1.0 / math.sqrt(head_dim)     # folded into Q columns of w_qkv
        keys = jax.random.split(key, L * 4)
        w_qkv, w_o, w_1, w_2 = [], [], [], []
        for i in range(L):
            k0, k1, k2, k3 = keys[4 * i: 4 * i + 4]
            wq = std * jax.random.normal(k0, (H, 3 * H), jnp.float32)
            wq = wq.at[:, :H].multiply(q_scale)   # fold 1/sqrt(head_dim) into Q
            w_qkv.append(wq)
            w_o.append(std * jax.random.normal(k1, (H, H), jnp.float32))
            w_1.append(std * jax.random.normal(k2, (H, 4 * H), jnp.float32))
            w_2.append(std * jax.random.normal(k3, (4 * H, H), jnp.float32))

        # Weights in bf16 (MXU inputs); biases / layernorm params stay f32.
        self.params = {
            "ln1_g": jnp.ones((L, 1, H), jnp.float32),
            "ln1_b": jnp.zeros((L, 1, H), jnp.float32),
            "w_qkv": jnp.stack(w_qkv).astype(jnp.bfloat16),
            "b_qkv": jnp.zeros((L, 1, 3 * H), jnp.float32),
            "w_o":   jnp.stack(w_o).astype(jnp.bfloat16),
            "b_o":   jnp.zeros((L, 1, H), jnp.float32),
            "ln2_g": jnp.ones((L, 1, H), jnp.float32),
            "ln2_b": jnp.zeros((L, 1, H), jnp.float32),
            "w_1":   jnp.stack(w_1).astype(jnp.bfloat16),
            "b_1":   jnp.zeros((L, 1, 4 * H), jnp.float32),
            "w_2":   jnp.stack(w_2).astype(jnp.bfloat16),
            "b_2":   jnp.zeros((L, 1, H), jnp.float32),
        }
        self.final_ln_g = jnp.ones((1, H), jnp.float32)
        self.final_ln_b = jnp.zeros((1, H), jnp.float32)

    def __call__(self, x):
        B, S, H = x.shape
        masks = self.masks_add[:, :S, :S]
        # Block the batch axis so each layer-weight DMA serves B_tile rows (weight HBM
        # traffic scales as B/B_tile).  Largest of (4,2,1) dividing B.
        for b_tile in (4, 2, 1):
            if B % b_tile == 0:
                break
        return run_transformer(self.mask_idx, x, masks, self.params,
                               self.final_ln_g, self.final_ln_b,
                               self.num_heads, b_tile)


# ----------------------------------------------------------------------------
if __name__ == "__main__":
    key = jax.random.PRNGKey(0)
    k_param, k_x = jax.random.split(key)

    num_layers = 2
    hidden_size = 128
    num_heads = 4
    num_text_tokens = 16
    num_image_tokens_per_dim = 4          # -> total sequence = 16 + 16 = 32
    B = 2
    S = num_text_tokens + num_image_tokens_per_dim ** 2

    model = PallasTransformer(num_layers, hidden_size, num_heads,
                              num_text_tokens, num_image_tokens_per_dim, k_param)

    x = jax.random.normal(k_x, (B, S, hidden_size), dtype=jnp.float32)
    out = model(x)
    out = jax.block_until_ready(out)

    assert out.shape == (B, S, hidden_size), out.shape
    assert bool(jnp.all(jnp.isfinite(out)))
    print("KERNEL_OK")
</pallas_src>

<mosaic_0001>
module attributes {stable_mosaic.version = 11 : i64} {
  func.func @kernel(%arg0: i32, %arg1: i32, %arg2: memref<2xi32, #tpu.memory_space<smem>>, %arg3: memref<2x32x128xf32, #tpu.memory_space<vmem>>, %arg4: memref<1x32x32xbf16, #tpu.memory_space<vmem>>, %arg5: memref<1x1x128xf32, #tpu.memory_space<vmem>>, %arg6: memref<1x1x128xf32, #tpu.memory_space<vmem>>, %arg7: memref<1x128x384xbf16, #tpu.memory_space<vmem>>, %arg8: memref<1x1x384xf32, #tpu.memory_space<vmem>>, %arg9: memref<1x128x128xbf16, #tpu.memory_space<vmem>>, %arg10: memref<1x1x128xf32, #tpu.memory_space<vmem>>, %arg11: memref<1x1x128xf32, #tpu.memory_space<vmem>>, %arg12: memref<1x1x128xf32, #tpu.memory_space<vmem>>, %arg13: memref<1x128x512xbf16, #tpu.memory_space<vmem>>, %arg14: memref<1x1x512xf32, #tpu.memory_space<vmem>>, %arg15: memref<1x512x128xbf16, #tpu.memory_space<vmem>>, %arg16: memref<1x1x128xf32, #tpu.memory_space<vmem>>, %arg17: memref<1x128xf32, #tpu.memory_space<vmem>>, %arg18: memref<1x128xf32, #tpu.memory_space<vmem>>, %arg19: memref<2x32x128xf32, #tpu.memory_space<vmem>>, %arg20: memref<2x32x128xf32, #tpu.memory_space<vmem>>, %arg21: memref<2x32x384xbf16, #tpu.memory_space<vmem>>, %arg22: memref<2x32x128xbf16, #tpu.memory_space<vmem>>) attributes {dimension_semantics = [#tpu.dimension_semantics<parallel>, #tpu.dimension_semantics<arbitrary>], iteration_bounds = array<i64: 1, 2>, scalar_prefetch = 1 : i64, scratch_operands = 3 : i64, tpu.core_type = #tpu.core_type<tc>, window_params = [{transform_indices = @transform_0, window_bounds = array<i64: 2, 32, 128>}, {transform_indices = @transform_1, window_bounds = array<i64: 1, 32, 32>}, {transform_indices = @transform_2, window_bounds = array<i64: 1, 1, 128>}, {transform_indices = @transform_3, window_bounds = array<i64: 1, 1, 128>}, {transform_indices = @transform_4, window_bounds = array<i64: 1, 128, 384>}, {transform_indices = @transform_5, window_bounds = array<i64: 1, 1, 384>}, {transform_indices = @transform_6, window_bounds = array<i64: 1, 128, 128>}, {transform_indices = @transform_7, window_bounds = array<i64: 1, 1, 128>}, {transform_indices = @transform_8, window_bounds = array<i64: 1, 1, 128>}, {transform_indices = @transform_9, window_bounds = array<i64: 1, 1, 128>}, {transform_indices = @transform_10, window_bounds = array<i64: 1, 128, 512>}, {transform_indices = @transform_11, window_bounds = array<i64: 1, 1, 512>}, {transform_indices = @transform_12, window_bounds = array<i64: 1, 512, 128>}, {transform_indices = @transform_13, window_bounds = array<i64: 1, 1, 128>}, {pipeline_mode = #tpu.pipeline_mode<synchronous>, transform_indices = @transform_14, window_bounds = array<i64: 1, 128>}, {pipeline_mode = #tpu.pipeline_mode<synchronous>, transform_indices = @transform_15, window_bounds = array<i64: 1, 128>}, {transform_indices = @transform_16, window_bounds = array<i64: 2, 32, 128>}]} {
    %c0_i32 = arith.constant 0 : i32
    %0 = arith.cmpi eq, %arg1, %c0_i32 : i32
    %1 = arith.extui %0 : i1 to i32
    %c0_i32_0 = arith.constant 0 : i32
    %2 = arith.cmpi ne, %1, %c0_i32_0 : i32
    scf.if %2 {
      %c0_132 = arith.constant 0 : index
      %c0_133 = arith.constant 0 : index
      %c0_134 = arith.constant 0 : index
      %216 = vector.load %arg3[%c0_132, %c0_133, %c0_134] : memref<2x32x128xf32, #tpu.memory_space<vmem>>, vector<2x32x128xf32>
      %c0_135 = arith.constant 0 : index
      %c0_136 = arith.constant 0 : index
      %c0_137 = arith.constant 0 : index
      %217 = vector.load %arg20[%c0_135, %c0_136, %c0_137] : memref<2x32x128xf32, #tpu.memory_space<vmem>>, vector<2x32x128xf32>
      tpu.vector_store %arg20[%c0_135, %c0_136, %c0_137], %216 {strides = array<i32>} : memref<2x32x128xf32, #tpu.memory_space<vmem>>, vector<2x32x128xf32>,
    } else {
    }
    %c0 = arith.constant 0 : index
    %c0_1 = arith.constant 0 : index
    %c0_2 = arith.constant 0 : index
    %3 = vector.load %arg20[%c0, %c0_1, %c0_2] : memref<2x32x128xf32, #tpu.memory_space<vmem>>, vector<2x32x128xf32>
    %c0_3 = arith.constant 0 : index
    %c0_4 = arith.constant 0 : index
    %c0_5 = arith.constant 0 : index
    %4 = vector.load %arg5[%c0_3, %c0_4, %c0_5] : memref<1x1x128xf32, #tpu.memory_space<vmem>>, vector<1x1x128xf32>
    %5 = vector.shape_cast %4 : vector<1x1x128xf32> to vector<1x128xf32>
    %c0_6 = arith.constant 0 : index
    %c0_7 = arith.constant 0 : index
    %c0_8 = arith.constant 0 : index
    %6 = vector.load %arg6[%c0_6, %c0_7, %c0_8] : memref<1x1x128xf32, #tpu.memory_space<vmem>>, vector<1x1x128xf32>
    %7 = vector.shape_cast %6 : vector<1x1x128xf32> to vector<1x128xf32>
    %cst = arith.constant dense<0.000000e+00> : vector<2x32xf32>
    %8 = vector.multi_reduction <add>, %3, %cst [2] : vector<2x32x128xf32> to vector<2x32xf32>
    %9 = vector.shape_cast %8 : vector<2x32xf32> to vector<2x32x1xf32>
    %cst_9 = arith.constant 1.280000e+02 : f32
    %10 = vector.broadcast %cst_9 : f32 to vector<2x32x1xf32>
    %11 = arith.divf %9, %10 : vector<2x32x1xf32>
    %12 = vector.broadcast %11 : vector<2x32x1xf32> to vector<2x32x128xf32>
    %13 = arith.subf %3, %12 : vector<2x32x128xf32>
    %14 = arith.mulf %13, %13 : vector<2x32x128xf32>
    %cst_10 = arith.constant dense<0.000000e+00> : vector<2x32xf32>
    %15 = vector.multi_reduction <add>, %14, %cst_10 [2] : vector<2x32x128xf32> to vector<2x32xf32>
    %16 = vector.shape_cast %15 : vector<2x32xf32> to vector<2x32x1xf32>
    %cst_11 = arith.constant 1.280000e+02 : f32
    %17 = vector.broadcast %cst_11 : f32 to vector<2x32x1xf32>
    %18 = arith.divf %16, %17 : vector<2x32x1xf32>
    %19 = vector.broadcast %11 : vector<2x32x1xf32> to vector<2x32x128xf32>
    %20 = arith.subf %3, %19 : vector<2x32x128xf32>
    %cst_12 = arith.constant 9.99999974E-6 : f32
    %21 = vector.broadcast %cst_12 : f32 to vector<2x32x1xf32>
    %22 = arith.addf %18, %21 : vector<2x32x1xf32>
    %23 = math.rsqrt %22 : vector<2x32x1xf32>
    %24 = vector.broadcast %23 : vector<2x32x1xf32> to vector<2x32x128xf32>
    %25 = arith.mulf %20, %24 : vector<2x32x128xf32>
    %26 = vector.shape_cast %5 : vector<1x128xf32> to vector<1x1x128xf32>
    %27 = vector.broadcast %26 : vector<1x1x128xf32> to vector<2x32x128xf32>
    %28 = arith.mulf %25, %27 : vector<2x32x128xf32>
    %29 = vector.shape_cast %7 : vector<1x128xf32> to vector<1x1x128xf32>
    %30 = vector.broadcast %29 : vector<1x1x128xf32> to vector<2x32x128xf32>
    %31 = arith.addf %28, %30 : vector<2x32x128xf32>
    %32 = vector.shape_cast %31 : vector<2x32x128xf32> to vector<64x128xf32>
    %33 = arith.truncf %32 : vector<64x128xf32> to vector<64x128xbf16>
    %c0_13 = arith.constant 0 : index
    %c0_14 = arith.constant 0 : index
    %c0_15 = arith.constant 0 : index
    %34 = vector.load %arg7[%c0_13, %c0_14, %c0_15] : memref<1x128x384xbf16, #tpu.memory_space<vmem>>, vector<1x128x384xbf16>
    %35 = vector.shape_cast %34 : vector<1x128x384xbf16> to vector<128x384xbf16>
    %cst_16 = arith.constant dense<0.000000e+00> : vector<64x384xf32>
    %36 = tpu.matmul %33, %35, %cst_16 {dimension_numbers = #tpu.dot_dimension_numbers<[1], [0], [0], [1], [0, 0, 1, 1], [], []>} : vector<64x128xbf16>, vector<128x384xbf16>, vector<64x384xf32> -> vector<64x384xf32>
    %c0_17 = arith.constant 0 : index
    %c0_18 = arith.constant 0 : index
    %c0_19 = arith.constant 0 : index
    %37 = vector.load %arg8[%c0_17, %c0_18, %c0_19] : memref<1x1x384xf32, #tpu.memory_space<vmem>>, vector<1x1x384xf32>
    %38 = vector.shape_cast %37 : vector<1x1x384xf32> to vector<1x384xf32>
    %39 = vector.broadcast %38 : vector<1x384xf32> to vector<64x384xf32>
    %40 = arith.addf %36, %39 : vector<64x384xf32>
    %41 = arith.truncf %40 : vector<64x384xf32> to vector<64x384xbf16>
    %42 = vector.shape_cast %41 : vector<64x384xbf16> to vector<2x32x384xbf16>
    %c0_20 = arith.constant 0 : index
    %c0_21 = arith.constant 0 : index
    %c0_22 = arith.constant 0 : index
    %43 = vector.load %arg21[%c0_20, %c0_21, %c0_22] : memref<2x32x384xbf16, #tpu.memory_space<vmem>>, vector<2x32x384xbf16>
    tpu.vector_store %arg21[%c0_20, %c0_21, %c0_22], %42 {strides = array<i32>} : memref<2x32x384xbf16, #tpu.memory_space<vmem>>, vector<2x32x384xbf16>,
    %c0_23 = arith.constant 0 : index
    %c0_24 = arith.constant 0 : index
    %c0_25 = arith.constant 0 : index
    %44 = vector.load %arg21[%c0_23, %c0_24, %c0_25] : memref<2x32x384xbf16, #tpu.memory_space<vmem>>, vector<2x32x32xbf16>
    %c0_26 = arith.constant 0 : index
    %c0_27 = arith.constant 0 : index
    %c128 = arith.constant 128 : index
    %45 = vector.load %arg21[%c0_26, %c0_27, %c128] : memref<2x32x384xbf16, #tpu.memory_space<vmem>>, vector<2x32x32xbf16>
    %c0_28 = arith.constant 0 : index
    %c0_29 = arith.constant 0 : index
    %c256 = arith.constant 256 : index
    %46 = vector.load %arg21[%c0_28, %c0_29, %c256] : memref<2x32x384xbf16, #tpu.memory_space<vmem>>, vector<2x32x32xbf16>
    "tpu.trace_start"() <{level = 10 : i32, message = "bqd,bkd->bqk"}> : () -> ()
    %cst_30 = arith.constant dense<0.000000e+00> : vector<2x32x32xf32>
    %47 = tpu.matmul %44, %45, %cst_30 {dimension_numbers = #tpu.dot_dimension_numbers<[2], [2], [1], [1], [0, 0, 0, 1, 1, 1], [0], [0]>} : vector<2x32x32xbf16>, vector<2x32x32xbf16>, vector<2x32x32xf32> -> vector<2x32x32xf32>
    "tpu.trace_stop"() : () -> ()
    %c0_31 = arith.constant 0 : index
    %c0_32 = arith.constant 0 : index
    %c0_33 = arith.constant 0 : index
    %48 = vector.load %arg4[%c0_31, %c0_32, %c0_33] : memref<1x32x32xbf16, #tpu.memory_space<vmem>>, vector<1x32x32xbf16>
    %49 = vector.shape_cast %48 : vector<1x32x32xbf16> to vector<32x32xbf16>
    %50 = arith.extf %49 : vector<32x32xbf16> to vector<32x32xf32>
    %51 = vector.shape_cast %50 : vector<32x32xf32> to vector<1x32x32xf32>
    %52 = vector.broadcast %51 : vector<1x32x32xf32> to vector<2x32x32xf32>
    %53 = arith.addf %47, %52 : vector<2x32x32xf32>
    %cst_34 = arith.constant dense<0xFF800000> : vector<2x32xf32>
    %54 = vector.multi_reduction <maximumf>, %53, %cst_34 [2] : vector<2x32x32xf32> to vector<2x32xf32>
    %55 = vector.shape_cast %54 : vector<2x32xf32> to vector<2x32x1xf32>
    %56 = vector.broadcast %55 : vector<2x32x1xf32> to vector<2x32x32xf32>
    %57 = arith.subf %53, %56 : vector<2x32x32xf32>
    %58 = math.exp %57 : vector<2x32x32xf32>
    %cst_35 = arith.constant dense<0.000000e+00> : vector<2x32xf32>
    %59 = vector.multi_reduction <add>, %58, %cst_35 [2] : vector<2x32x32xf32> to vector<2x32xf32>
    %60 = vector.shape_cast %59 : vector<2x32xf32> to vector<2x32x1xf32>
    %61 = tpu.reciprocal %60 {approx = true} : vector<2x32x1xf32> -> vector<2x32x1xf32>
    %62 = vector.broadcast %61 : vector<2x32x1xf32> to vector<2x32x32xf32>
    %63 = arith.mulf %58, %62 : vector<2x32x32xf32>
    %64 = arith.truncf %63 : vector<2x32x32xf32> to vector<2x32x32xbf16>
    "tpu.trace_start"() <{level = 10 : i32, message = "bqk,bkd->bqd"}> : () -> ()
    %cst_36 = arith.constant dense<0.000000e+00> : vector<2x32x32xf32>
    %65 = tpu.matmul %64, %46, %cst_36 {dimension_numbers = #tpu.dot_dimension_numbers<[2], [1], [1], [2], [0, 0, 0, 1, 1, 2], [0], [0]>} : vector<2x32x32xbf16>, vector<2x32x32xbf16>, vector<2x32x32xf32> -> vector<2x32x32xf32>
    "tpu.trace_stop"() : () -> ()
    %66 = arith.truncf %65 : vector<2x32x32xf32> to vector<2x32x32xbf16>
    %c0_37 = arith.constant 0 : index
    %c0_38 = arith.constant 0 : index
    %c0_39 = arith.constant 0 : index
    %67 = vector.load %arg22[%c0_37, %c0_38, %c0_39] : memref<2x32x128xbf16, #tpu.memory_space<vmem>>, vector<2x32x32xbf16>
    tpu.vector_store %arg22[%c0_37, %c0_38, %c0_39], %66 {strides = array<i32>} : memref<2x32x128xbf16, #tpu.memory_space<vmem>>, vector<2x32x32xbf16>,
    %c0_40 = arith.constant 0 : index
    %c0_41 = arith.constant 0 : index
    %c32 = arith.constant 32 : index
    %68 = vector.load %arg21[%c0_40, %c0_41, %c32] : memref<2x32x384xbf16, #tpu.memory_space<vmem>>, vector<2x32x32xbf16>
    %c0_42 = arith.constant 0 : index
    %c0_43 = arith.constant 0 : index
    %c160 = arith.constant 160 : index
    %69 = vector.load %arg21[%c0_42, %c0_43, %c160] : memref<2x32x384xbf16, #tpu.memory_space<vmem>>, vector<2x32x32xbf16>
    %c0_44 = arith.constant 0 : index
    %c0_45 = arith.constant 0 : index
    %c288 = arith.constant 288 : index
    %70 = vector.load %arg21[%c0_44, %c0_45, %c288] : memref<2x32x384xbf16, #tpu.memory_space<vmem>>, vector<2x32x32xbf16>
    "tpu.trace_start"() <{level = 10 : i32, message = "bqd,bkd->bqk"}> : () -> ()
    %cst_46 = arith.constant dense<0.000000e+00> : vector<2x32x32xf32>
    %71 = tpu.matmul %68, %69, %cst_46 {dimension_numbers = #tpu.dot_dimension_numbers<[2], [2], [1], [1], [0, 0, 0, 1, 1, 1], [0], [0]>} : vector<2x32x32xbf16>, vector<2x32x32xbf16>, vector<2x32x32xf32> -> vector<2x32x32xf32>
    "tpu.trace_stop"() : () -> ()
    %c0_47 = arith.constant 0 : index
    %c0_48 = arith.constant 0 : index
    %c0_49 = arith.constant 0 : index
    %72 = vector.load %arg4[%c0_47, %c0_48, %c0_49] : memref<1x32x32xbf16, #tpu.memory_space<vmem>>, vector<1x32x32xbf16>
    %73 = vector.shape_cast %72 : vector<1x32x32xbf16> to vector<32x32xbf16>
    %74 = arith.extf %73 : vector<32x32xbf16> to vector<32x32xf32>
    %75 = vector.shape_cast %74 : vector<32x32xf32> to vector<1x32x32xf32>
    %76 = vector.broadcast %75 : vector<1x32x32xf32> to vector<2x32x32xf32>
    %77 = arith.addf %71, %76 : vector<2x32x32xf32>
    %cst_50 = arith.constant dense<0xFF800000> : vector<2x32xf32>
    %78 = vector.multi_reduction <maximumf>, %77, %cst_50 [2] : vector<2x32x32xf32> to vector<2x32xf32>
    %79 = vector.shape_cast %78 : vector<2x32xf32> to vector<2x32x1xf32>
    %80 = vector.broadcast %79 : vector<2x32x1xf32> to vector<2x32x32xf32>
    %81 = arith.subf %77, %80 : vector<2x32x32xf32>
    %82 = math.exp %81 : vector<2x32x32xf32>
    %cst_51 = arith.constant dense<0.000000e+00> : vector<2x32xf32>
    %83 = vector.multi_reduction <add>, %82, %cst_51 [2] : vector<2x32x32xf32> to vector<2x32xf32>
    %84 = vector.shape_cast %83 : vector<2x32xf32> to vector<2x32x1xf32>
    %85 = tpu.reciprocal %84 {approx = true} : vector<2x32x1xf32> -> vector<2x32x1xf32>
    %86 = vector.broadcast %85 : vector<2x32x1xf32> to vector<2x32x32xf32>
    %87 = arith.mulf %82, %86 : vector<2x32x32xf32>
    %88 = arith.truncf %87 : vector<2x32x32xf32> to vector<2x32x32xbf16>
    "tpu.trace_start"() <{level = 10 : i32, message = "bqk,bkd->bqd"}> : () -> ()
    %cst_52 = arith.constant dense<0.000000e+00> : vector<2x32x32xf32>
    %89 = tpu.matmul %88, %70, %cst_52 {dimension_numbers = #tpu.dot_dimension_numbers<[2], [1], [1], [2], [0, 0, 0, 1, 1, 2], [0], [0]>} : vector<2x32x32xbf16>, vector<2x32x32xbf16>, vector<2x32x32xf32> -> vector<2x32x32xf32>
    "tpu.trace_stop"() : () -> ()
    %90 = arith.truncf %89 : vector<2x32x32xf32> to vector<2x32x32xbf16>
    %c0_53 = arith.constant 0 : index
    %c0_54 = arith.constant 0 : index
    %c32_55 = arith.constant 32 : index
    %91 = vector.load %arg22[%c0_53, %c0_54, %c32_55] : memref<2x32x128xbf16, #tpu.memory_space<vmem>>, vector<2x32x32xbf16>
    tpu.vector_store %arg22[%c0_53, %c0_54, %c32_55], %90 {strides = array<i32>} : memref<2x32x128xbf16, #tpu.memory_space<vmem>>, vector<2x32x32xbf16>,
    %c0_56 = arith.constant 0 : index
    %c0_57 = arith.constant 0 : index
    %c64 = arith.constant 64 : index
    %92 = vector.load %arg21[%c0_56, %c0_57, %c64] : memref<2x32x384xbf16, #tpu.memory_space<vmem>>, vector<2x32x32xbf16>
    %c0_58 = arith.constant 0 : index
    %c0_59 = arith.constant 0 : index
    %c192 = arith.constant 192 : index
    %93 = vector.load %arg21[%c0_58, %c0_59, %c192] : memref<2x32x384xbf16, #tpu.memory_space<vmem>>, vector<2x32x32xbf16>
    %c0_60 = arith.constant 0 : index
    %c0_61 = arith.constant 0 : index
    %c320 = arith.constant 320 : index
    %94 = vector.load %arg21[%c0_60, %c0_61, %c320] : memref<2x32x384xbf16, #tpu.memory_space<vmem>>, vector<2x32x32xbf16>
    "tpu.trace_start"() <{level = 10 : i32, message = "bqd,bkd->bqk"}> : () -> ()
    %cst_62 = arith.constant dense<0.000000e+00> : vector<2x32x32xf32>
    %95 = tpu.matmul %92, %93, %cst_62 {dimension_numbers = #tpu.dot_dimension_numbers<[2], [2], [1], [1], [0, 0, 0, 1, 1, 1], [0], [0]>} : vector<2x32x32xbf16>, vector<2x32x32xbf16>, vector<2x32x32xf32> -> vector<2x32x32xf32>
    "tpu.trace_stop"() : () -> ()
    %c0_63 = arith.constant 0 : index
    %c0_64 = arith.constant 0 : index
    %c0_65 = arith.constant 0 : index
    %96 = vector.load %arg4[%c0_63, %c0_64, %c0_65] : memref<1x32x32xbf16, #tpu.memory_space<vmem>>, vector<1x32x32xbf16>
    %97 = vector.shape_cast %96 : vector<1x32x32xbf16> to vector<32x32xbf16>
    %98 = arith.extf %97 : vector<32x32xbf16> to vector<32x32xf32>
    %99 = vector.shape_cast %98 : vector<32x32xf32> to vector<1x32x32xf32>
    %100 = vector.broadcast %99 : vector<1x32x32xf32> to vector<2x32x32xf32>
    %101 = arith.addf %95, %100 : vector<2x32x32xf32>
    %cst_66 = arith.constant dense<0xFF800000> : vector<2x32xf32>
    %102 = vector.multi_reduction <maximumf>, %101, %cst_66 [2] : vector<2x32x32xf32> to vector<2x32xf32>
    %103 = vector.shape_cast %102 : vector<2x32xf32> to vector<2x32x1xf32>
    %104 = vector.broadcast %103 : vector<2x32x1xf32> to vector<2x32x32xf32>
    %105 = arith.subf %101, %104 : vector<2x32x32xf32>
    %106 = math.exp %105 : vector<2x32x32xf32>
    %cst_67 = arith.constant dense<0.000000e+00> : vector<2x32xf32>
    %107 = vector.multi_reduction <add>, %106, %cst_67 [2] : vector<2x32x32xf32> to vector<2x32xf32>
    %108 = vector.shape_cast %107 : vector<2x32xf32> to vector<2x32x1xf32>
    %109 = tpu.reciprocal %108 {approx = true} : vector<2x32x1xf32> -> vector<2x32x1xf32>
    %110 = vector.broadcast %109 : vector<2x32x1xf32> to vector<2x32x32xf32>
    %111 = arith.mulf %106, %110 : vector<2x32x32xf32>
    %112 = arith.truncf %111 : vector<2x32x32xf32> to vector<2x32x32xbf16>
    "tpu.trace_start"() <{level = 10 : i32, message = "bqk,bkd->bqd"}> : () -> ()
    %cst_68 = arith.constant dense<0.000000e+00> : vector<2x32x32xf32>
    %113 = tpu.matmul %112, %94, %cst_68 {dimension_numbers = #tpu.dot_dimension_numbers<[2], [1], [1], [2], [0, 0, 0, 1, 1, 2], [0], [0]>} : vector<2x32x32xbf16>, vector<2x32x32xbf16>, vector<2x32x32xf32> -> vector<2x32x32xf32>
    "tpu.trace_stop"() : () -> ()
    %114 = arith.truncf %113 : vector<2x32x32xf32> to vector<2x32x32xbf16>
    %c0_69 = arith.constant 0 : index
    %c0_70 = arith.constant 0 : index
    %c64_71 = arith.constant 64 : index
    %115 = vector.load %arg22[%c0_69, %c0_70, %c64_71] : memref<2x32x128xbf16, #tpu.memory_space<vmem>>, vector<2x32x32xbf16>
    tpu.vector_store %arg22[%c0_69, %c0_70, %c64_71], %114 {strides = array<i32>} : memref<2x32x128xbf16, #tpu.memory_space<vmem>>, vector<2x32x32xbf16>,
    %c0_72 = arith.constant 0 : index
    %c0_73 = arith.constant 0 : index
    %c96 = arith.constant 96 : index
    %116 = vector.load %arg21[%c0_72, %c0_73, %c96] : memref<2x32x384xbf16, #tpu.memory_space<vmem>>, vector<2x32x32xbf16>
    %c0_74 = arith.constant 0 : index
    %c0_75 = arith.constant 0 : index
    %c224 = arith.constant 224 : index
    %117 = vector.load %arg21[%c0_74, %c0_75, %c224] : memref<2x32x384xbf16, #tpu.memory_space<vmem>>, vector<2x32x32xbf16>
    %c0_76 = arith.constant 0 : index
    %c0_77 = arith.constant 0 : index
    %c352 = arith.constant 352 : index
    %118 = vector.load %arg21[%c0_76, %c0_77, %c352] : memref<2x32x384xbf16, #tpu.memory_space<vmem>>, vector<2x32x32xbf16>
    "tpu.trace_start"() <{level = 10 : i32, message = "bqd,bkd->bqk"}> : () -> ()
    %cst_78 = arith.constant dense<0.000000e+00> : vector<2x32x32xf32>
    %119 = tpu.matmul %116, %117, %cst_78 {dimension_numbers = #tpu.dot_dimension_numbers<[2], [2], [1], [1], [0, 0, 0, 1, 1, 1], [0], [0]>} : vector<2x32x32xbf16>, vector<2x32x32xbf16>, vector<2x32x32xf32> -> vector<2x32x32xf32>
    "tpu.trace_stop"() : () -> ()
    %c0_79 = arith.constant 0 : index
    %c0_80 = arith.constant 0 : index
    %c0_81 = arith.constant 0 : index
    %120 = vector.load %arg4[%c0_79, %c0_80, %c0_81] : memref<1x32x32xbf16, #tpu.memory_space<vmem>>, vector<1x32x32xbf16>
    %121 = vector.shape_cast %120 : vector<1x32x32xbf16> to vector<32x32xbf16>
    %122 = arith.extf %121 : vector<32x32xbf16> to vector<32x32xf32>
    %123 = vector.shape_cast %122 : vector<32x32xf32> to vector<1x32x32xf32>
    %124 = vector.broadcast %123 : vector<1x32x32xf32> to vector<2x32x32xf32>
    %125 = arith.addf %119, %124 : vector<2x32x32xf32>
    %cst_82 = arith.constant dense<0xFF800000> : vector<2x32xf32>
    %126 = vector.multi_reduction <maximumf>, %125, %cst_82 [2] : vector<2x32x32xf32> to vector<2x32xf32>
    %127 = vector.shape_cast %126 : vector<2x32xf32> to vector<2x32x1xf32>
    %128 = vector.broadcast %127 : vector<2x32x1xf32> to vector<2x32x32xf32>
    %129 = arith.subf %125, %128 : vector<2x32x32xf32>
    %130 = math.exp %129 : vector<2x32x32xf32>
    %cst_83 = arith.constant dense<0.000000e+00> : vector<2x32xf32>
    %131 = vector.multi_reduction <add>, %130, %cst_83 [2] : vector<2x32x32xf32> to vector<2x32xf32>
    %132 = vector.shape_cast %131 : vector<2x32xf32> to vector<2x32x1xf32>
    %133 = tpu.reciprocal %132 {approx = true} : vector<2x32x1xf32> -> vector<2x32x1xf32>
    %134 = vector.broadcast %133 : vector<2x32x1xf32> to vector<2x32x32xf32>
    %135 = arith.mulf %130, %134 : vector<2x32x32xf32>
    %136 = arith.truncf %135 : vector<2x32x32xf32> to vector<2x32x32xbf16>
    "tpu.trace_start"() <{level = 10 : i32, message = "bqk,bkd->bqd"}> : () -> ()
    %cst_84 = arith.constant dense<0.000000e+00> : vector<2x32x32xf32>
    %137 = tpu.matmul %136, %118, %cst_84 {dimension_numbers = #tpu.dot_dimension_numbers<[2], [1], [1], [2], [0, 0, 0, 1, 1, 2], [0], [0]>} : vector<2x32x32xbf16>, vector<2x32x32xbf16>, vector<2x32x32xf32> -> vector<2x32x32xf32>
    "tpu.trace_stop"() : () -> ()
    %138 = arith.truncf %137 : vector<2x32x32xf32> to vector<2x32x32xbf16>
    %c0_85 = arith.constant 0 : index
    %c0_86 = arith.constant 0 : index
    %c96_87 = arith.constant 96 : index
    %139 = vector.load %arg22[%c0_85, %c0_86, %c96_87] : memref<2x32x128xbf16, #tpu.memory_space<vmem>>, vector<2x32x32xbf16>
    tpu.vector_store %arg22[%c0_85, %c0_86, %c96_87], %138 {strides = array<i32>} : memref<2x32x128xbf16, #tpu.memory_space<vmem>>, vector<2x32x32xbf16>,
    %c0_88 = arith.constant 0 : index
    %c0_89 = arith.constant 0 : index
    %c0_90 = arith.constant 0 : index
    %140 = vector.load %arg22[%c0_88, %c0_89, %c0_90] : memref<2x32x128xbf16, #tpu.memory_space<vmem>>, vector<2x32x128xbf16>
    %141 = vector.shape_cast %140 : vector<2x32x128xbf16> to vector<64x128xbf16>
    %c0_91 = arith.constant 0 : index
    %c0_92 = arith.constant 0 : index
    %c0_93 = arith.constant 0 : index
    %142 = vector.load %arg9[%c0_91, %c0_92, %c0_93] : memref<1x128x128xbf16, #tpu.memory_space<vmem>>, vector<1x128x128xbf16>
    %143 = vector.shape_cast %142 : vector<1x128x128xbf16> to vector<128x128xbf16>
    %cst_94 = arith.constant dense<0.000000e+00> : vector<64x128xf32>
    %144 = tpu.matmul %141, %143, %cst_94 {dimension_numbers = #tpu.dot_dimension_numbers<[1], [0], [0], [1], [0, 0, 1, 1], [], []>} : vector<64x128xbf16>, vector<128x128xbf16>, vector<64x128xf32> -> vector<64x128xf32>
    %c0_95 = arith.constant 0 : index
    %c0_96 = arith.constant 0 : index
    %c0_97 = arith.constant 0 : index
    %145 = vector.load %arg10[%c0_95, %c0_96, %c0_97] : memref<1x1x128xf32, #tpu.memory_space<vmem>>, vector<1x1x128xf32>
    %146 = vector.shape_cast %145 : vector<1x1x128xf32> to vector<1x128xf32>
    %147 = vector.broadcast %146 : vector<1x128xf32> to vector<64x128xf32>
    %148 = arith.addf %144, %147 : vector<64x128xf32>
    %149 = vector.shape_cast %148 : vector<64x128xf32> to vector<2x32x128xf32>
    %150 = arith.addf %3, %149 : vector<2x32x128xf32>
    %c0_98 = arith.constant 0 : index
    %c0_99 = arith.constant 0 : index
    %c0_100 = arith.constant 0 : index
    %151 = vector.load %arg11[%c0_98, %c0_99, %c0_100] : memref<1x1x128xf32, #tpu.memory_space<vmem>>, vector<1x1x128xf32>
    %152 = vector.shape_cast %151 : vector<1x1x128xf32> to vector<1x128xf32>
    %c0_101 = arith.constant 0 : index
    %c0_102 = arith.constant 0 : index
    %c0_103 = arith.constant 0 : index
    %153 = vector.load %arg12[%c0_101, %c0_102, %c0_103] : memref<1x1x128xf32, #tpu.memory_space<vmem>>, vector<1x1x128xf32>
    %154 = vector.shape_cast %153 : vector<1x1x128xf32> to vector<1x128xf32>
    %cst_104 = arith.constant dense<0.000000e+00> : vector<2x32xf32>
    %155 = vector.multi_reduction <add>, %150, %cst_104 [2] : vector<2x32x128xf32> to vector<2x32xf32>
    %156 = vector.shape_cast %155 : vector<2x32xf32> to vector<2x32x1xf32>
    %cst_105 = arith.constant 1.280000e+02 : f32
    %157 = vector.broadcast %cst_105 : f32 to vector<2x32x1xf32>
    %158 = arith.divf %156, %157 : vector<2x32x1xf32>
    %159 = vector.broadcast %158 : vector<2x32x1xf32> to vector<2x32x128xf32>
    %160 = arith.subf %150, %159 : vector<2x32x128xf32>
    %161 = arith.mulf %160, %160 : vector<2x32x128xf32>
    %cst_106 = arith.constant dense<0.000000e+00> : vector<2x32xf32>
    %162 = vector.multi_reduction <add>, %161, %cst_106 [2] : vector<2x32x128xf32> to vector<2x32xf32>
    %163 = vector.shape_cast %162 : vector<2x32xf32> to vector<2x32x1xf32>
    %cst_107 = arith.constant 1.280000e+02 : f32
    %164 = vector.broadcast %cst_107 : f32 to vector<2x32x1xf32>
    %165 = arith.divf %163, %164 : vector<2x32x1xf32>
    %166 = vector.broadcast %158 : vector<2x32x1xf32> to vector<2x32x128xf32>
    %167 = arith.subf %150, %166 : vector<2x32x128xf32>
    %cst_108 = arith.constant 9.99999974E-6 : f32
    %168 = vector.broadcast %cst_108 : f32 to vector<2x32x1xf32>
    %169 = arith.addf %165, %168 : vector<2x32x1xf32>
    %170 = math.rsqrt %169 : vector<2x32x1xf32>
    %171 = vector.broadcast %170 : vector<2x32x1xf32> to vector<2x32x128xf32>
    %172 = arith.mulf %167, %171 : vector<2x32x128xf32>
    %173 = vector.shape_cast %152 : vector<1x128xf32> to vector<1x1x128xf32>
    %174 = vector.broadcast %173 : vector<1x1x128xf32> to vector<2x32x128xf32>
    %175 = arith.mulf %172, %174 : vector<2x32x128xf32>
    %176 = vector.shape_cast %154 : vector<1x128xf32> to vector<1x1x128xf32>
    %177 = vector.broadcast %176 : vector<1x1x128xf32> to vector<2x32x128xf32>
    %178 = arith.addf %175, %177 : vector<2x32x128xf32>
    %179 = vector.shape_cast %178 : vector<2x32x128xf32> to vector<64x128xf32>
    %180 = arith.truncf %179 : vector<64x128xf32> to vector<64x128xbf16>
    %c0_109 = arith.constant 0 : index
    %c0_110 = arith.constant 0 : index
    %c0_111 = arith.constant 0 : index
    %181 = vector.load %arg13[%c0_109, %c0_110, %c0_111] : memref<1x128x512xbf16, #tpu.memory_space<vmem>>, vector<1x128x512xbf16>
    %182 = vector.shape_cast %181 : vector<1x128x512xbf16> to vector<128x512xbf16>
    %cst_112 = arith.constant dense<0.000000e+00> : vector<64x512xf32>
    %183 = tpu.matmul %180, %182, %cst_112 {dimension_numbers = #tpu.dot_dimension_numbers<[1], [0], [0], [1], [0, 0, 1, 1], [], []>} : vector<64x128xbf16>, vector<128x512xbf16>, vector<64x512xf32> -> vector<64x512xf32>
    %c0_113 = arith.constant 0 : index
    %c0_114 = arith.constant 0 : index
    %c0_115 = arith.constant 0 : index
    %184 = vector.load %arg14[%c0_113, %c0_114, %c0_115] : memref<1x1x512xf32, #tpu.memory_space<vmem>>, vector<1x1x512xf32>
    %185 = vector.shape_cast %184 : vector<1x1x512xf32> to vector<1x512xf32>
    %186 = vector.broadcast %185 : vector<1x512xf32> to vector<64x512xf32>
    %187 = arith.addf %183, %186 : vector<64x512xf32>
    %cst_116 = arith.constant 5.000000e-01 : f32
    %188 = vector.broadcast %cst_116 : f32 to vector<64x512xf32>
    %189 = arith.mulf %188, %187 : vector<64x512xf32>
    %cst_117 = arith.constant 0.797884583 : f32
    %190 = vector.broadcast %cst_117 : f32 to vector<64x512xf32>
    %191 = arith.mulf %190, %187 : vector<64x512xf32>
    %cst_118 = arith.constant 4.471500e-02 : f32
    %192 = vector.broadcast %cst_118 : f32 to vector<64x512xf32>
    %193 = arith.mulf %192, %187 : vector<64x512xf32>
    %194 = arith.mulf %193, %187 : vector<64x512xf32>
    %cst_119 = arith.constant 1.000000e+00 : f32
    %195 = vector.broadcast %cst_119 : f32 to vector<64x512xf32>
    %196 = arith.addf %195, %194 : vector<64x512xf32>
    %197 = arith.mulf %191, %196 : vector<64x512xf32>
    %198 = math.tanh %197 : vector<64x512xf32>
    %cst_120 = arith.constant 1.000000e+00 : f32
    %199 = vector.broadcast %cst_120 : f32 to vector<64x512xf32>
    %200 = arith.addf %199, %198 : vector<64x512xf32>
    %201 = arith.mulf %189, %200 : vector<64x512xf32>
    %202 = arith.truncf %201 : vector<64x512xf32> to vector<64x512xbf16>
    %c0_121 = arith.constant 0 : index
    %c0_122 = arith.constant 0 : index
    %c0_123 = arith.constant 0 : index
    %203 = vector.load %arg15[%c0_121, %c0_122, %c0_123] : memref<1x512x128xbf16, #tpu.memory_space<vmem>>, vector<1x512x128xbf16>
    %204 = vector.shape_cast %203 : vector<1x512x128xbf16> to vector<512x128xbf16>
    %cst_124 = arith.constant dense<0.000000e+00> : vector<64x128xf32>
    %205 = tpu.matmul %202, %204, %cst_124 {dimension_numbers = #tpu.dot_dimension_numbers<[1], [0], [0], [1], [0, 0, 1, 1], [], []>} : vector<64x512xbf16>, vector<512x128xbf16>, vector<64x128xf32> -> vector<64x128xf32>
    %c0_125 = arith.constant 0 : index
    %c0_126 = arith.constant 0 : index
    %c0_127 = arith.constant 0 : index
    %206 = vector.load %arg16[%c0_125, %c0_126, %c0_127] : memref<1x1x128xf32, #tpu.memory_space<vmem>>, vector<1x1x128xf32>
    %207 = vector.shape_cast %206 : vector<1x1x128xf32> to vector<1x128xf32>
    %208 = vector.broadcast %207 : vector<1x128xf32> to vector<64x128xf32>
    %209 = arith.addf %205, %208 : vector<64x128xf32>
    %210 = vector.shape_cast %209 : vector<64x128xf32> to vector<2x32x128xf32>
    %211 = arith.addf %150, %210 : vector<2x32x128xf32>
    %c0_128 = arith.constant 0 : index
    %c0_129 = arith.constant 0 : index
    %c0_130 = arith.constant 0 : index
    %212 = vector.load %arg20[%c0_128, %c0_129, %c0_130] : memref<2x32x128xf32, #tpu.memory_space<vmem>>, vector<2x32x128xf32>
    tpu.vector_store %arg20[%c0_128, %c0_129, %c0_130], %211 {strides = array<i32>} : memref<2x32x128xf32, #tpu.memory_space<vmem>>, vector<2x32x128xf32>,
    %c1_i32 = arith.constant 1 : i32
    %213 = arith.cmpi eq, %arg1, %c1_i32 : i32
    %214 = arith.extui %213 : i1 to i32
    %c0_i32_131 = arith.constant 0 : i32
    %215 = arith.cmpi ne, %214, %c0_i32_131 : i32
    scf.if %215 {
      %c0_132 = arith.constant 0 : index
      %c0_133 = arith.constant 0 : index
      %216 = vector.load %arg17[%c0_132, %c0_133] : memref<1x128xf32, #tpu.memory_space<vmem>>, vector<1x128xf32>
      %c0_134 = arith.constant 0 : index
      %c0_135 = arith.constant 0 : index
      %217 = vector.load %arg18[%c0_134, %c0_135] : memref<1x128xf32, #tpu.memory_space<vmem>>, vector<1x128xf32>
      %cst_136 = arith.constant dense<0.000000e+00> : vector<2x32xf32>
      %218 = vector.multi_reduction <add>, %211, %cst_136 [2] : vector<2x32x128xf32> to vector<2x32xf32>
      %219 = vector.shape_cast %218 : vector<2x32xf32> to vector<2x32x1xf32>
      %cst_137 = arith.constant 1.280000e+02 : f32
      %220 = vector.broadcast %cst_137 : f32 to vector<2x32x1xf32>
      %221 = arith.divf %219, %220 : vector<2x32x1xf32>
      %222 = vector.broadcast %221 : vector<2x32x1xf32> to vector<2x32x128xf32>
      %223 = arith.subf %211, %222 : vector<2x32x128xf32>
      %224 = arith.mulf %223, %223 : vector<2x32x128xf32>
      %cst_138 = arith.constant dense<0.000000e+00> : vector<2x32xf32>
      %225 = vector.multi_reduction <add>, %224, %cst_138 [2] : vector<2x32x128xf32> to vector<2x32xf32>
      %226 = vector.shape_cast %225 : vector<2x32xf32> to vector<2x32x1xf32>
      %cst_139 = arith.constant 1.280000e+02 : f32
      %227 = vector.broadcast %cst_139 : f32 to vector<2x32x1xf32>
      %228 = arith.divf %226, %227 : vector<2x32x1xf32>
      %229 = vector.broadcast %221 : vector<2x32x1xf32> to vector<2x32x128xf32>
      %230 = arith.subf %211, %229 : vector<2x32x128xf32>
      %cst_140 = arith.constant 9.99999974E-6 : f32
      %231 = vector.broadcast %cst_140 : f32 to vector<2x32x1xf32>
      %232 = arith.addf %228, %231 : vector<2x32x1xf32>
      %233 = math.rsqrt %232 : vector<2x32x1xf32>
      %234 = vector.broadcast %233 : vector<2x32x1xf32> to vector<2x32x128xf32>
      %235 = arith.mulf %230, %234 : vector<2x32x128xf32>
      %236 = vector.shape_cast %216 : vector<1x128xf32> to vector<1x1x128xf32>
      %237 = vector.broadcast %236 : vector<1x1x128xf32> to vector<2x32x128xf32>
      %238 = arith.mulf %235, %237 : vector<2x32x128xf32>
      %239 = vector.shape_cast %217 : vector<1x128xf32> to vector<1x1x128xf32>
      %240 = vector.broadcast %239 : vector<1x1x128xf32> to vector<2x32x128xf32>
      %241 = arith.addf %238, %240 : vector<2x32x128xf32>
      %c0_141 = arith.constant 0 : index
      %c0_142 = arith.constant 0 : index
      %c0_143 = arith.constant 0 : index
      %242 = vector.load %arg19[%c0_141, %c0_142, %c0_143] : memref<2x32x128xf32, #tpu.memory_space<vmem>>, vector<2x32x128xf32>
      tpu.vector_store %arg19[%c0_141, %c0_142, %c0_143], %241 {strides = array<i32>} : memref<2x32x128xf32, #tpu.memory_space<vmem>>, vector<2x32x128xf32>,
    } else {
    }
    return
  }
  func.func @transform_0(%arg0: i32, %arg1: i32, %arg2: memref<2xi32, #tpu.memory_space<smem>>) -> (i32, i32, i32) {
    %c0_i32 = arith.constant 0 : i32
    %c0_i32_0 = arith.constant 0 : i32
    %c0_i32_1 = arith.constant 0 : i32
    return %arg0, %c0_i32, %c0_i32_0 : i32, i32, i32
  }
  func.func @transform_1(%arg0: i32, %arg1: i32, %arg2: memref<2xi32, #tpu.memory_space<smem>>) -> (i32, i32, i32) {
    %0 = arith.index_cast %arg1 : i32 to index
    %1 = memref.load %arg2[%0] : memref<2xi32, #tpu.memory_space<smem>>
    %c0_i32 = arith.constant 0 : i32
    %c0_i32_0 = arith.constant 0 : i32
    %c0_i32_1 = arith.constant 0 : i32
    return %1, %c0_i32, %c0_i32_0 : i32, i32, i32
  }
  func.func @transform_2(%arg0: i32, %arg1: i32, %arg2: memref<2xi32, #tpu.memory_space<smem>>) -> (i32, i32, i32) {
    %c0_i32 = arith.constant 0 : i32
    %c0_i32_0 = arith.constant 0 : i32
    %c0_i32_1 = arith.constant 0 : i32
    return %arg1, %c0_i32, %c0_i32_0 : i32, i32, i32
  }
  func.func @transform_3(%arg0: i32, %arg1: i32, %arg2: memref<2xi32, #tpu.memory_space<smem>>) -> (i32, i32, i32) {
    %c0_i32 = arith.constant 0 : i32
    %c0_i32_0 = arith.constant 0 : i32
    %c0_i32_1 = arith.constant 0 : i32
    return %arg1, %c0_i32, %c0_i32_0 : i32, i32, i32
  }
  func.func @transform_4(%arg0: i32, %arg1: i32, %arg2: memref<2xi32, #tpu.memory_space<smem>>) -> (i32, i32, i32) {
    %c0_i32 = arith.constant 0 : i32
    %c0_i32_0 = arith.constant 0 : i32
    %c0_i32_1 = arith.constant 0 : i32
    return %arg1, %c0_i32, %c0_i32_0 : i32, i32, i32
  }
  func.func @transform_5(%arg0: i32, %arg1: i32, %arg2: memref<2xi32, #tpu.memory_space<smem>>) -> (i32, i32, i32) {
    %c0_i32 = arith.constant 0 : i32
    %c0_i32_0 = arith.constant 0 : i32
    %c0_i32_1 = arith.constant 0 : i32
    return %arg1, %c0_i32, %c0_i32_0 : i32, i32, i32
  }
  func.func @transform_6(%arg0: i32, %arg1: i32, %arg2: memref<2xi32, #tpu.memory_space<smem>>) -> (i32, i32, i32) {
    %c0_i32 = arith.constant 0 : i32
    %c0_i32_0 = arith.constant 0 : i32
    %c0_i32_1 = arith.constant 0 : i32
    return %arg1, %c0_i32, %c0_i32_0 : i32, i32, i32
  }
  func.func @transform_7(%arg0: i32, %arg1: i32, %arg2: memref<2xi32, #tpu.memory_space<smem>>) -> (i32, i32, i32) {
    %c0_i32 = arith.constant 0 : i32
    %c0_i32_0 = arith.constant 0 : i32
    %c0_i32_1 = arith.constant 0 : i32
    return %arg1, %c0_i32, %c0_i32_0 : i32, i32, i32
  }
  func.func @transform_8(%arg0: i32, %arg1: i32, %arg2: memref<2xi32, #tpu.memory_space<smem>>) -> (i32, i32, i32) {
    %c0_i32 = arith.constant 0 : i32
    %c0_i32_0 = arith.constant 0 : i32
    %c0_i32_1 = arith.constant 0 : i32
    return %arg1, %c0_i32, %c0_i32_0 : i32, i32, i32
  }
  func.func @transform_9(%arg0: i32, %arg1: i32, %arg2: memref<2xi32, #tpu.memory_space<smem>>) -> (i32, i32, i32) {
    %c0_i32 = arith.constant 0 : i32
    %c0_i32_0 = arith.constant 0 : i32
    %c0_i32_1 = arith.constant 0 : i32
    return %arg1, %c0_i32, %c0_i32_0 : i32, i32, i32
  }
  func.func @transform_10(%arg0: i32, %arg1: i32, %arg2: memref<2xi32, #tpu.memory_space<smem>>) -> (i32, i32, i32) {
    %c0_i32 = arith.constant 0 : i32
    %c0_i32_0 = arith.constant 0 : i32
    %c0_i32_1 = arith.constant 0 : i32
    return %arg1, %c0_i32, %c0_i32_0 : i32, i32, i32
  }
  func.func @transform_11(%arg0: i32, %arg1: i32, %arg2: memref<2xi32, #tpu.memory_space<smem>>) -> (i32, i32, i32) {
    %c0_i32 = arith.constant 0 : i32
    %c0_i32_0 = arith.constant 0 : i32
    %c0_i32_1 = arith.constant 0 : i32
    return %arg1, %c0_i32, %c0_i32_0 : i32, i32, i32
  }
  func.func @transform_12(%arg0: i32, %arg1: i32, %arg2: memref<2xi32, #tpu.memory_space<smem>>) -> (i32, i32, i32) {
    %c0_i32 = arith.constant 0 : i32
    %c0_i32_0 = arith.constant 0 : i32
    %c0_i32_1 = arith.constant 0 : i32
    return %arg1, %c0_i32, %c0_i32_0 : i32, i32, i32
  }
  func.func @transform_13(%arg0: i32, %arg1: i32, %arg2: memref<2xi32, #tpu.memory_space<smem>>) -> (i32, i32, i32) {
    %c0_i32 = arith.constant 0 : i32
    %c0_i32_0 = arith.constant 0 : i32
    %c0_i32_1 = arith.constant 0 : i32
    return %arg1, %c0_i32, %c0_i32_0 : i32, i32, i32
  }
  func.func @transform_14(%arg0: i32, %arg1: i32, %arg2: memref<2xi32, #tpu.memory_space<smem>>) -> (i32, i32) {
    %c0_i32 = arith.constant 0 : i32
    %c0_i32_0 = arith.constant 0 : i32
    %c0_i32_1 = arith.constant 0 : i32
    return %c0_i32, %c0_i32_0 : i32, i32
  }
  func.func @transform_15(%arg0: i32, %arg1: i32, %arg2: memref<2xi32, #tpu.memory_space<smem>>) -> (i32, i32) {
    %c0_i32 = arith.constant 0 : i32
    %c0_i32_0 = arith.constant 0 : i32
    %c0_i32_1 = arith.constant 0 : i32
    return %c0_i32, %c0_i32_0 : i32, i32
  }
  func.func @transform_16(%arg0: i32, %arg1: i32, %arg2: memref<2xi32, #tpu.memory_space<smem>>) -> (i32, i32, i32) {
    %c0_i32 = arith.constant 0 : i32
    %c0_i32_0 = arith.constant 0 : i32
    %c0_i32_1 = arith.constant 0 : i32
    return %arg0, %c0_i32, %c0_i32_0 : i32, i32, i32
  }
}

</mosaic_0001>

<llo_original>
// kernel: tpu_custom_call.1
$region0: #{tpu_custom_call.1}
  #allocation0 [shape = 'u32[]', space=smem, size = 0x4, offset = 0x4, fixed_abs, tag = 'smem constant byte address 0x4 - core index']
  #allocation1 [shape = 'u32[144,128]{1,0:T(1,128)}', space=vmem, size = 0x12000, scoped, tag = 'internal scratch']
  #allocation2 [shape = 'f32[2,32,128]{2,1,0:T(8,128)}', space=vmem, size = 0x8000, scoped, tag = 'scratch operand']
  #allocation3 [shape = 'bf16[2,32,384]{2,1,0:T(16,128)(2,1)}', space=vmem, size = 0xc000, scoped, tag = 'scratch operand']
  #allocation4 [shape = 'bf16[2,32,128]{2,1,0:T(16,128)(2,1)}', space=vmem, size = 0x4000, scoped, tag = 'scratch operand']
  #allocation5 [shape = 's32[1]{0}', space=sflag, size = 0x4, scoped, tag = 'scoped memory for tpu_custom_call.1']
  #allocation6 [shape = 'u8[512]{0}', space=smem, size = 0x200, scoped, tag = 'prefetched SMEM operand 0']
  %s0 = inlined_call_operand.hbm [shape: s32[2], index: 0, kind: input, shape index: {}]
  %s1 = inlined_call_operand.hbm [shape: f32[2,32,128], index: 1, kind: input, shape index: {}]
  %s2 = inlined_call_operand.hbm [shape: bf16[3,32,32], index: 2, kind: input, shape index: {}]
  %s3 = inlined_call_operand.hbm [shape: f32[2,1,128], index: 3, kind: input, shape index: {}]
  %s4 = inlined_call_operand.hbm [shape: f32[2,1,128], index: 4, kind: input, shape index: {}]
  %s5 = inlined_call_operand.hbm [shape: bf16[2,128,384], index: 5, kind: input, shape index: {}]
  %s6 = inlined_call_operand.hbm [shape: f32[2,1,384], index: 6, kind: input, shape index: {}]
  %s7 = inlined_call_operand.hbm [shape: bf16[2,128,128], index: 7, kind: input, shape index: {}]
  %s8 = inlined_call_operand.hbm [shape: f32[2,1,128], index: 8, kind: input, shape index: {}]
  %s9 = inlined_call_operand.hbm [shape: f32[2,1,128], index: 9, kind: input, shape index: {}]
  %s10 = inlined_call_operand.hbm [shape: f32[2,1,128], index: 10, kind: input, shape index: {}]
  %s11 = inlined_call_operand.hbm [shape: bf16[2,128,512], index: 11, kind: input, shape index: {}]
  %s12 = inlined_call_operand.hbm [shape: f32[2,1,512], index: 12, kind: input, shape index: {}]
  %s13 = inlined_call_operand.hbm [shape: bf16[2,512,128], index: 13, kind: input, shape index: {}]
  %s14 = inlined_call_operand.hbm [shape: f32[2,1,128], index: 14, kind: input, shape index: {}]
  %s15 = inlined_call_operand.hbm [shape: f32[1,128], index: 15, kind: input, shape index: {}]
  %s16 = inlined_call_operand.hbm [shape: f32[1,128], index: 16, kind: input, shape index: {}]
  %s17 = inlined_call_operand.hbm [shape: f32[2,32,128], index: 17, kind: output, shape index: {}]
  %s18 = sld [smem:[#allocation0]]
  $region169: #{tpu_custom_call.1} parent=0
    _
  %s20 = ssub.s32 1, %s18
  %s21 = scalar_select 0, %s20, %s18
  %23 = dma.hbm_to_smem %s0, 16, [#allocation6], [#allocation5]
  %24 = dma.done [#allocation5], 16
  %25 = sfence
  $region1: #{tpu_custom_call.1} parent=0
    #allocation7 [shape = 'u8[32768]{0}', space=vmem, size = 0x8000, scoped, tag = 'input window, operand 1, single buffered']
    #allocation8 [shape = 's32[2]{0}', space=sflag, size = 0x8, scoped, tag = 'scoped memory for tpu_custom_call.1']
    #allocation9 [shape = 's32[2]{0}', space=sflag, size = 0x8, scoped, tag = 'scoped memory for tpu_custom_call.1']
    #allocation10 [shape = 'u8[16384]{0}', space=vmem, size = 0x4000, scoped, tag = 'input window, operand 2']
    #allocation11 [shape = 's32[2]{0}', space=sflag, size = 0x8, scoped, tag = 'scoped memory for tpu_custom_call.1']
    #allocation12 [shape = 'u8[1024]{0}', space=vmem, size = 0x400, scoped, tag = 'input window, operand 3']
    #allocation13 [shape = 'u8[1024]{0}', space=vmem, size = 0x400, scoped, tag = 'input window, operand 4']
    #allocation14 [shape = 's32[2]{0}', space=sflag, size = 0x8, scoped, tag = 'scoped memory for tpu_custom_call.1']
    #allocation15 [shape = 'u8[196608]{0}', space=vmem, size = 0x30000, scoped, tag = 'input window, operand 5']
    #allocation16 [shape = 'u8[3072]{0}', space=vmem, size = 0xc00, scoped, tag = 'input window, operand 6']
    #allocation17 [shape = 's32[2]{0}', space=sflag, size = 0x8, scoped, tag = 'scoped memory for tpu_custom_call.1']
    #allocation18 [shape = 'u8[65536]{0}', space=vmem, size = 0x10000, scoped, tag = 'input window, operand 7']
    #allocation19 [shape = 'u8[1024]{0}', space=vmem, size = 0x400, scoped, tag = 'input window, operand 8']
    #allocation20 [shape = 's32[2]{0}', space=sflag, size = 0x8, scoped, tag = 'scoped memory for tpu_custom_call.1']
    #allocation21 [shape = 'u8[1024]{0}', space=vmem, size = 0x400, scoped, tag = 'input window, operand 9']
    #allocation22 [shape = 'u8[1024]{0}', space=vmem, size = 0x400, scoped, tag = 'input window, operand 10']
    #allocation23 [shape = 's32[2]{0}', space=sflag, size = 0x8, scoped, tag = 'scoped memory for tpu_custom_call.1']
    #allocation24 [shape = 'u8[262144]{0}', space=vmem, size = 0x40000, scoped, tag = 'input window, operand 11']
    #allocation25 [shape = 'u8[4096]{0}', space=vmem, size = 0x1000, scoped, tag = 'input window, operand 12']
    #allocation26 [shape = 's32[2]{0}', space=sflag, size = 0x8, scoped, tag = 'scoped memory for tpu_custom_call.1']
    #allocation27 [shape = 'u8[262144]{0}', space=vmem, size = 0x40000, scoped, tag = 'input window, operand 13']
    #allocation28 [shape = 'u8[1024]{0}', space=vmem, size = 0x400, scoped, tag = 'input window, operand 14']
    #allocation29 [shape = 's32[2]{0}', space=sflag, size = 0x8, scoped, tag = 'scoped memory for tpu_custom_call.1']
    #allocation30 [shape = 'u8[512]{0}', space=vmem, size = 0x400, scoped, tag = 'input window, operand 15, single buffered']
    #allocation31 [shape = 'u8[512]{0}', space=vmem, size = 0x400, scoped, tag = 'input window, operand 16, single buffered']
    #allocation32 [shape = 's32[1]{0}', space=sflag, size = 0x4, scoped, tag = 'scoped memory for tpu_custom_call.1']
    #allocation33 [shape = 'u8[32768]{0}', space=vmem, size = 0x8000, scoped, tag = 'output window, operand 0, single buffered']
    %26 = vsyncpa [#allocation8], 0
    %27 = vsyncpa [#allocation11], 0
    %s28 = scalar_lea.sflag [#allocation11], 1
    %29 = vsyncpa %s28, 0
    %30 = vsyncpa [#allocation14], 0
    %s31 = scalar_lea.sflag [#allocation14], 1
    %32 = vsyncpa %s31, 0
    %33 = vsyncpa [#allocation17], 0
    %s34 = scalar_lea.sflag [#allocation17], 1
    %35 = vsyncpa %s34, 0
    %36 = vsyncpa [#allocation20], 0
    %s37 = scalar_lea.sflag [#allocation20], 1
    %38 = vsyncpa %s37, 0
    %39 = vsyncpa [#allocation23], 0
    %s40 = scalar_lea.sflag [#allocation23], 1
    %41 = vsyncpa %s40, 0
    %42 = vsyncpa [#allocation26], 0
    %s43 = scalar_lea.sflag [#allocation26], 1
    %44 = vsyncpa %s43, 0
    %45 = vsyncpa [#allocation29], 0
    %s46 = scalar_lea.sflag [#allocation29], 1
    %47 = vsyncpa %s46, 0
    %48 = vsyncpa [#allocation32], 0
    %49 = vsyncpa [#allocation9], 0
    loop: start=0, step=1, limit=4
    $region2: #{tpu_custom_call.1} parent=1 // loop_pre_header
      _
    $region3: #{tpu_custom_call.1} parent=1 // loop_header
      %s51 = sphi 0, %s55
      %p52 = scmp.ge.s32.totalorder %s51, 4
      %s58 = sphi 0, %s70
      %s59 = sphi 0, %s66
      %s60 = sphi 0, %s58
      %s61 = sphi 0, %s59
      %s62 = sphi 0, %s60
      %s63 = sphi 0, %s61
      %s73 = sphi 0, %s75
      %s76 = sphi 0, %s73
      %s77 = sphi 0, %s76
      %s93 = sphi 0, %s77
      %s101 = sphi 0, %s103
      %s104 = sphi 0, %s101
      %s105 = sphi 0, %s104
      %s121 = sphi 0, %s105
      %s127 = sphi 0, %s129
      %s130 = sphi 0, %s127
      %s131 = sphi 0, %s130
      %s147 = sphi 0, %s131
      %s153 = sphi 0, %s155
      %s156 = sphi 0, %s153
      %s157 = sphi 0, %s156
      %s173 = sphi 0, %s157
      %s179 = sphi 0, %s181
      %s182 = sphi 0, %s179
      %s183 = sphi 0, %s182
      %s199 = sphi 0, %s183
      %s205 = sphi 0, %s207
      %s208 = sphi 0, %s205
      %s209 = sphi 0, %s208
      %s225 = sphi 0, %s209
      %s231 = sphi 0, %s233
      %s234 = sphi 0, %s231
      %s235 = sphi 0, %s234
      %s251 = sphi 0, %s235
      %s257 = sphi 0, %s259
      %s260 = sphi 0, %s257
      %s261 = sphi 0, %s260
      %s277 = sphi 0, %s261
      %s283 = sphi 0, %s285
      %s286 = sphi 0, %s283
      %s287 = sphi 0, %s286
      %s303 = sphi 0, %s287
      %s309 = sphi 0, %s311
      %s312 = sphi 0, %s309
      %s313 = sphi 0, %s312
      %s329 = sphi 0, %s313
      %s335 = sphi 0, %s337
      %s338 = sphi 0, %s335
      %s339 = sphi 0, %s338
      %s355 = sphi 0, %s339
      %s361 = sphi 0, %s363
      %s364 = sphi 0, %s361
      %s365 = sphi 0, %s364
      %s381 = sphi 0, %s365
      %s387 = sphi 0, %s389
      %s390 = sphi 0, %s387
      %s391 = sphi 0, %s390
      %s407 = sphi 0, %s391
      %s413 = sphi 0, %s415
      %s416 = sphi 0, %s413
      %s417 = sphi 0, %s416
      %s433 = sphi 0, %s417
      %s437 = sphi 0, %s437
      %s439 = sphi 0, %s437
      %s440 = sphi 0, %s439
      %s454 = sphi 0, %s440
      %s458 = sphi 0, %s458
      %s460 = sphi 0, %s458
      %s461 = sphi 0, %s460
      %s475 = sphi 0, %s461
      %s481 = sphi 0, %s483
      %s484 = sphi 0, %s481
      %s485 = sphi 0, %s484
      %s501 = sphi 0, %s485
    $region4: #{tpu_custom_call.1} parent=1 // loop_header_branch
      %54 = sbr.rel (%p52) target = $region8
    $region5: #{tpu_custom_call.1} parent=1 // loop_body
      %s56 = ssub.s32 %s51, 1
      %s57 = ssub.s32 %s51, 2
      %s64 = sadd.s32 1, %s59
      %p65 = scmp.ge.s32.totalorder %s64, 2
      %s66 = scalar_select %p65, 0, %s64
      %s67 = sadd.s32 1, %s58
      %s68 = scalar_select %p65, %s67, %s58
      %p69 = scmp.ge.s32.totalorder %s68, 1
      %s70 = scalar_select %p69, 0, %s68
      %s71 = ssub.s32 %s58, %s70
      %p72 = scmp.eq.s32.totalorder %s71, 0
      %s74 = sadd.s32 %s73, 1
      %s75 = scalar_select %p72, %s73, %s74
      %p78 = pneg %p72
      %p79 = scmp.eq.s32.totalorder %s51, 1
      %p80 = por %p78, %p79
      %p81 = scmp.ne.s32.totalorder %s73, %s76
      %p82 = scmp.eq.s32.totalorder %s51, 0
      %p83 = por %p81, %p82
      %p84 = scmp.ne.s32.totalorder %s73, %s76
      %p85 = scmp.eq.s32.totalorder %s56, 1
      %p86 = por %p84, %p85
      %p87 = scmp.ne.s32.totalorder %s76, %s77
      %p88 = scmp.eq.s32.totalorder %s56, 0
      %p89 = por %p87, %p88
      %p90 = scmp.ne.s32.totalorder %s76, %s77
      %p91 = scmp.eq.s32.totalorder %s57, 1
      %p92 = por %p90, %p91
      %p94 = scmp.ne.s32.totalorder %s77, %s93
      %p95 = scmp.eq.s32.totalorder %s57, 0
      %p96 = por %p94, %p95
      %s97 = sld [smem:[#allocation6 + %s59]]
      %s98 = sld [smem:[#allocation6 + %s66]]
      %s99 = ssub.s32 %s97, %s98
      %p100 = scmp.eq.s32.totalorder %s99, 0
      %s102 = sadd.s32 %s101, 1
      %s103 = scalar_select %p100, %s101, %s102
      %p106 = pneg %p100
      %p107 = scmp.eq.s32.totalorder %s51, 1
      %p108 = por %p106, %p107
      %p109 = scmp.ne.s32.totalorder %s101, %s104
      %p110 = scmp.eq.s32.totalorder %s51, 0
      %p111 = por %p109, %p110
      %p112 = scmp.ne.s32.totalorder %s101, %s104
      %p113 = scmp.eq.s32.totalorder %s56, 1
      %p114 = por %p112, %p113
      %p115 = scmp.ne.s32.totalorder %s104, %s105
      %p116 = scmp.eq.s32.totalorder %s56, 0
      %p117 = por %p115, %p116
      %p118 = scmp.ne.s32.totalorder %s104, %s105
      %p119 = scmp.eq.s32.totalorder %s57, 1
      %p120 = por %p118, %p119
      %p122 = scmp.ne.s32.totalorder %s105, %s121
      %p123 = scmp.eq.s32.totalorder %s57, 0
      %p124 = por %p122, %p123
      %s125 = ssub.s32 %s59, %s66
      %p126 = scmp.eq.s32.totalorder %s125, 0
      %s128 = sadd.s32 %s127, 1
      %s129 = scalar_select %p126, %s127, %s128
      %p132 = pneg %p126
      %p133 = scmp.eq.s32.totalorder %s51, 1
      %p134 = por %p132, %p133
      %p135 = scmp.ne.s32.totalorder %s127, %s130
      %p136 = scmp.eq.s32.totalorder %s51, 0
      %p137 = por %p135, %p136
      %p138 = scmp.ne.s32.totalorder %s127, %s130
      %p139 = scmp.eq.s32.totalorder %s56, 1
      %p140 = por %p138, %p139
      %p141 = scmp.ne.s32.totalorder %s130, %s131
      %p142 = scmp.eq.s32.totalorder %s56, 0
      %p143 = por %p141, %p142
      %p144 = scmp.ne.s32.totalorder %s130, %s131
      %p145 = scmp.eq.s32.totalorder %s57, 1
      %p146 = por %p144, %p145
      %p148 = scmp.ne.s32.totalorder %s131, %s147
      %p149 = scmp.eq.s32.totalorder %s57, 0
      %p150 = por %p148, %p149
      %s151 = ssub.s32 %s59, %s66
      %p152 = scmp.eq.s32.totalorder %s151, 0
      %s154 = sadd.s32 %s153, 1
      %s155 = scalar_select %p152, %s153, %s154
      %p158 = pneg %p152
      %p159 = scmp.eq.s32.totalorder %s51, 1
      %p160 = por %p158, %p159
      %p161 = scmp.ne.s32.totalorder %s153, %s156
      %p162 = scmp.eq.s32.totalorder %s51, 0
      %p163 = por %p161, %p162
      %p164 = scmp.ne.s32.totalorder %s153, %s156
      %p165 = scmp.eq.s32.totalorder %s56, 1
      %p166 = por %p164, %p165
      %p167 = scmp.ne.s32.totalorder %s156, %s157
      %p168 = scmp.eq.s32.totalorder %s56, 0
      %p169 = por %p167, %p168
      %p170 = scmp.ne.s32.totalorder %s156, %s157
      %p171 = scmp.eq.s32.totalorder %s57, 1
      %p172 = por %p170, %p171
      %p174 = scmp.ne.s32.totalorder %s157, %s173
      %p175 = scmp.eq.s32.totalorder %s57, 0
      %p176 = por %p174, %p175
      %s177 = ssub.s32 %s59, %s66
      %p178 = scmp.eq.s32.totalorder %s177, 0
      %s180 = sadd.s32 %s179, 1
      %s181 = scalar_select %p178, %s179, %s180
      %p184 = pneg %p178
      %p185 = scmp.eq.s32.totalorder %s51, 1
      %p186 = por %p184, %p185
      %p187 = scmp.ne.s32.totalorder %s179, %s182
      %p188 = scmp.eq.s32.totalorder %s51, 0
      %p189 = por %p187, %p188
      %p190 = scmp.ne.s32.totalorder %s179, %s182
      %p191 = scmp.eq.s32.totalorder %s56, 1
      %p192 = por %p190, %p191
      %p193 = scmp.ne.s32.totalorder %s182, %s183
      %p194 = scmp.eq.s32.totalorder %s56, 0
      %p195 = por %p193, %p194
      %p196 = scmp.ne.s32.totalorder %s182, %s183
      %p197 = scmp.eq.s32.totalorder %s57, 1
      %p198 = por %p196, %p197
      %p200 = scmp.ne.s32.totalorder %s183, %s199
      %p201 = scmp.eq.s32.totalorder %s57, 0
      %p202 = por %p200, %p201
      %s203 = ssub.s32 %s59, %s66
      %p204 = scmp.eq.s32.totalorder %s203, 0
      %s206 = sadd.s32 %s205, 1
      %s207 = scalar_select %p204, %s205, %s206
      %p210 = pneg %p204
      %p211 = scmp.eq.s32.totalorder %s51, 1
      %p212 = por %p210, %p211
      %p213 = scmp.ne.s32.totalorder %s205, %s208
      %p214 = scmp.eq.s32.totalorder %s51, 0
      %p215 = por %p213, %p214
      %p216 = scmp.ne.s32.totalorder %s205, %s208
      %p217 = scmp.eq.s32.totalorder %s56, 1
      %p218 = por %p216, %p217
      %p219 = scmp.ne.s32.totalorder %s208, %s209
      %p220 = scmp.eq.s32.totalorder %s56, 0
      %p221 = por %p219, %p220
      %p222 = scmp.ne.s32.totalorder %s208, %s209
      %p223 = scmp.eq.s32.totalorder %s57, 1
      %p224 = por %p222, %p223
      %p226 = scmp.ne.s32.totalorder %s209, %s225
      %p227 = scmp.eq.s32.totalorder %s57, 0
      %p228 = por %p226, %p227
      %s229 = ssub.s32 %s59, %s66
      %p230 = scmp.eq.s32.totalorder %s229, 0
      %s232 = sadd.s32 %s231, 1
      %s233 = scalar_select %p230, %s231, %s232
      %p236 = pneg %p230
      %p237 = scmp.eq.s32.totalorder %s51, 1
      %p238 = por %p236, %p237
      %p239 = scmp.ne.s32.totalorder %s231, %s234
      %p240 = scmp.eq.s32.totalorder %s51, 0
      %p241 = por %p239, %p240
      %p242 = scmp.ne.s32.totalorder %s231, %s234
      %p243 = scmp.eq.s32.totalorder %s56, 1
      %p244 = por %p242, %p243
      %p245 = scmp.ne.s32.totalorder %s234, %s235
      %p246 = scmp.eq.s32.totalorder %s56, 0
      %p247 = por %p245, %p246
      %p248 = scmp.ne.s32.totalorder %s234, %s235
      %p249 = scmp.eq.s32.totalorder %s57, 1
      %p250 = por %p248, %p249
      %p252 = scmp.ne.s32.totalorder %s235, %s251
      %p253 = scmp.eq.s32.totalorder %s57, 0
      %p254 = por %p252, %p253
      %s255 = ssub.s32 %s59, %s66
      %p256 = scmp.eq.s32.totalorder %s255, 0
      %s258 = sadd.s32 %s257, 1
      %s259 = scalar_select %p256, %s257, %s258
      %p262 = pneg %p256
      %p263 = scmp.eq.s32.totalorder %s51, 1
      %p264 = por %p262, %p263
      %p265 = scmp.ne.s32.totalorder %s257, %s260
      %p266 = scmp.eq.s32.totalorder %s51, 0
      %p267 = por %p265, %p266
      %p268 = scmp.ne.s32.totalorder %s257, %s260
      %p269 = scmp.eq.s32.totalorder %s56, 1
      %p270 = por %p268, %p269
      %p271 = scmp.ne.s32.totalorder %s260, %s261
      %p272 = scmp.eq.s32.totalorder %s56, 0
      %p273 = por %p271, %p272
      %p274 = scmp.ne.s32.totalorder %s260, %s261
      %p275 = scmp.eq.s32.totalorder %s57, 1
      %p276 = por %p274, %p275
      %p278 = scmp.ne.s32.totalorder %s261, %s277
      %p279 = scmp.eq.s32.totalorder %s57, 0
      %p280 = por %p278, %p279
      %s281 = ssub.s32 %s59, %s66
      %p282 = scmp.eq.s32.totalorder %s281, 0
      %s284 = sadd.s32 %s283, 1
      %s285 = scalar_select %p282, %s283, %s284
      %p288 = pneg %p282
      %p289 = scmp.eq.s32.totalorder %s51, 1
      %p290 = por %p288, %p289
      %p291 = scmp.ne.s32.totalorder %s283, %s286
      %p292 = scmp.eq.s32.totalorder %s51, 0
      %p293 = por %p291, %p292
      %p294 = scmp.ne.s32.totalorder %s283, %s286
      %p295 = scmp.eq.s32.totalorder %s56, 1
      %p296 = por %p294, %p295
      %p297 = scmp.ne.s32.totalorder %s286, %s287
      %p298 = scmp.eq.s32.totalorder %s56, 0
      %p299 = por %p297, %p298
      %p300 = scmp.ne.s32.totalorder %s286, %s287
      %p301 = scmp.eq.s32.totalorder %s57, 1
      %p302 = por %p300, %p301
      %p304 = scmp.ne.s32.totalorder %s287, %s303
      %p305 = scmp.eq.s32.totalorder %s57, 0
      %p306 = por %p304, %p305
      %s307 = ssub.s32 %s59, %s66
      %p308 = scmp.eq.s32.totalorder %s307, 0
      %s310 = sadd.s32 %s309, 1
      %s311 = scalar_select %p308, %s309, %s310
      %p314 = pneg %p308
      %p315 = scmp.eq.s32.totalorder %s51, 1
      %p316 = por %p314, %p315
      %p317 = scmp.ne.s32.totalorder %s309, %s312
      %p318 = scmp.eq.s32.totalorder %s51, 0
      %p319 = por %p317, %p318
      %p320 = scmp.ne.s32.totalorder %s309, %s312
      %p321 = scmp.eq.s32.totalorder %s56, 1
      %p322 = por %p320, %p321
      %p323 = scmp.ne.s32.totalorder %s312, %s313
      %p324 = scmp.eq.s32.totalorder %s56, 0
      %p325 = por %p323, %p324
      %p326 = scmp.ne.s32.totalorder %s312, %s313
      %p327 = scmp.eq.s32.totalorder %s57, 1
      %p328 = por %p326, %p327
      %p330 = scmp.ne.s32.totalorder %s313, %s329
      %p331 = scmp.eq.s32.totalorder %s57, 0
      %p332 = por %p330, %p331
      %s333 = ssub.s32 %s59, %s66
      %p334 = scmp.eq.s32.totalorder %s333, 0
      %s336 = sadd.s32 %s335, 1
      %s337 = scalar_select %p334, %s335, %s336
      %p340 = pneg %p334
      %p341 = scmp.eq.s32.totalorder %s51, 1
      %p342 = por %p340, %p341
      %p343 = scmp.ne.s32.totalorder %s335, %s338
      %p344 = scmp.eq.s32.totalorder %s51, 0
      %p345 = por %p343, %p344
      %p346 = scmp.ne.s32.totalorder %s335, %s338
      %p347 = scmp.eq.s32.totalorder %s56, 1
      %p348 = por %p346, %p347
      %p349 = scmp.ne.s32.totalorder %s338, %s339
      %p350 = scmp.eq.s32.totalorder %s56, 0
      %p351 = por %p349, %p350
      %p352 = scmp.ne.s32.totalorder %s338, %s339
      %p353 = scmp.eq.s32.totalorder %s57, 1
      %p354 = por %p352, %p353
      %p356 = scmp.ne.s32.totalorder %s339, %s355
      %p357 = scmp.eq.s32.totalorder %s57, 0
      %p358 = por %p356, %p357
      %s359 = ssub.s32 %s59, %s66
      %p360 = scmp.eq.s32.totalorder %s359, 0
      %s362 = sadd.s32 %s361, 1
      %s363 = scalar_select %p360, %s361, %s362
      %p366 = pneg %p360
      %p367 = scmp.eq.s32.totalorder %s51, 1
      %p368 = por %p366, %p367
      %p369 = scmp.ne.s32.totalorder %s361, %s364
      %p370 = scmp.eq.s32.totalorder %s51, 0
      %p371 = por %p369, %p370
      %p372 = scmp.ne.s32.totalorder %s361, %s364
      %p373 = scmp.eq.s32.totalorder %s56, 1
      %p374 = por %p372, %p373
      %p375 = scmp.ne.s32.totalorder %s364, %s365
      %p376 = scmp.eq.s32.totalorder %s56, 0
      %p377 = por %p375, %p376
      %p378 = scmp.ne.s32.totalorder %s364, %s365
      %p379 = scmp.eq.s32.totalorder %s57, 1
      %p380 = por %p378, %p379
      %p382 = scmp.ne.s32.totalorder %s365, %s381
      %p383 = scmp.eq.s32.totalorder %s57, 0
      %p384 = por %p382, %p383
      %s385 = ssub.s32 %s59, %s66
      %p386 = scmp.eq.s32.totalorder %s385, 0
      %s388 = sadd.s32 %s387, 1
      %s389 = scalar_select %p386, %s387, %s388
      %p392 = pneg %p386
      %p393 = scmp.eq.s32.totalorder %s51, 1
      %p394 = por %p392, %p393
      %p395 = scmp.ne.s32.totalorder %s387, %s390
      %p396 = scmp.eq.s32.totalorder %s51, 0
      %p397 = por %p395, %p396
      %p398 = scmp.ne.s32.totalorder %s387, %s390
      %p399 = scmp.eq.s32.totalorder %s56, 1
      %p400 = por %p398, %p399
      %p401 = scmp.ne.s32.totalorder %s390, %s391
      %p402 = scmp.eq.s32.totalorder %s56, 0
      %p403 = por %p401, %p402
      %p404 = scmp.ne.s32.totalorder %s390, %s391
      %p405 = scmp.eq.s32.totalorder %s57, 1
      %p406 = por %p404, %p405
      %p408 = scmp.ne.s32.totalorder %s391, %s407
      %p409 = scmp.eq.s32.totalorder %s57, 0
      %p410 = por %p408, %p409
      %s411 = ssub.s32 %s59, %s66
      %p412 = scmp.eq.s32.totalorder %s411, 0
      %s414 = sadd.s32 %s413, 1
      %s415 = scalar_select %p412, %s413, %s414
      %p418 = pneg %p412
      %p419 = scmp.eq.s32.totalorder %s51, 1
      %p420 = por %p418, %p419
      %p421 = scmp.ne.s32.totalorder %s413, %s416
      %p422 = scmp.eq.s32.totalorder %s51, 0
      %p423 = por %p421, %p422
      %p424 = scmp.ne.s32.totalorder %s413, %s416
      %p425 = scmp.eq.s32.totalorder %s56, 1
      %p426 = por %p424, %p425
      %p427 = scmp.ne.s32.totalorder %s416, %s417
      %p428 = scmp.eq.s32.totalorder %s56, 0
      %p429 = por %p427, %p428
      %p430 = scmp.ne.s32.totalorder %s416, %s417
      %p431 = scmp.eq.s32.totalorder %s57, 1
      %p432 = por %p430, %p431
      %p434 = scmp.ne.s32.totalorder %s417, %s433
      %p435 = scmp.eq.s32.totalorder %s57, 0
      %p436 = por %p434, %p435
      %s438 = sadd.s32 %s437, 1
      %p441 = scmp.eq.s32.totalorder %s51, 1
      %p442 = scmp.ne.s32.totalorder %s437, %s439
      %p443 = scmp.eq.s32.totalorder %s51, 0
      %p444 = por %p442, %p443
      %p445 = scmp.ne.s32.totalorder %s437, %s439
      %p446 = scmp.eq.s32.totalorder %s56, 1
      %p447 = por %p445, %p446
      %p448 = scmp.ne.s32.totalorder %s439, %s440
      %p449 = scmp.eq.s32.totalorder %s56, 0
      %p450 = por %p448, %p449
      %p451 = scmp.ne.s32.totalorder %s439, %s440
      %p452 = scmp.eq.s32.totalorder %s57, 1
      %p453 = por %p451, %p452
      %p455 = scmp.ne.s32.totalorder %s440, %s454
      %p456 = scmp.eq.s32.totalorder %s57, 0
      %p457 = por %p455, %p456
      %s459 = sadd.s32 %s458, 1
      %p462 = scmp.eq.s32.totalorder %s51, 1
      %p463 = scmp.ne.s32.totalorder %s458, %s460
      %p464 = scmp.eq.s32.totalorder %s51, 0
      %p465 = por %p463, %p464
      %p466 = scmp.ne.s32.totalorder %s458, %s460
      %p467 = scmp.eq.s32.totalorder %s56, 1
      %p468 = por %p466, %p467
      %p469 = scmp.ne.s32.totalorder %s460, %s461
      %p470 = scmp.eq.s32.totalorder %s56, 0
      %p471 = por %p469, %p470
      %p472 = scmp.ne.s32.totalorder %s460, %s461
      %p473 = scmp.eq.s32.totalorder %s57, 1
      %p474 = por %p472, %p473
      %p476 = scmp.ne.s32.totalorder %s461, %s475
      %p477 = scmp.eq.s32.totalorder %s57, 0
      %p478 = por %p476, %p477
      %s479 = ssub.s32 %s58, %s70
      %p480 = scmp.eq.s32.totalorder %s479, 0
      %s482 = sadd.s32 %s481, 1
      %s483 = scalar_select %p480, %s481, %s482
      %p486 = pneg %p480
      %p487 = scmp.eq.s32.totalorder %s51, 1
      %p488 = por %p486, %p487
      %p489 = scmp.ne.s32.totalorder %s481, %s484
      %p490 = scmp.eq.s32.totalorder %s51, 0
      %p491 = por %p489, %p490
      %p492 = scmp.ne.s32.totalorder %s481, %s484
      %p493 = scmp.eq.s32.totalorder %s56, 1
      %p494 = por %p492, %p493
      %p495 = scmp.ne.s32.totalorder %s484, %s485
      %p496 = scmp.eq.s32.totalorder %s56, 0
      %p497 = por %p495, %p496
      %p498 = scmp.ne.s32.totalorder %s484, %s485
      %p499 = scmp.eq.s32.totalorder %s57, 1
      %p500 = por %p498, %p499
      %p502 = scmp.ne.s32.totalorder %s485, %s501
      %p503 = scmp.eq.s32.totalorder %s57, 0
      %p504 = por %p502, %p503
      %p505 = scmp.le.s32.totalorder 1, %s51
      %p506 = scmp.lt.s32.totalorder %s51, 3
      %p507 = pnand %p505, %p506
      %p508 = pneg %p507
      // Predicated region
      $region9: #{tpu_custom_call.1} parent=5 // pred_check
        _
      $region10: #{tpu_custom_call.1} parent=5 // pred_check_branch
        %510 = sbr.rel (%p507) target = $region12
      $region11: #{tpu_custom_call.1} parent=5 // pred_region
        %s511 = ssub.s32 %s51, 1
        // Predicated region
        $region13: #{tpu_custom_call.1} parent=11 // pred_check
          %p512 = pneg %p89
        $region14: #{tpu_custom_call.1} parent=11 // pred_check_branch
          %514 = sbr.rel (%p512) target = $region16
        $region15: #{tpu_custom_call.1} parent=11 // pred_region
          %s515 = smul.u32 2, %s60
          %s517 = ssub.s32 1024, 1024
          %518 = vsyncadd [#allocation8], %s517
          %s519 = smul.addr %s515, 4
          %s520 = smul.addr %s519, 128
          %s521 = scalar_lea.hbm %s1, %s520
          %s522 = sshll.u32 [#allocation7], 4
          %s523 = int_to_ptr.vmem [resolvable:$true] %s522
          %528 = dma.hbm_to_vmem [thread:$0]  %s521, 1024, %s523, [#allocation8], 128, 128, 8
        $region16: #{tpu_custom_call.1} parent=11 // pred_fallthru
          _
        // Predicated region
        $region17: #{tpu_custom_call.1} parent=11 // pred_check
          %p529 = pneg %p450
        $region18: #{tpu_custom_call.1} parent=11 // pred_check_branch
          %531 = sbr.rel (%p529) target = $region20
        $region19: #{tpu_custom_call.1} parent=11 // pred_region
          %s533 = ssub.s32 16, 16
          %534 = vsyncadd [#allocation29], %s533
          %s536 = sshll.u32 [#allocation30], 4
          %s537 = int_to_ptr.vmem [resolvable:$true] %s536
          %539 = dma.hbm_to_vmem [thread:$0]  %s15, 16, %s537, [#allocation29]
        $region20: #{tpu_custom_call.1} parent=11 // pred_fallthru
          _
        // Predicated region
        $region21: #{tpu_custom_call.1} parent=11 // pred_check
          %p540 = pneg %p471
        $region22: #{tpu_custom_call.1} parent=11 // pred_check_branch
          %542 = sbr.rel (%p540) target = $region24
        $region23: #{tpu_custom_call.1} parent=11 // pred_region
          %s544 = ssub.s32 16, 16
          %545 = vsyncadd [#allocation32], %s544
          %s547 = sshll.u32 [#allocation31], 4
          %s548 = int_to_ptr.vmem [resolvable:$true] %s547
          %550 = dma.hbm_to_vmem [thread:$0]  %s16, 16, %s548, [#allocation32]
        $region24: #{tpu_custom_call.1} parent=11 // pred_fallthru
          _
      $region12: #{tpu_custom_call.1} parent=5 // pred_fallthru
        _
      %p551 = scmp.lt.s32.totalorder %s51, 2
      // Predicated region
      $region25: #{tpu_custom_call.1} parent=5 // pred_check
        %p552 = pneg %p551
      $region26: #{tpu_custom_call.1} parent=5 // pred_check_branch
        %554 = sbr.rel (%p552) target = $region28
      $region27: #{tpu_custom_call.1} parent=5 // pred_region
        // Predicated region
        $region29: #{tpu_custom_call.1} parent=27 // pred_check
          %p555 = pneg %p111
        $region30: #{tpu_custom_call.1} parent=27 // pred_check_branch
          %557 = sbr.rel (%p555) target = $region32
        $region31: #{tpu_custom_call.1} parent=27 // pred_region
          %s558 = sand.u32 %s51, 1
          %s559 = scalar_lea.sflag [#allocation11], %s558
          %s560 = sand.u32 %s101, 1
          %s561 = smul.addr %s560, 16
          %s562 = scalar_lea.vmem [#allocation10], %s561
          %s563 = sld [smem:[#allocation6 + %s59]]
          %s565 = ssub.s32 256, 256
          %566 = vsyncadd %s559, %s565
          %s567 = smul.addr %s563, 4
          %s568 = smul.addr %s567, 64
          %s569 = scalar_lea.hbm %s2, %s568
          %s570 = sshll.u32 %s562, 4
          %s571 = int_to_ptr.vmem [resolvable:$true] %s570
          %576 = dma.hbm_to_vmem [thread:$0]  %s569, 256, %s571, %s559, 64, 64, 4
        $region32: #{tpu_custom_call.1} parent=27 // pred_fallthru
          _
        // Predicated region
        $region33: #{tpu_custom_call.1} parent=27 // pred_check
          %p577 = pneg %p137
        $region34: #{tpu_custom_call.1} parent=27 // pred_check_branch
          %579 = sbr.rel (%p577) target = $region36
        $region35: #{tpu_custom_call.1} parent=27 // pred_region
          %s580 = sand.u32 %s51, 1
          %s581 = scalar_lea.sflag [#allocation11], %s580
          %s582 = sand.u32 %s127, 1
          %s583 = scalar_lea.vmem [#allocation12], %s582
          %s585 = ssub.s32 16, 16
          %586 = vsyncadd %s581, %s585
          %s587 = smul.addr %s59, 16
          %s588 = scalar_lea.hbm %s3, %s587
          %s590 = sshll.u32 %s583, 4
          %s591 = int_to_ptr.vmem [resolvable:$true] %s590
          %593 = dma.hbm_to_vmem [thread:$0]  %s588, 16, %s591, %s581
        $region36: #{tpu_custom_call.1} parent=27 // pred_fallthru
          _
        // Predicated region
        $region37: #{tpu_custom_call.1} parent=27 // pred_check
          %p594 = pneg %p163
        $region38: #{tpu_custom_call.1} parent=27 // pred_check_branch
          %596 = sbr.rel (%p594) target = $region40
        $region39: #{tpu_custom_call.1} parent=27 // pred_region
          %s597 = sand.u32 %s51, 1
          %s598 = scalar_lea.sflag [#allocation14], %s597
          %s599 = sand.u32 %s153, 1
          %s600 = scalar_lea.vmem [#allocation13], %s599
          %s602 = ssub.s32 16, 16
          %603 = vsyncadd %s598, %s602
          %s604 = smul.addr %s59, 16
          %s605 = scalar_lea.hbm %s4, %s604
          %s607 = sshll.u32 %s600, 4
          %s608 = int_to_ptr.vmem [resolvable:$true] %s607
          %610 = dma.hbm_to_vmem [thread:$0]  %s605, 16, %s608, %s598
        $region40: #{tpu_custom_call.1} parent=27 // pred_fallthru
          _
        // Predicated region
        $region41: #{tpu_custom_call.1} parent=27 // pred_check
          %p611 = pneg %p189
        $region42: #{tpu_custom_call.1} parent=27 // pred_check_branch
          %613 = sbr.rel (%p611) target = $region44
        $region43: #{tpu_custom_call.1} parent=27 // pred_region
          %s614 = sand.u32 %s51, 1
          %s615 = scalar_lea.sflag [#allocation14], %s614
          %s616 = sand.u32 %s179, 1
          %s617 = smul.addr %s616, 192
          %s618 = scalar_lea.vmem [#allocation15], %s617
          %s620 = ssub.s32 3072, 3072
          %621 = vsyncadd %s615, %s620
          %s622 = smul.addr %s59, 48
          %s623 = smul.addr %s622, 64
          %s624 = scalar_lea.hbm %s5, %s623
          %s625 = sshll.u32 %s618, 4
          %s626 = int_to_ptr.vmem [resolvable:$true] %s625
          %631 = dma.hbm_to_vmem [thread:$0]  %s624, 3072, %s626, %s615, 192, 192, 12
        $region44: #{tpu_custom_call.1} parent=27 // pred_fallthru
          _
        // Predicated region
        $region45: #{tpu_custom_call.1} parent=27 // pred_check
          %p632 = pneg %p215
        $region46: #{tpu_custom_call.1} parent=27 // pred_check_branch
          %634 = sbr.rel (%p632) target = $region48
        $region47: #{tpu_custom_call.1} parent=27 // pred_region
          %s635 = sand.u32 %s51, 1
          %s636 = scalar_lea.sflag [#allocation17], %s635
          %s637 = sand.u32 %s205, 1
          %s638 = smul.addr %s637, 3
          %s639 = scalar_lea.vmem [#allocation16], %s638
          %s641 = ssub.s32 48, 48
          %642 = vsyncadd %s636, %s641
          %s643 = smul.addr %s59, 3
          %s644 = smul.addr %s643, 16
          %s645 = scalar_lea.hbm %s6, %s644
          %s647 = sshll.u32 %s639, 4
          %s648 = int_to_ptr.vmem [resolvable:$true] %s647
          %650 = dma.hbm_to_vmem [thread:$0]  %s645, 48, %s648, %s636
        $region48: #{tpu_custom_call.1} parent=27 // pred_fallthru
          _
        // Predicated region
        $region49: #{tpu_custom_call.1} parent=27 // pred_check
          %p651 = pneg %p241
        $region50: #{tpu_custom_call.1} parent=27 // pred_check_branch
          %653 = sbr.rel (%p651) target = $region52
        $region51: #{tpu_custom_call.1} parent=27 // pred_region
          %s654 = sand.u32 %s51, 1
          %s655 = scalar_lea.sflag [#allocation17], %s654
          %s656 = sand.u32 %s231, 1
          %s657 = smul.addr %s656, 64
          %s658 = scalar_lea.vmem [#allocation18], %s657
          %s660 = ssub.s32 1024, 1024
          %661 = vsyncadd %s655, %s660
          %s662 = smul.addr %s59, 16
          %s663 = smul.addr %s662, 64
          %s664 = scalar_lea.hbm %s7, %s663
          %s665 = sshll.u32 %s658, 4
          %s666 = int_to_ptr.vmem [resolvable:$true] %s665
          %671 = dma.hbm_to_vmem [thread:$0]  %s664, 1024, %s666, %s655, 64, 64, 4
        $region52: #{tpu_custom_call.1} parent=27 // pred_fallthru
          _
        // Predicated region
        $region53: #{tpu_custom_call.1} parent=27 // pred_check
          %p672 = pneg %p267
        $region54: #{tpu_custom_call.1} parent=27 // pred_check_branch
          %674 = sbr.rel (%p672) target = $region56
        $region55: #{tpu_custom_call.1} parent=27 // pred_region
          %s675 = sand.u32 %s51, 1
          %s676 = scalar_lea.sflag [#allocation20], %s675
          %s677 = sand.u32 %s257, 1
          %s678 = scalar_lea.vmem [#allocation19], %s677
          %s680 = ssub.s32 16, 16
          %681 = vsyncadd %s676, %s680
          %s682 = smul.addr %s59, 16
          %s683 = scalar_lea.hbm %s8, %s682
          %s685 = sshll.u32 %s678, 4
          %s686 = int_to_ptr.vmem [resolvable:$true] %s685
          %688 = dma.hbm_to_vmem [thread:$0]  %s683, 16, %s686, %s676
        $region56: #{tpu_custom_call.1} parent=27 // pred_fallthru
          _
        // Predicated region
        $region57: #{tpu_custom_call.1} parent=27 // pred_check
          %p689 = pneg %p293
        $region58: #{tpu_custom_call.1} parent=27 // pred_check_branch
          %691 = sbr.rel (%p689) target = $region60
        $region59: #{tpu_custom_call.1} parent=27 // pred_region
          %s692 = sand.u32 %s51, 1
          %s693 = scalar_lea.sflag [#allocation20], %s692
          %s694 = sand.u32 %s283, 1
          %s695 = scalar_lea.vmem [#allocation21], %s694
          %s697 = ssub.s32 16, 16
          %698 = vsyncadd %s693, %s697
          %s699 = smul.addr %s59, 16
          %s700 = scalar_lea.hbm %s9, %s699
          %s702 = sshll.u32 %s695, 4
          %s703 = int_to_ptr.vmem [resolvable:$true] %s702
          %705 = dma.hbm_to_vmem [thread:$0]  %s700, 16, %s703, %s693
        $region60: #{tpu_custom_call.1} parent=27 // pred_fallthru
          _
        // Predicated region
        $region61: #{tpu_custom_call.1} parent=27 // pred_check
          %p706 = pneg %p319
        $region62: #{tpu_custom_call.1} parent=27 // pred_check_branch
          %708 = sbr.rel (%p706) target = $region64
        $region63: #{tpu_custom_call.1} parent=27 // pred_region
          %s709 = sand.u32 %s51, 1
          %s710 = scalar_lea.sflag [#allocation23], %s709
          %s711 = sand.u32 %s309, 1
          %s712 = scalar_lea.vmem [#allocation22], %s711
          %s714 = ssub.s32 16, 16
          %715 = vsyncadd %s710, %s714
          %s716 = smul.addr %s59, 16
          %s717 = scalar_lea.hbm %s10, %s716
          %s719 = sshll.u32 %s712, 4
          %s720 = int_to_ptr.vmem [resolvable:$true] %s719
          %722 = dma.hbm_to_vmem [thread:$0]  %s717, 16, %s720, %s710
        $region64: #{tpu_custom_call.1} parent=27 // pred_fallthru
          _
        // Predicated region
        $region65: #{tpu_custom_call.1} parent=27 // pred_check
          %p723 = pneg %p345
        $region66: #{tpu_custom_call.1} parent=27 // pred_check_branch
          %725 = sbr.rel (%p723) target = $region68
        $region67: #{tpu_custom_call.1} parent=27 // pred_region
          %s726 = sand.u32 %s51, 1
          %s727 = scalar_lea.sflag [#allocation23], %s726
          %s728 = sand.u32 %s335, 1
          %s729 = smul.addr %s728, 256
          %s730 = scalar_lea.vmem [#allocation24], %s729
          %s732 = ssub.s32 4096, 4096
          %733 = vsyncadd %s727, %s732
          %s734 = smul.addr %s59, 64
          %s735 = smul.addr %s734, 64
          %s736 = scalar_lea.hbm %s11, %s735
          %s737 = sshll.u32 %s730, 4
          %s738 = int_to_ptr.vmem [resolvable:$true] %s737
          %743 = dma.hbm_to_vmem [thread:$0]  %s736, 4096, %s738, %s727, 256, 256, 16
        $region68: #{tpu_custom_call.1} parent=27 // pred_fallthru
          _
        // Predicated region
        $region69: #{tpu_custom_call.1} parent=27 // pred_check
          %p744 = pneg %p371
        $region70: #{tpu_custom_call.1} parent=27 // pred_check_branch
          %746 = sbr.rel (%p744) target = $region72
        $region71: #{tpu_custom_call.1} parent=27 // pred_region
          %s747 = sand.u32 %s51, 1
          %s748 = scalar_lea.sflag [#allocation26], %s747
          %s749 = sand.u32 %s361, 1
          %s750 = smul.addr %s749, 4
          %s751 = scalar_lea.vmem [#allocation25], %s750
          %s753 = ssub.s32 64, 64
          %754 = vsyncadd %s748, %s753
          %s755 = smul.addr %s59, 4
          %s756 = smul.addr %s755, 16
          %s757 = scalar_lea.hbm %s12, %s756
          %s759 = sshll.u32 %s751, 4
          %s760 = int_to_ptr.vmem [resolvable:$true] %s759
          %762 = dma.hbm_to_vmem [thread:$0]  %s757, 64, %s760, %s748
        $region72: #{tpu_custom_call.1} parent=27 // pred_fallthru
          _
        // Predicated region
        $region73: #{tpu_custom_call.1} parent=27 // pred_check
          %p763 = pneg %p397
        $region74: #{tpu_custom_call.1} parent=27 // pred_check_branch
          %765 = sbr.rel (%p763) target = $region76
        $region75: #{tpu_custom_call.1} parent=27 // pred_region
          %s766 = sand.u32 %s51, 1
          %s767 = scalar_lea.sflag [#allocation26], %s766
          %s768 = sand.u32 %s387, 1
          %s769 = smul.addr %s768, 256
          %s770 = scalar_lea.vmem [#allocation27], %s769
          %s772 = ssub.s32 4096, 4096
          %773 = vsyncadd %s767, %s772
          %s774 = smul.addr %s59, 64
          %s775 = smul.addr %s774, 64
          %s776 = scalar_lea.hbm %s13, %s775
          %s777 = sshll.u32 %s770, 4
          %s778 = int_to_ptr.vmem [resolvable:$true] %s777
          %783 = dma.hbm_to_vmem [thread:$0]  %s776, 4096, %s778, %s767, 64, 64, 4
        $region76: #{tpu_custom_call.1} parent=27 // pred_fallthru
          _
        // Predicated region
        $region77: #{tpu_custom_call.1} parent=27 // pred_check
          %p784 = pneg %p423
        $region78: #{tpu_custom_call.1} parent=27 // pred_check_branch
          %786 = sbr.rel (%p784) target = $region80
        $region79: #{tpu_custom_call.1} parent=27 // pred_region
          %s787 = sand.u32 %s51, 1
          %s788 = scalar_lea.sflag [#allocation29], %s787
          %s789 = sand.u32 %s413, 1
          %s790 = scalar_lea.vmem [#allocation28], %s789
          %s792 = ssub.s32 16, 16
          %793 = vsyncadd %s788, %s792
          %s794 = smul.addr %s59, 16
          %s795 = scalar_lea.hbm %s14, %s794
          %s797 = sshll.u32 %s790, 4
          %s798 = int_to_ptr.vmem [resolvable:$true] %s797
          %800 = dma.hbm_to_vmem [thread:$0]  %s795, 16, %s798, %s788
        $region80: #{tpu_custom_call.1} parent=27 // pred_fallthru
          _
      $region28: #{tpu_custom_call.1} parent=5 // pred_fallthru
        _
      %p801 = scmp.le.s32.totalorder 1, %s51
      %p802 = scmp.lt.s32.totalorder %s51, 3
      %p803 = pnand %p801, %p802
      %p804 = pneg %p803
      // Predicated region
      $region81: #{tpu_custom_call.1} parent=5 // pred_check
        _
      $region82: #{tpu_custom_call.1} parent=5 // pred_check_branch
        %806 = sbr.rel (%p803) target = $region84
      $region83: #{tpu_custom_call.1} parent=5 // pred_region
        %s807 = ssub.s32 %s51, 1
        // Predicated region
        $region85: #{tpu_custom_call.1} parent=83 // pred_check
          %p808 = pneg %p89
        $region86: #{tpu_custom_call.1} parent=83 // pred_check_branch
          %810 = sbr.rel (%p808) target = $region88
        $region87: #{tpu_custom_call.1} parent=83 // pred_region
          %811 = dma.done [#allocation8], 1024
        $region88: #{tpu_custom_call.1} parent=83 // pred_fallthru
          _
        %s812 = sand.u32 %s56, 1
        %s813 = scalar_lea.sflag [#allocation11], %s812
        %s814 = sand.u32 %s104, 1
        %s815 = smul.addr %s814, 16
        %s816 = scalar_lea.vmem [#allocation10], %s815
        // Predicated region
        $region89: #{tpu_custom_call.1} parent=83 // pred_check
          %p817 = pneg %p117
        $region90: #{tpu_custom_call.1} parent=83 // pred_check_branch
          %819 = sbr.rel (%p817) target = $region92
        $region91: #{tpu_custom_call.1} parent=83 // pred_region
          %820 = dma.done %s813, 256
        $region92: #{tpu_custom_call.1} parent=83 // pred_fallthru
          _
        %s821 = sand.u32 %s56, 1
        %s822 = scalar_lea.sflag [#allocation11], %s821
        %s823 = sand.u32 %s130, 1
        %s824 = scalar_lea.vmem [#allocation12], %s823
        // Predicated region
        $region93: #{tpu_custom_call.1} parent=83 // pred_check
          %p825 = pneg %p143
        $region94: #{tpu_custom_call.1} parent=83 // pred_check_branch
          %827 = sbr.rel (%p825) target = $region96
        $region95: #{tpu_custom_call.1} parent=83 // pred_region
          %828 = dma.done %s822, 16
        $region96: #{tpu_custom_call.1} parent=83 // pred_fallthru
          _
        %s829 = sand.u32 %s56, 1
        %s830 = scalar_lea.sflag [#allocation14], %s829
        %s831 = sand.u32 %s156, 1
        %s832 = scalar_lea.vmem [#allocation13], %s831
        // Predicated region
        $region97: #{tpu_custom_call.1} parent=83 // pred_check
          %p833 = pneg %p169
        $region98: #{tpu_custom_call.1} parent=83 // pred_check_branch
          %835 = sbr.rel (%p833) target = $region100
        $region99: #{tpu_custom_call.1} parent=83 // pred_region
          %836 = dma.done %s830, 16
        $region100: #{tpu_custom_call.1} parent=83 // pred_fallthru
          _
        %s837 = sand.u32 %s56, 1
        %s838 = scalar_lea.sflag [#allocation14], %s837
        %s839 = sand.u32 %s182, 1
        %s840 = smul.addr %s839, 192
        %s841 = scalar_lea.vmem [#allocation15], %s840
        // Predicated region
        $region101: #{tpu_custom_call.1} parent=83 // pred_check
          %p842 = pneg %p195
        $region102: #{tpu_custom_call.1} parent=83 // pred_check_branch
          %844 = sbr.rel (%p842) target = $region104
        $region103: #{tpu_custom_call.1} parent=83 // pred_region
          %845 = dma.done %s838, 3072
        $region104: #{tpu_custom_call.1} parent=83 // pred_fallthru
          _
        %s846 = sand.u32 %s56, 1
        %s847 = scalar_lea.sflag [#allocation17], %s846
        %s848 = sand.u32 %s208, 1
        %s849 = smul.addr %s848, 3
        %s850 = scalar_lea.vmem [#allocation16], %s849
        // Predicated region
        $region105: #{tpu_custom_call.1} parent=83 // pred_check
          %p851 = pneg %p221
        $region106: #{tpu_custom_call.1} parent=83 // pred_check_branch
          %853 = sbr.rel (%p851) target = $region108
        $region107: #{tpu_custom_call.1} parent=83 // pred_region
          %854 = dma.done %s847, 48
        $region108: #{tpu_custom_call.1} parent=83 // pred_fallthru
          _
        %s855 = sand.u32 %s56, 1
        %s856 = scalar_lea.sflag [#allocation17], %s855
        %s857 = sand.u32 %s234, 1
        %s858 = smul.addr %s857, 64
        %s859 = scalar_lea.vmem [#allocation18], %s858
        // Predicated region
        $region109: #{tpu_custom_call.1} parent=83 // pred_check
          %p860 = pneg %p247
        $region110: #{tpu_custom_call.1} parent=83 // pred_check_branch
          %862 = sbr.rel (%p860) target = $region112
        $region111: #{tpu_custom_call.1} parent=83 // pred_region
          %863 = dma.done %s856, 1024
        $region112: #{tpu_custom_call.1} parent=83 // pred_fallthru
          _
        %s864 = sand.u32 %s56, 1
        %s865 = scalar_lea.sflag [#allocation20], %s864
        %s866 = sand.u32 %s260, 1
        %s867 = scalar_lea.vmem [#allocation19], %s866
        // Predicated region
        $region113: #{tpu_custom_call.1} parent=83 // pred_check
          %p868 = pneg %p273
        $region114: #{tpu_custom_call.1} parent=83 // pred_check_branch
          %870 = sbr.rel (%p868) target = $region116
        $region115: #{tpu_custom_call.1} parent=83 // pred_region
          %871 = dma.done %s865, 16
        $region116: #{tpu_custom_call.1} parent=83 // pred_fallthru
          _
        %s872 = sand.u32 %s56, 1
        %s873 = scalar_lea.sflag [#allocation20], %s872
        %s874 = sand.u32 %s286, 1
        %s875 = scalar_lea.vmem [#allocation21], %s874
        // Predicated region
        $region117: #{tpu_custom_call.1} parent=83 // pred_check
          %p876 = pneg %p299
        $region118: #{tpu_custom_call.1} parent=83 // pred_check_branch
          %878 = sbr.rel (%p876) target = $region120
        $region119: #{tpu_custom_call.1} parent=83 // pred_region
          %879 = dma.done %s873, 16
        $region120: #{tpu_custom_call.1} parent=83 // pred_fallthru
          _
        %s880 = sand.u32 %s56, 1
        %s881 = scalar_lea.sflag [#allocation23], %s880
        %s882 = sand.u32 %s312, 1
        %s883 = scalar_lea.vmem [#allocation22], %s882
        // Predicated region
        $region121: #{tpu_custom_call.1} parent=83 // pred_check
          %p884 = pneg %p325
        $region122: #{tpu_custom_call.1} parent=83 // pred_check_branch
          %886 = sbr.rel (%p884) target = $region124
        $region123: #{tpu_custom_call.1} parent=83 // pred_region
          %887 = dma.done %s881, 16
        $region124: #{tpu_custom_call.1} parent=83 // pred_fallthru
          _
        %s888 = sand.u32 %s56, 1
        %s889 = scalar_lea.sflag [#allocation23], %s888
        %s890 = sand.u32 %s338, 1
        %s891 = smul.addr %s890, 256
        %s892 = scalar_lea.vmem [#allocation24], %s891
        // Predicated region
        $region125: #{tpu_custom_call.1} parent=83 // pred_check
          %p893 = pneg %p351
        $region126: #{tpu_custom_call.1} parent=83 // pred_check_branch
          %895 = sbr.rel (%p893) target = $region128
        $region127: #{tpu_custom_call.1} parent=83 // pred_region
          %896 = dma.done %s889, 4096
        $region128: #{tpu_custom_call.1} parent=83 // pred_fallthru
          _
        %s897 = sand.u32 %s56, 1
        %s898 = scalar_lea.sflag [#allocation26], %s897
        %s899 = sand.u32 %s364, 1
        %s900 = smul.addr %s899, 4
        %s901 = scalar_lea.vmem [#allocation25], %s900
        // Predicated region
        $region129: #{tpu_custom_call.1} parent=83 // pred_check
          %p902 = pneg %p377
        $region130: #{tpu_custom_call.1} parent=83 // pred_check_branch
          %904 = sbr.rel (%p902) target = $region132
        $region131: #{tpu_custom_call.1} parent=83 // pred_region
          %905 = dma.done %s898, 64
        $region132: #{tpu_custom_call.1} parent=83 // pred_fallthru
          _
        %s906 = sand.u32 %s56, 1
        %s907 = scalar_lea.sflag [#allocation26], %s906
        %s908 = sand.u32 %s390, 1
        %s909 = smul.addr %s908, 256
        %s910 = scalar_lea.vmem [#allocation27], %s909
        // Predicated region
        $region133: #{tpu_custom_call.1} parent=83 // pred_check
          %p911 = pneg %p403
        $region134: #{tpu_custom_call.1} parent=83 // pred_check_branch
          %913 = sbr.rel (%p911) target = $region136
        $region135: #{tpu_custom_call.1} parent=83 // pred_region
          %914 = dma.done %s907, 4096
        $region136: #{tpu_custom_call.1} parent=83 // pred_fallthru
          _
        %s915 = sand.u32 %s56, 1
        %s916 = scalar_lea.sflag [#allocation29], %s915
        %s917 = sand.u32 %s416, 1
        %s918 = scalar_lea.vmem [#allocation28], %s917
        // Predicated region
        $region137: #{tpu_custom_call.1} parent=83 // pred_check
          %p919 = pneg %p429
        $region138: #{tpu_custom_call.1} parent=83 // pred_check_branch
          %921 = sbr.rel (%p919) target = $region140
        $region139: #{tpu_custom_call.1} parent=83 // pred_region
          %922 = dma.done %s916, 16
        $region140: #{tpu_custom_call.1} parent=83 // pred_fallthru
          _
        // Predicated region
        $region141: #{tpu_custom_call.1} parent=83 // pred_check
          %p923 = pneg %p450
        $region142: #{tpu_custom_call.1} parent=83 // pred_check_branch
          %925 = sbr.rel (%p923) target = $region144
        $region143: #{tpu_custom_call.1} parent=83 // pred_region
          %926 = dma.done [#allocation29], 16
        $region144: #{tpu_custom_call.1} parent=83 // pred_fallthru
          _
        // Predicated region
        $region145: #{tpu_custom_call.1} parent=83 // pred_check
          %p927 = pneg %p471
        $region146: #{tpu_custom_call.1} parent=83 // pred_check_branch
          %929 = sbr.rel (%p927) target = $region148
        $region147: #{tpu_custom_call.1} parent=83 // pred_region
          %930 = dma.done [#allocation32], 16
        $region148: #{tpu_custom_call.1} parent=83 // pred_fallthru
          _
        %p931 = pneg %p89
        %p932 = pneg %p86
        %s933 = sand.u32 %s56, 1
        %s934 = scalar_lea.sflag [#allocation11], %s933
        %s935 = sand.u32 %s104, 1
        %s936 = smul.addr %s935, 16
        %s937 = scalar_lea.vmem [#allocation10], %s936
        %p938 = pneg %p117
        %p939 = pneg %p114
        %s940 = sand.u32 %s56, 1
        %s941 = scalar_lea.sflag [#allocation11], %s940
        %s942 = sand.u32 %s130, 1
        %s943 = scalar_lea.vmem [#allocation12], %s942
        %p944 = pneg %p143
        %p945 = pneg %p140
        %s946 = sand.u32 %s56, 1
        %s947 = scalar_lea.sflag [#allocation14], %s946
        %s948 = sand.u32 %s156, 1
        %s949 = scalar_lea.vmem [#allocation13], %s948
        %p950 = pneg %p169
        %p951 = pneg %p166
        %s952 = sand.u32 %s56, 1
        %s953 = scalar_lea.sflag [#allocation14], %s952
        %s954 = sand.u32 %s182, 1
        %s955 = smul.addr %s954, 192
        %s956 = scalar_lea.vmem [#allocation15], %s955
        %p957 = pneg %p195
        %p958 = pneg %p192
        %s959 = sand.u32 %s56, 1
        %s960 = scalar_lea.sflag [#allocation17], %s959
        %s961 = sand.u32 %s208, 1
        %s962 = smul.addr %s961, 3
        %s963 = scalar_lea.vmem [#allocation16], %s962
        %p964 = pneg %p221
        %p965 = pneg %p218
        %s966 = sand.u32 %s56, 1
        %s967 = scalar_lea.sflag [#allocation17], %s966
        %s968 = sand.u32 %s234, 1
        %s969 = smul.addr %s968, 64
        %s970 = scalar_lea.vmem [#allocation18], %s969
        %p971 = pneg %p247
        %p972 = pneg %p244
        %s973 = sand.u32 %s56, 1
        %s974 = scalar_lea.sflag [#allocation20], %s973
        %s975 = sand.u32 %s260, 1
        %s976 = scalar_lea.vmem [#allocation19], %s975
        %p977 = pneg %p273
        %p978 = pneg %p270
        %s979 = sand.u32 %s56, 1
        %s980 = scalar_lea.sflag [#allocation20], %s979
        %s981 = sand.u32 %s286, 1
        %s982 = scalar_lea.vmem [#allocation21], %s981
        %p983 = pneg %p299
        %p984 = pneg %p296
        %s985 = sand.u32 %s56, 1
        %s986 = scalar_lea.sflag [#allocation23], %s985
        %s987 = sand.u32 %s312, 1
        %s988 = scalar_lea.vmem [#allocation22], %s987
        %p989 = pneg %p325
        %p990 = pneg %p322
        %s991 = sand.u32 %s56, 1
        %s992 = scalar_lea.sflag [#allocation23], %s991
        %s993 = sand.u32 %s338, 1
        %s994 = smul.addr %s993, 256
        %s995 = scalar_lea.vmem [#allocation24], %s994
        %p996 = pneg %p351
        %p997 = pneg %p348
        %s998 = sand.u32 %s56, 1
        %s999 = scalar_lea.sflag [#allocation26], %s998
        %s1000 = sand.u32 %s364, 1
        %s1001 = smul.addr %s1000, 4
        %s1002 = scalar_lea.vmem [#allocation25], %s1001
        %p1003 = pneg %p377
        %p1004 = pneg %p374
        %s1005 = sand.u32 %s56, 1
        %s1006 = scalar_lea.sflag [#allocation26], %s1005
        %s1007 = sand.u32 %s390, 1
        %s1008 = smul.addr %s1007, 256
        %s1009 = scalar_lea.vmem [#allocation27], %s1008
        %p1010 = pneg %p403
        %p1011 = pneg %p400
        %s1012 = sand.u32 %s56, 1
        %s1013 = scalar_lea.sflag [#allocation29], %s1012
        %s1014 = sand.u32 %s416, 1
        %s1015 = scalar_lea.vmem [#allocation28], %s1014
        %p1016 = pneg %p429
        %p1017 = pneg %p426
        %p1018 = pneg %p450
        %p1019 = pneg %p447
        %p1020 = pneg %p471
        %p1021 = pneg %p468
        %p1022 = pneg %p497
        %p1023 = pneg %p494
        %s1024 = smul.u32 2, %s60
        %s1025 = sld [smem:[#allocation6 + %s61]]
        %s1026 = smul.u32 2, %s60
        %p1028 = scmp.eq.s32.totalorder %s61, 0
        // Predicated region
        $region149: #{tpu_custom_call.1} parent=83 // pred_check
          %p1029 = pneg %p1028
        $region150: #{tpu_custom_call.1} parent=83 // pred_check_branch
          %1031 = sbr.rel (%p1029) target = $region152
        $region151: #{tpu_custom_call.1} parent=83 // pred_region
          %v1032 = vld [vmem:[#allocation7] sm:$0xff]
          %v1033 = vld [vmem:[#allocation7 + $0x8] sm:$0xff]
          %v1034 = vld [vmem:[#allocation7 + $0x10] sm:$0xff]
          %v1035 = vld [vmem:[#allocation7 + $0x18] sm:$0xff]
          %v1036 = vld [vmem:[#allocation7 + $0x20] sm:$0xff]
          %v1037 = vld [vmem:[#allocation7 + $0x28] sm:$0xff]
          %v1038 = vld [vmem:[#allocation7 + $0x30] sm:$0xff]
          %v1039 = vld [vmem:[#allocation7 + $0x38] sm:$0xff]
          %1040 = vst [vmem:[#allocation2] sm:$0xff] %v1032
          %1041 = vst [vmem:[#allocation2 + $0x8] sm:$0xff] %v1033
          %1042 = vst [vmem:[#allocation2 + $0x10] sm:$0xff] %v1034
          %1043 = vst [vmem:[#allocation2 + $0x18] sm:$0xff] %v1035
          %1044 = vst [vmem:[#allocation2 + $0x20] sm:$0xff] %v1036
          %1045 = vst [vmem:[#allocation2 + $0x28] sm:$0xff] %v1037
          %1046 = vst [vmem:[#allocation2 + $0x30] sm:$0xff] %v1038
          %1047 = vst [vmem:[#allocation2 + $0x38] sm:$0xff] %v1039
        $region152: #{tpu_custom_call.1} parent=83 // pred_fallthru
          _
        %v1048 = vld [vmem:[#allocation2] sm:$0xff]
        %v1049 = vld [vmem:[#allocation2 + $0x8] sm:$0xff]
        %v1050 = vld [vmem:[#allocation2 + $0x10] sm:$0xff]
        %v1051 = vld [vmem:[#allocation2 + $0x18] sm:$0xff]
        %v1052 = vld [vmem:[#allocation2 + $0x20] sm:$0xff]
        %v1053 = vld [vmem:[#allocation2 + $0x28] sm:$0xff]
        %v1054 = vld [vmem:[#allocation2 + $0x30] sm:$0xff]
        %v1055 = vld [vmem:[#allocation2 + $0x38] sm:$0xff]
        %v1056 = vld [vmem:[%s824] sm:$0x1]
        %v1057 = vld [vmem:[%s832] sm:$0x1]
        %1058 = vadd.xlane.f32.xlu0 %v1048
        %v1059 = vpop.xlane.xlu0 %1058
        %1060 = vadd.xlane.f32.xlu0 %v1049
        %v1061 = vpop.xlane.xlu0 %1060
        %1062 = vadd.xlane.f32.xlu0 %v1050
        %v1063 = vpop.xlane.xlu0 %1062
        %1064 = vadd.xlane.f32.xlu0 %v1051
        %v1065 = vpop.xlane.xlu0 %1064
        %1066 = vadd.xlane.f32.xlu0 %v1052
        %v1067 = vpop.xlane.xlu0 %1066
        %1068 = vadd.xlane.f32.xlu0 %v1053
        %v1069 = vpop.xlane.xlu0 %1068
        %1070 = vadd.xlane.f32.xlu0 %v1054
        %v1071 = vpop.xlane.xlu0 %1070
        %1072 = vadd.xlane.f32.xlu0 %v1055
        %v1073 = vpop.xlane.xlu0 %1072
        %v1074 = vrcp.pop 128.0
        %v1075 = vmul.f32 %v1059, %v1074
        %v1076 = vmul.f32 %v1061, %v1074
        %v1077 = vmul.f32 %v1063, %v1074
        %v1078 = vmul.f32 %v1065, %v1074
        %v1079 = vmul.f32 %v1067, %v1074
        %v1080 = vmul.f32 %v1069, %v1074
        %v1081 = vmul.f32 %v1071, %v1074
        %v1082 = vmul.f32 %v1073, %v1074
        %v1083 = vsub.f32 %v1048, %v1075
        %v1084 = vsub.f32 %v1049, %v1076
        %v1085 = vsub.f32 %v1050, %v1077
        %v1086 = vsub.f32 %v1051, %v1078
        %v1087 = vsub.f32 %v1052, %v1079
        %v1088 = vsub.f32 %v1053, %v1080
        %v1089 = vsub.f32 %v1054, %v1081
        %v1090 = vsub.f32 %v1055, %v1082
        %v1091 = vmul.f32 %v1083, %v1083
        %v1092 = vmul.f32 %v1084, %v1084
        %v1093 = vmul.f32 %v1085, %v1085
        %v1094 = vmul.f32 %v1086, %v1086
        %v1095 = vmul.f32 %v1087, %v1087
        %v1096 = vmul.f32 %v1088, %v1088
        %v1097 = vmul.f32 %v1089, %v1089
        %v1098 = vmul.f32 %v1090, %v1090
        %1099 = vadd.xlane.f32.xlu0 %v1091
        %v1100 = vpop.xlane.xlu0 %1099
        %1101 = vadd.xlane.f32.xlu0 %v1092
        %v1102 = vpop.xlane.xlu0 %1101
        %1103 = vadd.xlane.f32.xlu0 %v1093
        %v1104 = vpop.xlane.xlu0 %1103
        %1105 = vadd.xlane.f32.xlu0 %v1094
        %v1106 = vpop.xlane.xlu0 %1105
        %1107 = vadd.xlane.f32.xlu0 %v1095
        %v1108 = vpop.xlane.xlu0 %1107
        %1109 = vadd.xlane.f32.xlu0 %v1096
        %v1110 = vpop.xlane.xlu0 %1109
        %1111 = vadd.xlane.f32.xlu0 %v1097
        %v1112 = vpop.xlane.xlu0 %1111
        %1113 = vadd.xlane.f32.xlu0 %v1098
        %v1114 = vpop.xlane.xlu0 %1113
        %v1115 = vmul.f32 %v1100, %v1074
        %v1116 = vmul.f32 %v1102, %v1074
        %v1117 = vmul.f32 %v1104, %v1074
        %v1118 = vmul.f32 %v1106, %v1074
        %v1119 = vmul.f32 %v1108, %v1074
        %v1120 = vmul.f32 %v1110, %v1074
        %v1121 = vmul.f32 %v1112, %v1074
        %v1122 = vmul.f32 %v1114, %v1074
        %v1123 = vadd.f32 %v1115, 1e-05
        %v1124 = vadd.f32 %v1116, 1e-05
        %v1125 = vadd.f32 %v1117, 1e-05
        %v1126 = vadd.f32 %v1118, 1e-05
        %v1127 = vadd.f32 %v1119, 1e-05
        %v1128 = vadd.f32 %v1120, 1e-05
        %v1129 = vadd.f32 %v1121, 1e-05
        %v1130 = vadd.f32 %v1122, 1e-05
        %v1131 = vrsqrt.pop %v1123
        %v1132 = vrsqrt.pop %v1124
        %v1133 = vrsqrt.pop %v1125
        %v1134 = vrsqrt.pop %v1126
        %v1135 = vrsqrt.pop %v1127
        %v1136 = vrsqrt.pop %v1128
        %v1137 = vrsqrt.pop %v1129
        %v1138 = vrsqrt.pop %v1130
        %v1139 = vmul.f32 %v1083, %v1131
        %v1140 = vmul.f32 %v1084, %v1132
        %v1141 = vmul.f32 %v1085, %v1133
        %v1142 = vmul.f32 %v1086, %v1134
        %v1143 = vmul.f32 %v1087, %v1135
        %v1144 = vmul.f32 %v1088, %v1136
        %v1145 = vmul.f32 %v1089, %v1137
        %v1146 = vmul.f32 %v1090, %v1138
        %v1148 = vlaneseq
        %v1149 = vshrl.u32 %v1148, 7
        %v1150 = vsub.s32 0, %v1149
        %v1151 = vrot.slane %v1056, %v1150
        %v1153 = vmul.f32 %v1139, %v1151
        %v1154 = vmul.f32 %v1140, %v1151
        %v1155 = vmul.f32 %v1141, %v1151
        %v1156 = vmul.f32 %v1142, %v1151
        %v1157 = vmul.f32 %v1143, %v1151
        %v1158 = vmul.f32 %v1144, %v1151
        %v1159 = vmul.f32 %v1145, %v1151
        %v1160 = vmul.f32 %v1146, %v1151
        %v1162 = vlaneseq
        %v1163 = vshrl.u32 %v1162, 7
        %v1164 = vsub.s32 0, %v1163
        %v1165 = vrot.slane %v1057, %v1164
        %v1167 = vadd.f32 %v1153, %v1165
        %v1168 = vadd.f32 %v1154, %v1165
        %v1169 = vadd.f32 %v1155, %v1165
        %v1170 = vadd.f32 %v1156, %v1165
        %v1171 = vadd.f32 %v1157, %v1165
        %v1172 = vadd.f32 %v1158, %v1165
        %v1173 = vadd.f32 %v1159, %v1165
        %v1174 = vadd.f32 %v1160, %v1165
        %v1175 = vpack.c.bf16 %v1168, %v1167
        %v1176 = vpack.c.bf16 %v1170, %v1169
        %v1177 = vpack.c.bf16 %v1172, %v1171
        %v1178 = vpack.c.bf16 %v1174, %v1173
        %v1179 = vld [vmem:[%s841] sm:$0xff]
        %v1180 = vld [vmem:[%s841 + $0x8] sm:$0xf]
        %v1181 = vld [vmem:[%s841 + $0xc] sm:$0xff]
        %v1182 = vld [vmem:[%s841 + $0x14] sm:$0xf]
        %v1183 = vld [vmem:[%s841 + $0x18] sm:$0xff]
        %v1184 = vld [vmem:[%s841 + $0x20] sm:$0xf]
        %v1185 = vld [vmem:[%s841 + $0x24] sm:$0xff]
        %v1186 = vld [vmem:[%s841 + $0x2c] sm:$0xf]
        %v1187 = vld [vmem:[%s841 + $0x30] sm:$0xff]
        %v1188 = vld [vmem:[%s841 + $0x38] sm:$0xf]
        %v1189 = vld [vmem:[%s841 + $0x3c] sm:$0xff]
        %v1190 = vld [vmem:[%s841 + $0x44] sm:$0xf]
        %v1191 = vld [vmem:[%s841 + $0x48] sm:$0xff]
        %v1192 = vld [vmem:[%s841 + $0x50] sm:$0xf]
        %v1193 = vld [vmem:[%s841 + $0x54] sm:$0xff]
        %v1194 = vld [vmem:[%s841 + $0x5c] sm:$0xf]
        %v1195 = vld [vmem:[%s841 + $0x60] sm:$0xff]
        %v1196 = vld [vmem:[%s841 + $0x68] sm:$0xf]
        %v1197 = vld [vmem:[%s841 + $0x6c] sm:$0xff]
        %v1198 = vld [vmem:[%s841 + $0x74] sm:$0xf]
        %v1199 = vld [vmem:[%s841 + $0x78] sm:$0xff]
        %v1200 = vld [vmem:[%s841 + $0x80] sm:$0xf]
        %v1201 = vld [vmem:[%s841 + $0x84] sm:$0xff]
        %v1202 = vld [vmem:[%s841 + $0x8c] sm:$0xf]
        %v1203 = vld [vmem:[%s841 + $0x90] sm:$0xff]
        %v1204 = vld [vmem:[%s841 + $0x98] sm:$0xf]
        %v1205 = vld [vmem:[%s841 + $0x9c] sm:$0xff]
        %v1206 = vld [vmem:[%s841 + $0xa4] sm:$0xf]
        %v1207 = vld [vmem:[%s841 + $0xa8] sm:$0xff]
        %v1208 = vld [vmem:[%s841 + $0xb0] sm:$0xf]
        %v1209 = vld [vmem:[%s841 + $0xb4] sm:$0xff]
        %v1210 = vld [vmem:[%s841 + $0xbc] sm:$0xf]
        %v1211 = vld [vmem:[%s850] sm:$0x7]
        %v1213 = vlaneseq
        %v1214 = vshrl.u32 %v1213, 7
        %v1215 = vsub.s32 0, %v1214
        %v1216 = vrot.slane %v1211, %v1215
        %v1217 = vlaneseq
        %v1218 = vshrl.u32 %v1217, 7
        %v1219 = vsub.s32 1, %v1218
        %v1220 = vrot.slane %v1211, %v1219
        %v1221 = vlaneseq
        %v1222 = vshrl.u32 %v1221, 7
        %v1223 = vsub.s32 2, %v1222
        %v1224 = vrot.slane %v1211, %v1223
        %v1260 = vunpack.c.l.b16 %v1179
        %v1261 = vunpack.c.h.b16 %v1179
        %v1262 = vunpack.c.l.b16 %v1180
        %v1263 = vunpack.c.l.b16 %v1181
        %v1264 = vunpack.c.h.b16 %v1181
        %v1265 = vunpack.c.l.b16 %v1182
        %v1266 = vunpack.c.l.b16 %v1183
        %v1267 = vunpack.c.h.b16 %v1183
        %v1268 = vunpack.c.l.b16 %v1184
        %v1269 = vunpack.c.l.b16 %v1185
        %v1270 = vunpack.c.h.b16 %v1185
        %v1271 = vunpack.c.l.b16 %v1186
        %v1272 = vunpack.c.l.b16 %v1187
        %v1273 = vunpack.c.h.b16 %v1187
        %v1274 = vunpack.c.l.b16 %v1188
        %v1275 = vunpack.c.l.b16 %v1189
        %v1276 = vunpack.c.h.b16 %v1189
        %v1277 = vunpack.c.l.b16 %v1190
        %v1278 = vunpack.c.l.b16 %v1191
        %v1279 = vunpack.c.h.b16 %v1191
        %v1280 = vunpack.c.l.b16 %v1192
        %v1281 = vunpack.c.l.b16 %v1193
        %v1282 = vunpack.c.h.b16 %v1193
        %v1283 = vunpack.c.l.b16 %v1194
        %v1284 = vunpack.c.l.b16 %v1195
        %v1285 = vunpack.c.h.b16 %v1195
        %v1286 = vunpack.c.l.b16 %v1196
        %v1287 = vunpack.c.l.b16 %v1197
        %v1288 = vunpack.c.h.b16 %v1197
        %v1289 = vunpack.c.l.b16 %v1198
        %v1290 = vunpack.c.l.b16 %v1199
        %v1291 = vunpack.c.h.b16 %v1199
        %v1292 = vunpack.c.l.b16 %v1200
        %v1293 = vunpack.c.l.b16 %v1201
        %v1294 = vunpack.c.h.b16 %v1201
        %v1295 = vunpack.c.l.b16 %v1202
        %v1296 = vunpack.c.l.b16 %v1203
        %v1297 = vunpack.c.h.b16 %v1203
        %v1298 = vunpack.c.l.b16 %v1204
        %v1299 = vunpack.c.l.b16 %v1205
        %v1300 = vunpack.c.h.b16 %v1205
        %v1301 = vunpack.c.l.b16 %v1206
        %v1302 = vunpack.c.l.b16 %v1207
        %v1303 = vunpack.c.h.b16 %v1207
        %v1304 = vunpack.c.l.b16 %v1208
        %v1305 = vunpack.c.l.b16 %v1209
        %v1306 = vunpack.c.h.b16 %v1209
        %v1307 = vunpack.c.l.b16 %v1210
        %v1308 = vpack.c.b16 %v1263, %v1260
        %v1309 = vpack.c.b16 %v1264, %v1261
        %v1310 = vpack.c.b16 %v1265, %v1262
        %v1311 = vpack.c.b16 %v1269, %v1266
        %v1312 = vpack.c.b16 %v1270, %v1267
        %v1313 = vpack.c.b16 %v1271, %v1268
        %v1314 = vpack.c.b16 %v1275, %v1272
        %v1315 = vpack.c.b16 %v1276, %v1273
        %v1316 = vpack.c.b16 %v1277, %v1274
        %v1317 = vpack.c.b16 %v1281, %v1278
        %v1318 = vpack.c.b16 %v1282, %v1279
        %v1319 = vpack.c.b16 %v1283, %v1280
        %v1320 = vpack.c.b16 %v1287, %v1284
        %v1321 = vpack.c.b16 %v1288, %v1285
        %v1322 = vpack.c.b16 %v1289, %v1286
        %v1323 = vpack.c.b16 %v1293, %v1290
        %v1324 = vpack.c.b16 %v1294, %v1291
        %v1325 = vpack.c.b16 %v1295, %v1292
        %v1326 = vpack.c.b16 %v1299, %v1296
        %v1327 = vpack.c.b16 %v1300, %v1297
        %v1328 = vpack.c.b16 %v1301, %v1298
        %v1329 = vpack.c.b16 %v1305, %v1302
        %v1330 = vpack.c.b16 %v1306, %v1303
        %v1331 = vpack.c.b16 %v1307, %v1304
        %1356 = vmatprep.subr.bf16.mxu0 %v1309
        %1357 = vmatpush1.bf16.msra.mxu0 %v1308
        %1358 = vmatprep.subr.bf16.mxu0 %v1312
        %1359 = vmatpush1.bf16.msra.mxu0 %v1311
        %1360 = vmatprep.subr.bf16.mxu0 %v1315
        %1361 = vmatpush1.bf16.msra.mxu0 %v1314
        %1362 = vmatprep.subr.bf16.mxu0 %v1318
        %1363 = vmatpush1.bf16.msra.mxu0 %v1317
        %1364 = vmatprep.subr.bf16.mxu0 %v1321
        %1365 = vmatpush1.bf16.msra.mxu0 %v1320
        %1366 = vmatprep.subr.bf16.mxu0 %v1324
        %1367 = vmatpush1.bf16.msra.mxu0 %v1323
        %1368 = vmatprep.subr.bf16.mxu0 %v1327
        %1369 = vmatpush1.bf16.msra.mxu0 %v1326
        %1370 = vmatprep.subr.bf16.mxu0 %v1330
        %1371 = vmatpush1.bf16.msra.mxu0 %v1329
        %1372 = vmatprep.subr.bf16.mxu0 0
        %1373 = vmatpush1.bf16.msra.mxu0 0
        %1374 = vmatprep.subr.bf16.mxu0 0
        %1375 = vmatpush1.bf16.msra.mxu0 0
        %1376 = vmatprep.subr.bf16.mxu0 0
        %1377 = vmatpush1.bf16.msra.mxu0 0
        %1378 = vmatprep.subr.bf16.mxu0 0
        %1379 = vmatpush1.bf16.msra.mxu0 0
        %1380 = vmatprep.subr.bf16.mxu0 0
        %1381 = vmatpush1.bf16.msra.mxu0 0
        %1382 = vmatprep.subr.bf16.mxu0 0
        %1383 = vmatpush1.bf16.msra.mxu0 0
        %1384 = vmatprep.subr.bf16.mxu0 0
        %1385 = vmatpush1.bf16.msra.mxu0 0
        %1386 = vmatprep.subr.bf16.mxu0 0
        %1387 = vmatpush1.bf16.msra.mxu0 0
        %1388 = vmatprep.mubr.bf16.mxu0 0
        %1389 = vmatmul.mubr.bf16.gmra.mrb[0].mxu0 %v1175
        %v1390 = vpop.f32.mrb[0].mxu0
        %v1391 = vadd.f32 %v1216, %v1390
        %v1392 = vpop.f32.mrb[0].mxu0
        %v1393 = vadd.f32 %v1220, %v1392
        %v1394 = vpop.f32.mrb[0].mxu0
        %v1395 = vadd.f32 %v1216, %v1394
        %v1396 = vpop.f32.mrb[0].mxu0
        %v1397 = vadd.f32 %v1220, %v1396
        %1398 = vmatprep.mubr.bf16.mxu0 0
        %1399 = vmatmul.mubr.bf16.gmra.mrb[0].mxu0 %v1176
        %v1400 = vpop.f32.mrb[0].mxu0
        %v1401 = vadd.f32 %v1216, %v1400
        %v1402 = vpop.f32.mrb[0].mxu0
        %v1403 = vadd.f32 %v1220, %v1402
        %v1404 = vpop.f32.mrb[0].mxu0
        %v1405 = vadd.f32 %v1216, %v1404
        %v1406 = vpop.f32.mrb[0].mxu0
        %v1407 = vadd.f32 %v1220, %v1406
        %1408 = vmatprep.mubr.bf16.mxu0 0
        %1409 = vmatmul.mubr.bf16.gmra.mrb[0].mxu0 %v1177
        %v1410 = vpop.f32.mrb[0].mxu0
        %v1411 = vadd.f32 %v1216, %v1410
        %v1412 = vpop.f32.mrb[0].mxu0
        %v1413 = vadd.f32 %v1220, %v1412
        %v1414 = vpop.f32.mrb[0].mxu0
        %v1415 = vadd.f32 %v1216, %v1414
        %v1416 = vpop.f32.mrb[0].mxu0
        %v1417 = vadd.f32 %v1220, %v1416
        %1418 = vmatprep.mubr.bf16.mxu0 0
        %1419 = vmatmul.mubr.bf16.gmra.mrb[0].mxu0 %v1178
        %v1420 = vpop.f32.mrb[0].mxu0
        %v1421 = vadd.f32 %v1216, %v1420
        %v1422 = vpop.f32.mrb[0].mxu0
        %v1423 = vadd.f32 %v1220, %v1422
        %v1424 = vpop.f32.mrb[0].mxu0
        %v1425 = vadd.f32 %v1216, %v1424
        %v1426 = vpop.f32.mrb[0].mxu0
        %v1427 = vadd.f32 %v1220, %v1426
        %1428 = vdwg.mxu0
        %1429 = vmatprep.subr.bf16.mxu0 0
        %1430 = vmatpush1.bf16.msra.mxu0 %v1310
        %1431 = vmatprep.subr.bf16.mxu0 0
        %1432 = vmatpush1.bf16.msra.mxu0 %v1313
        %1433 = vmatprep.subr.bf16.mxu0 0
        %1434 = vmatpush1.bf16.msra.mxu0 %v1316
        %1435 = vmatprep.subr.bf16.mxu0 0
        %1436 = vmatpush1.bf16.msra.mxu0 %v1319
        %1437 = vmatprep.subr.bf16.mxu0 0
        %1438 = vmatpush1.bf16.msra.mxu0 %v1322
        %1439 = vmatprep.subr.bf16.mxu0 0
        %1440 = vmatpush1.bf16.msra.mxu0 %v1325
        %1441 = vmatprep.subr.bf16.mxu0 0
        %1442 = vmatpush1.bf16.msra.mxu0 %v1328
        %1443 = vmatprep.subr.bf16.mxu0 0
        %1444 = vmatpush1.bf16.msra.mxu0 %v1331
        %1445 = vmatprep.subr.bf16.mxu0 0
        %1446 = vmatpush1.bf16.msra.mxu0 0
        %1447 = vmatprep.subr.bf16.mxu0 0
        %1448 = vmatpush1.bf16.msra.mxu0 0
        %1449 = vmatprep.subr.bf16.mxu0 0
        %1450 = vmatpush1.bf16.msra.mxu0 0
        %1451 = vmatprep.subr.bf16.mxu0 0
        %1452 = vmatpush1.bf16.msra.mxu0 0
        %1453 = vmatprep.subr.bf16.mxu0 0
        %1454 = vmatpush1.bf16.msra.mxu0 0
        %1455 = vmatprep.subr.bf16.mxu0 0
        %1456 = vmatpush1.bf16.msra.mxu0 0
        %1457 = vmatprep.subr.bf16.mxu0 0
        %1458 = vmatpush1.bf16.msra.mxu0 0
        %1459 = vmatprep.subr.bf16.mxu0 0
        %1460 = vmatpush1.bf16.msra.mxu0 0
        %1461 = vmatprep.mubr.bf16.mxu0 0
        %1462 = vmatmul.mubr.bf16.gmra.mrb[0].mxu0 %v1175
        %v1463 = vpop.f32.mrb[0].mxu0
        %v1464 = vadd.f32 %v1224, %v1463
        %v1465 = vpop.f32.mrb[0].mxu0
        %v1466 = vpop.f32.mrb[0].mxu0
        %v1467 = vadd.f32 %v1224, %v1466
        %v1468 = vpop.f32.mrb[0].mxu0
        %1469 = vmatprep.mubr.bf16.mxu0 0
        %1470 = vmatmul.mubr.bf16.gmra.mrb[0].mxu0 %v1176
        %v1471 = vpop.f32.mrb[0].mxu0
        %v1472 = vadd.f32 %v1224, %v1471
        %v1473 = vpop.f32.mrb[0].mxu0
        %v1474 = vpop.f32.mrb[0].mxu0
        %v1475 = vadd.f32 %v1224, %v1474
        %v1476 = vpop.f32.mrb[0].mxu0
        %1477 = vmatprep.mubr.bf16.mxu0 0
        %1478 = vmatmul.mubr.bf16.gmra.mrb[0].mxu0 %v1177
        %v1479 = vpop.f32.mrb[0].mxu0
        %v1480 = vadd.f32 %v1224, %v1479
        %v1481 = vpop.f32.mrb[0].mxu0
        %v1482 = vpop.f32.mrb[0].mxu0
        %v1483 = vadd.f32 %v1224, %v1482
        %v1484 = vpop.f32.mrb[0].mxu0
        %1485 = vmatprep.mubr.bf16.mxu0 0
        %1486 = vmatmul.mubr.bf16.gmra.mrb[0].mxu0 %v1178
        %v1487 = vpop.f32.mrb[0].mxu0
        %v1488 = vadd.f32 %v1224, %v1487
        %v1489 = vpop.f32.mrb[0].mxu0
        %v1490 = vpop.f32.mrb[0].mxu0
        %v1491 = vadd.f32 %v1224, %v1490
        %v1492 = vpop.f32.mrb[0].mxu0
        %1493 = vdwg.mxu0
        %v1494 = vpack.c.bf16 %v1395, %v1391
        %v1495 = vpack.c.bf16 %v1397, %v1393
        %v1496 = vpack.c.bf16 %v1467, %v1464
        %v1497 = vpack.c.bf16 %v1405, %v1401
        %v1498 = vpack.c.bf16 %v1407, %v1403
        %v1499 = vpack.c.bf16 %v1475, %v1472
        %v1500 = vpack.c.bf16 %v1415, %v1411
        %v1501 = vpack.c.bf16 %v1417, %v1413
        %v1502 = vpack.c.bf16 %v1483, %v1480
        %v1503 = vpack.c.bf16 %v1425, %v1421
        %v1504 = vpack.c.bf16 %v1427, %v1423
        %v1505 = vpack.c.bf16 %v1491, %v1488
        %1506 = vst [vmem:[#allocation3] sm:$0xff] %v1494
        %1507 = vst [vmem:[#allocation3 + $0x8] sm:$0xff] %v1495
        %1508 = vst [vmem:[#allocation3 + $0x10] sm:$0xff] %v1496
        %1509 = vst [vmem:[#allocation3 + $0x18] sm:$0xff] %v1497
        %1510 = vst [vmem:[#allocation3 + $0x20] sm:$0xff] %v1498
        %1511 = vst [vmem:[#allocation3 + $0x28] sm:$0xff] %v1499
        %1512 = vst [vmem:[#allocation3 + $0x30] sm:$0xff] %v1500
        %1513 = vst [vmem:[#allocation3 + $0x38] sm:$0xff] %v1501
        %1514 = vst [vmem:[#allocation3 + $0x40] sm:$0xff] %v1502
        %1515 = vst [vmem:[#allocation3 + $0x48] sm:$0xff] %v1503
        %1516 = vst [vmem:[#allocation3 + $0x50] sm:$0xff] %v1504
        %1517 = vst [vmem:[#allocation3 + $0x58] sm:$0xff] %v1505
        %v1518 = vld [vmem:[#allocation3] sm:$0xff]
        %v1519 = vld [vmem:[#allocation3 + $0x18] sm:$0xff]
        %v1520 = vld [vmem:[#allocation3 + $0x30] sm:$0xff]
        %v1521 = vld [vmem:[#allocation3 + $0x48] sm:$0xff]
        %v1522 = vld [vmem:[#allocation3 + $0x8] sm:$0xff]
        %v1523 = vld [vmem:[#allocation3 + $0x20] sm:$0xff]
        %v1524 = vld [vmem:[#allocation3 + $0x38] sm:$0xff]
        %v1525 = vld [vmem:[#allocation3 + $0x50] sm:$0xff]
        %v1526 = vld [vmem:[#allocation3 + $0x10] sm:$0xff]
        %v1527 = vld [vmem:[#allocation3 + $0x28] sm:$0xff]
        %v1528 = vld [vmem:[#allocation3 + $0x40] sm:$0xff]
        %v1529 = vld [vmem:[#allocation3 + $0x58] sm:$0xff]
        %v1530 = vld [vmem:[%s816] sm:$0xf]
        %v1531 = vld [vmem:[%s816 + $0x4] sm:$0xf]
        %v1532 = vld [vmem:[%s816 + $0x8] sm:$0xf]
        %v1533 = vld [vmem:[%s816 + $0xc] sm:$0xf]
        %v1534 = vunpack.c.l.bf16 %v1530
        %v1535 = vunpack.c.l.bf16 %v1531
        %v1536 = vunpack.c.l.bf16 %v1532
        %v1537 = vunpack.c.l.bf16 %v1533
        %vm1538 = vcmask 261120
        %v1540 = vsel %vm1538, %v1518, 0
        %v1543 = vsel %vm1538, %v1519, 0
        %v1546 = vsel %vm1538, %v1522, 0
        %v1549 = vsel %vm1538, %v1523, 0
        %1551 = vmatprep.subr.bf16.mxu0 0
        %1552 = vmatpush1.bf16.xpose.msra.mxu0 %v1546
        %1553 = vmatprep.subr.bf16.mxu0 0
        %1554 = vmatpush1.bf16.xpose.msra.mxu0 %v1549
        %1555 = vmatprep.subr.bf16.mxu0 0
        %1556 = vmatpush1.bf16.xpose.msra.mxu0 0
        %1557 = vmatprep.subr.bf16.mxu0 0
        %1558 = vmatpush1.bf16.xpose.msra.mxu0 0
        %1559 = vmatprep.subr.bf16.mxu0 0
        %1560 = vmatpush1.bf16.xpose.msra.mxu0 0
        %1561 = vmatprep.subr.bf16.mxu0 0
        %1562 = vmatpush1.bf16.xpose.msra.mxu0 0
        %1563 = vmatprep.subr.bf16.mxu0 0
        %1564 = vmatpush1.bf16.xpose.msra.mxu0 0
        %1565 = vmatprep.subr.bf16.mxu0 0
        %1566 = vmatpush1.bf16.xpose.msra.mxu0 0
        %1567 = vmatprep.subr.bf16.mxu0 0
        %1568 = vmatpush1.bf16.xpose.msra.mxu0 0
        %1569 = vmatprep.subr.bf16.mxu0 0
        %1570 = vmatpush1.bf16.xpose.msra.mxu0 0
        %1571 = vmatprep.subr.bf16.mxu0 0
        %1572 = vmatpush1.bf16.xpose.msra.mxu0 0
        %1573 = vmatprep.subr.bf16.mxu0 0
        %1574 = vmatpush1.bf16.xpose.msra.mxu0 0
        %1575 = vmatprep.subr.bf16.mxu0 0
        %1576 = vmatpush1.bf16.xpose.msra.mxu0 0
        %1577 = vmatprep.subr.bf16.mxu0 0
        %1578 = vmatpush1.bf16.xpose.msra.mxu0 0
        %1579 = vmatprep.subr.bf16.mxu0 0
        %1580 = vmatpush1.bf16.xpose.msra.mxu0 0
        %1581 = vmatprep.subr.bf16.mxu0 0
        %1582 = vmatpush1.bf16.xpose.msra.mxu0 0
        %1583 = vmatprep.mubr.bf16.mxu0 0
        %1584 = vmatmul.mubr.bf16.gmra.mrb[0].mxu0 %v1540
        %v1585 = vpop.f32.mrb[0].mxu0
        %v1586 = vadd.f32 %v1534, %v1585
        %v1587 = vpop.f32.mrb[0].mxu0
        %v1588 = vpop.f32.mrb[0].mxu0
        %v1589 = vadd.f32 %v1535, %v1588
        %v1590 = vpop.f32.mrb[0].mxu0
        %1591 = vmatprep.mubr.bf16.mxu0 0
        %1592 = vmatmul.mubr.bf16.gmra.mrb[0].mxu0 %v1543
        %v1593 = vpop.f32.mrb[0].mxu0
        %v1594 = vadd.f32 %v1536, %v1593
        %v1595 = vpop.f32.mrb[0].mxu0
        %v1596 = vpop.f32.mrb[0].mxu0
        %v1597 = vadd.f32 %v1537, %v1596
        %v1598 = vpop.f32.mrb[0].mxu0
        %1599 = vdwg.mxu0
        %v1601 = vsel %vm1538, %v1520, 0
        %v1604 = vsel %vm1538, %v1521, 0
        %v1607 = vsel %vm1538, %v1524, 0
        %v1610 = vsel %vm1538, %v1525, 0
        %1612 = vmatprep.subr.bf16.mxu0 0
        %1613 = vmatpush1.bf16.xpose.msra.mxu0 %v1607
        %1614 = vmatprep.subr.bf16.mxu0 0
        %1615 = vmatpush1.bf16.xpose.msra.mxu0 %v1610
        %1616 = vmatprep.subr.bf16.mxu0 0
        %1617 = vmatpush1.bf16.xpose.msra.mxu0 0
        %1618 = vmatprep.subr.bf16.mxu0 0
        %1619 = vmatpush1.bf16.xpose.msra.mxu0 0
        %1620 = vmatprep.subr.bf16.mxu0 0
        %1621 = vmatpush1.bf16.xpose.msra.mxu0 0
        %1622 = vmatprep.subr.bf16.mxu0 0
        %1623 = vmatpush1.bf16.xpose.msra.mxu0 0
        %1624 = vmatprep.subr.bf16.mxu0 0
        %1625 = vmatpush1.bf16.xpose.msra.mxu0 0
        %1626 = vmatprep.subr.bf16.mxu0 0
        %1627 = vmatpush1.bf16.xpose.msra.mxu0 0
        %1628 = vmatprep.subr.bf16.mxu0 0
        %1629 = vmatpush1.bf16.xpose.msra.mxu0 0
        %1630 = vmatprep.subr.bf16.mxu0 0
        %1631 = vmatpush1.bf16.xpose.msra.mxu0 0
        %1632 = vmatprep.subr.bf16.mxu0 0
        %1633 = vmatpush1.bf16.xpose.msra.mxu0 0
        %1634 = vmatprep.subr.bf16.mxu0 0
        %1635 = vmatpush1.bf16.xpose.msra.mxu0 0
        %1636 = vmatprep.subr.bf16.mxu0 0
        %1637 = vmatpush1.bf16.xpose.msra.mxu0 0
        %1638 = vmatprep.subr.bf16.mxu0 0
        %1639 = vmatpush1.bf16.xpose.msra.mxu0 0
        %1640 = vmatprep.subr.bf16.mxu0 0
        %1641 = vmatpush1.bf16.xpose.msra.mxu0 0
        %1642 = vmatprep.subr.bf16.mxu0 0
        %1643 = vmatpush1.bf16.xpose.msra.mxu0 0
        %1644 = vmatprep.mubr.bf16.mxu0 0
        %1645 = vmatmul.mubr.bf16.gmra.mrb[0].mxu0 %v1601
        %v1646 = vpop.f32.mrb[0].mxu0
        %v1647 = vadd.f32 %v1534, %v1646
        %v1648 = vpop.f32.mrb[0].mxu0
        %v1649 = vpop.f32.mrb[0].mxu0
        %v1650 = vadd.f32 %v1535, %v1649
        %v1651 = vpop.f32.mrb[0].mxu0
        %1652 = vmatprep.mubr.bf16.mxu0 0
        %1653 = vmatmul.mubr.bf16.gmra.mrb[0].mxu0 %v1604
        %v1654 = vpop.f32.mrb[0].mxu0
        %v1655 = vadd.f32 %v1536, %v1654
        %v1656 = vpop.f32.mrb[0].mxu0
        %v1657 = vpop.f32.mrb[0].mxu0
        %v1658 = vadd.f32 %v1537, %v1657
        %v1659 = vpop.f32.mrb[0].mxu0
        %1660 = vdwg.mxu0
        %v1661 = vsel %vm1538, %v1586, -inf
        %1662 = vmax.xlane.f32.xlu0 %v1661
        %v1663 = vpop.xlane.xlu0 %1662
        %v1664 = vsel %vm1538, %v1589, -inf
        %1665 = vmax.xlane.f32.xlu0 %v1664
        %v1666 = vpop.xlane.xlu0 %1665
        %v1667 = vsel %vm1538, %v1594, -inf
        %1668 = vmax.xlane.f32.xlu0 %v1667
        %v1669 = vpop.xlane.xlu0 %1668
        %v1670 = vsel %vm1538, %v1597, -inf
        %1671 = vmax.xlane.f32.xlu0 %v1670
        %v1672 = vpop.xlane.xlu0 %1671
        %v1673 = vsel %vm1538, %v1647, -inf
        %1674 = vmax.xlane.f32.xlu0 %v1673
        %v1675 = vpop.xlane.xlu0 %1674
        %v1676 = vsel %vm1538, %v1650, -inf
        %1677 = vmax.xlane.f32.xlu0 %v1676
        %v1678 = vpop.xlane.xlu0 %1677
        %v1679 = vsel %vm1538, %v1655, -inf
        %1680 = vmax.xlane.f32.xlu0 %v1679
        %v1681 = vpop.xlane.xlu0 %1680
        %v1682 = vsel %vm1538, %v1658, -inf
        %1683 = vmax.xlane.f32.xlu0 %v1682
        %v1684 = vpop.xlane.xlu0 %1683
        %v1685 = vsub.f32 %v1586, %v1663
        %v1686 = vsub.f32 %v1589, %v1666
        %v1687 = vsub.f32 %v1594, %v1669
        %v1688 = vsub.f32 %v1597, %v1672
        %v1689 = vsub.f32 %v1647, %v1675
        %v1690 = vsub.f32 %v1650, %v1678
        %v1691 = vsub.f32 %v1655, %v1681
        %v1692 = vsub.f32 %v1658, %v1684
        %v1693 = vmul.f32 %v1685, 1.442695
        %v1694 = vpow.pop %v1693
        %v1695 = vmul.f32 %v1686, 1.442695
        %v1696 = vpow.pop %v1695
        %v1697 = vmul.f32 %v1687, 1.442695
        %v1698 = vpow.pop %v1697
        %v1699 = vmul.f32 %v1688, 1.442695
        %v1700 = vpow.pop %v1699
        %v1701 = vmul.f32 %v1689, 1.442695
        %v1702 = vpow.pop %v1701
        %v1703 = vmul.f32 %v1690, 1.442695
        %v1704 = vpow.pop %v1703
        %v1705 = vmul.f32 %v1691, 1.442695
        %v1706 = vpow.pop %v1705
        %v1707 = vmul.f32 %v1692, 1.442695
        %v1708 = vpow.pop %v1707
        %v1709 = vsel %vm1538, %v1694, 0.0
        %1710 = vadd.xlane.f32.xlu0 %v1709
        %v1711 = vpop.xlane.xlu0 %1710
        %v1712 = vsel %vm1538, %v1696, 0.0
        %1713 = vadd.xlane.f32.xlu0 %v1712
        %v1714 = vpop.xlane.xlu0 %1713
        %v1715 = vsel %vm1538, %v1698, 0.0
        %1716 = vadd.xlane.f32.xlu0 %v1715
        %v1717 = vpop.xlane.xlu0 %1716
        %v1718 = vsel %vm1538, %v1700, 0.0
        %1719 = vadd.xlane.f32.xlu0 %v1718
        %v1720 = vpop.xlane.xlu0 %1719
        %v1721 = vsel %vm1538, %v1702, 0.0
        %1722 = vadd.xlane.f32.xlu0 %v1721
        %v1723 = vpop.xlane.xlu0 %1722
        %v1724 = vsel %vm1538, %v1704, 0.0
        %1725 = vadd.xlane.f32.xlu0 %v1724
        %v1726 = vpop.xlane.xlu0 %1725
        %v1727 = vsel %vm1538, %v1706, 0.0
        %1728 = vadd.xlane.f32.xlu0 %v1727
        %v1729 = vpop.xlane.xlu0 %1728
        %v1730 = vsel %vm1538, %v1708, 0.0
        %1731 = vadd.xlane.f32.xlu0 %v1730
        %v1732 = vpop.xlane.xlu0 %1731
        %v1733 = vrcp.pop %v1711
        %v1734 = vrcp.pop %v1714
        %v1735 = vrcp.pop %v1717
        %v1736 = vrcp.pop %v1720
        %v1737 = vrcp.pop %v1723
        %v1738 = vrcp.pop %v1726
        %v1739 = vrcp.pop %v1729
        %v1740 = vrcp.pop %v1732
        %v1741 = vmul.f32 %v1694, %v1733
        %v1742 = vmul.f32 %v1696, %v1734
        %v1743 = vmul.f32 %v1698, %v1735
        %v1744 = vmul.f32 %v1700, %v1736
        %v1745 = vmul.f32 %v1702, %v1737
        %v1746 = vmul.f32 %v1704, %v1738
        %v1747 = vmul.f32 %v1706, %v1739
        %v1748 = vmul.f32 %v1708, %v1740
        %v1749 = vpack.c.bf16 %v1742, %v1741
        %v1750 = vpack.c.bf16 %v1744, %v1743
        %v1751 = vpack.c.bf16 %v1746, %v1745
        %v1752 = vpack.c.bf16 %v1748, %v1747
        %v1754 = vsel %vm1538, %v1749, 0
        %v1757 = vsel %vm1538, %v1750, 0
        %1759 = vmatprep.subr.bf16.mxu0 0
        %1760 = vmatpush1.bf16.msra.mxu0 %v1526
        %1761 = vmatprep.subr.bf16.mxu0 0
        %1762 = vmatpush1.bf16.msra.mxu0 %v1527
        %1763 = vmatprep.subr.bf16.mxu0 0
        %1764 = vmatpush1.bf16.msra.mxu0 0
        %1765 = vmatprep.subr.bf16.mxu0 0
        %1766 = vmatpush1.bf16.msra.mxu0 0
        %1767 = vmatprep.subr.bf16.mxu0 0
        %1768 = vmatpush1.bf16.msra.mxu0 0
        %1769 = vmatprep.subr.bf16.mxu0 0
        %1770 = vmatpush1.bf16.msra.mxu0 0
        %1771 = vmatprep.subr.bf16.mxu0 0
        %1772 = vmatpush1.bf16.msra.mxu0 0
        %1773 = vmatprep.subr.bf16.mxu0 0
        %1774 = vmatpush1.bf16.msra.mxu0 0
        %1775 = vmatprep.subr.bf16.mxu0 0
        %1776 = vmatpush1.bf16.msra.mxu0 0
        %1777 = vmatprep.subr.bf16.mxu0 0
        %1778 = vmatpush1.bf16.msra.mxu0 0
        %1779 = vmatprep.subr.bf16.mxu0 0
        %1780 = vmatpush1.bf16.msra.mxu0 0
        %1781 = vmatprep.subr.bf16.mxu0 0
        %1782 = vmatpush1.bf16.msra.mxu0 0
        %1783 = vmatprep.subr.bf16.mxu0 0
        %1784 = vmatpush1.bf16.msra.mxu0 0
        %1785 = vmatprep.subr.bf16.mxu0 0
        %1786 = vmatpush1.bf16.msra.mxu0 0
        %1787 = vmatprep.subr.bf16.mxu0 0
        %1788 = vmatpush1.bf16.msra.mxu0 0
        %1789 = vmatprep.subr.bf16.mxu0 0
        %1790 = vmatpush1.bf16.msra.mxu0 0
        %1791 = vmatprep.mubr.bf16.mxu0 0
        %1792 = vmatmul.mubr.bf16.gmra.mrb[0].mxu0 %v1754
        %v1793 = vpop.f32.mrb[0].mxu0
        %v1794 = vadd.f32 0.0, %v1793
        %v1795 = vpop.f32.mrb[0].mxu0
        %v1796 = vpop.f32.mrb[0].mxu0
        %v1797 = vadd.f32 0.0, %v1796
        %v1798 = vpop.f32.mrb[0].mxu0
        %1799 = vmatprep.mubr.bf16.mxu0 0
        %1800 = vmatmul.mubr.bf16.gmra.mrb[0].mxu0 %v1757
        %v1801 = vpop.f32.mrb[0].mxu0
        %v1802 = vadd.f32 0.0, %v1801
        %v1803 = vpop.f32.mrb[0].mxu0
        %v1804 = vpop.f32.mrb[0].mxu0
        %v1805 = vadd.f32 0.0, %v1804
        %v1806 = vpop.f32.mrb[0].mxu0
        %1807 = vdwg.mxu0
        %v1809 = vsel %vm1538, %v1751, 0
        %v1812 = vsel %vm1538, %v1752, 0
        %1814 = vmatprep.subr.bf16.mxu0 0
        %1815 = vmatpush1.bf16.msra.mxu0 %v1528
        %1816 = vmatprep.subr.bf16.mxu0 0
        %1817 = vmatpush1.bf16.msra.mxu0 %v1529
        %1818 = vmatprep.subr.bf16.mxu0 0
        %1819 = vmatpush1.bf16.msra.mxu0 0
        %1820 = vmatprep.subr.bf16.mxu0 0
        %1821 = vmatpush1.bf16.msra.mxu0 0
        %1822 = vmatprep.subr.bf16.mxu0 0
        %1823 = vmatpush1.bf16.msra.mxu0 0
        %1824 = vmatprep.subr.bf16.mxu0 0
        %1825 = vmatpush1.bf16.msra.mxu0 0
        %1826 = vmatprep.subr.bf16.mxu0 0
        %1827 = vmatpush1.bf16.msra.mxu0 0
        %1828 = vmatprep.subr.bf16.mxu0 0
        %1829 = vmatpush1.bf16.msra.mxu0 0
        %1830 = vmatprep.subr.bf16.mxu0 0
        %1831 = vmatpush1.bf16.msra.mxu0 0
        %1832 = vmatprep.subr.bf16.mxu0 0
        %1833 = vmatpush1.bf16.msra.mxu0 0
        %1834 = vmatprep.subr.bf16.mxu0 0
        %1835 = vmatpush1.bf16.msra.mxu0 0
        %1836 = vmatprep.subr.bf16.mxu0 0
        %1837 = vmatpush1.bf16.msra.mxu0 0
        %1838 = vmatprep.subr.bf16.mxu0 0
        %1839 = vmatpush1.bf16.msra.mxu0 0
        %1840 = vmatprep.subr.bf16.mxu0 0
        %1841 = vmatpush1.bf16.msra.mxu0 0
        %1842 = vmatprep.subr.bf16.mxu0 0
        %1843 = vmatpush1.bf16.msra.mxu0 0
        %1844 = vmatprep.subr.bf16.mxu0 0
        %1845 = vmatpush1.bf16.msra.mxu0 0
        %1846 = vmatprep.mubr.bf16.mxu0 0
        %1847 = vmatmul.mubr.bf16.gmra.mrb[0].mxu0 %v1809
        %v1848 = vpop.f32.mrb[0].mxu0
        %v1849 = vadd.f32 0.0, %v1848
        %v1850 = vpop.f32.mrb[0].mxu0
        %v1851 = vpop.f32.mrb[0].mxu0
        %v1852 = vadd.f32 0.0, %v1851
        %v1853 = vpop.f32.mrb[0].mxu0
        %1854 = vmatprep.mubr.bf16.mxu0 0
        %1855 = vmatmul.mubr.bf16.gmra.mrb[0].mxu0 %v1812
        %v1856 = vpop.f32.mrb[0].mxu0
        %v1857 = vadd.f32 0.0, %v1856
        %v1858 = vpop.f32.mrb[0].mxu0
        %v1859 = vpop.f32.mrb[0].mxu0
        %v1860 = vadd.f32 0.0, %v1859
        %v1861 = vpop.f32.mrb[0].mxu0
        %1862 = vdwg.mxu0
        %v1863 = vpack.c.bf16 %v1797, %v1794
        %v1864 = vpack.c.bf16 %v1805, %v1802
        %v1865 = vpack.c.bf16 %v1852, %v1849
        %v1866 = vpack.c.bf16 %v1860, %v1857
        %1867 = vst.msk [vmem:[#allocation4] sm:$0xff] %vm1538, %v1863
        %1868 = vst.msk [vmem:[#allocation4 + $0x8] sm:$0xff] %vm1538, %v1864
        %1869 = vst.msk [vmem:[#allocation4 + $0x10] sm:$0xff] %vm1538, %v1865
        %1870 = vst.msk [vmem:[#allocation4 + $0x18] sm:$0xff] %vm1538, %v1866
        %v1871 = vld [vmem:[#allocation3] sm:$0xff]
        %v1872 = vld [vmem:[#allocation3 + $0x18] sm:$0xff]
        %v1873 = vld [vmem:[#allocation3 + $0x30] sm:$0xff]
        %v1874 = vld [vmem:[#allocation3 + $0x48] sm:$0xff]
        %v1875 = vld [vmem:[#allocation3 + $0x8] sm:$0xff]
        %v1876 = vld [vmem:[#allocation3 + $0x20] sm:$0xff]
        %v1877 = vld [vmem:[#allocation3 + $0x38] sm:$0xff]
        %v1878 = vld [vmem:[#allocation3 + $0x50] sm:$0xff]
        %v1879 = vld [vmem:[#allocation3 + $0x10] sm:$0xff]
        %v1880 = vld [vmem:[#allocation3 + $0x28] sm:$0xff]
        %v1881 = vld [vmem:[#allocation3 + $0x40] sm:$0xff]
        %v1882 = vld [vmem:[#allocation3 + $0x58] sm:$0xff]
        %v1883 = vld [vmem:[%s816] sm:$0xf]
        %v1884 = vld [vmem:[%s816 + $0x4] sm:$0xf]
        %v1885 = vld [vmem:[%s816 + $0x8] sm:$0xf]
        %v1886 = vld [vmem:[%s816 + $0xc] sm:$0xf]
        %v1887 = vunpack.c.l.bf16 %v1883
        %v1888 = vunpack.c.l.bf16 %v1884
        %v1889 = vunpack.c.l.bf16 %v1885
        %v1890 = vunpack.c.l.bf16 %v1886
        %1893 = vrot.lane.b32.xlu0 %v1871, 96
        %v1894 = vpop.permute.xlu0 %1893
        %1895 = vrot.lane.b32.xlu0 %v1872, 96
        %v1896 = vpop.permute.xlu0 %1895
        %1899 = vrot.lane.b32.xlu0 %v1875, 96
        %v1900 = vpop.permute.xlu0 %1899
        %1901 = vrot.lane.b32.xlu0 %v1876, 96
        %v1902 = vpop.permute.xlu0 %1901
        %v1904 = vsel %vm1538, %v1894, 0
        %v1907 = vsel %vm1538, %v1896, 0
        %v1910 = vsel %vm1538, %v1900, 0
        %v1913 = vsel %vm1538, %v1902, 0
        %1915 = vmatprep.subr.bf16.mxu0 0
        %1916 = vmatpush1.bf16.xpose.msra.mxu0 %v1910
        %1917 = vmatprep.subr.bf16.mxu0 0
        %1918 = vmatpush1.bf16.xpose.msra.mxu0 %v1913
        %1919 = vmatprep.subr.bf16.mxu0 0
        %1920 = vmatpush1.bf16.xpose.msra.mxu0 0
        %1921 = vmatprep.subr.bf16.mxu0 0
        %1922 = vmatpush1.bf16.xpose.msra.mxu0 0
        %1923 = vmatprep.subr.bf16.mxu0 0
        %1924 = vmatpush1.bf16.xpose.msra.mxu0 0
        %1925 = vmatprep.subr.bf16.mxu0 0
        %1926 = vmatpush1.bf16.xpose.msra.mxu0 0
        %1927 = vmatprep.subr.bf16.mxu0 0
        %1928 = vmatpush1.bf16.xpose.msra.mxu0 0
        %1929 = vmatprep.subr.bf16.mxu0 0
        %1930 = vmatpush1.bf16.xpose.msra.mxu0 0
        %1931 = vmatprep.subr.bf16.mxu0 0
        %1932 = vmatpush1.bf16.xpose.msra.mxu0 0
        %1933 = vmatprep.subr.bf16.mxu0 0
        %1934 = vmatpush1.bf16.xpose.msra.mxu0 0
        %1935 = vmatprep.subr.bf16.mxu0 0
        %1936 = vmatpush1.bf16.xpose.msra.mxu0 0
        %1937 = vmatprep.subr.bf16.mxu0 0
        %1938 = vmatpush1.bf16.xpose.msra.mxu0 0
        %1939 = vmatprep.subr.bf16.mxu0 0
        %1940 = vmatpush1.bf16.xpose.msra.mxu0 0
        %1941 = vmatprep.subr.bf16.mxu0 0
        %1942 = vmatpush1.bf16.xpose.msra.mxu0 0
        %1943 = vmatprep.subr.bf16.mxu0 0
        %1944 = vmatpush1.bf16.xpose.msra.mxu0 0
        %1945 = vmatprep.subr.bf16.mxu0 0
        %1946 = vmatpush1.bf16.xpose.msra.mxu0 0
        %1947 = vmatprep.mubr.bf16.mxu0 0
        %1948 = vmatmul.mubr.bf16.gmra.mrb[0].mxu0 %v1904
        %v1949 = vpop.f32.mrb[0].mxu0
        %v1950 = vadd.f32 %v1887, %v1949
        %v1951 = vpop.f32.mrb[0].mxu0
        %v1952 = vpop.f32.mrb[0].mxu0
        %v1953 = vadd.f32 %v1888, %v1952
        %v1954 = vpop.f32.mrb[0].mxu0
        %1955 = vmatprep.mubr.bf16.mxu0 0
        %1956 = vmatmul.mubr.bf16.gmra.mrb[0].mxu0 %v1907
        %v1957 = vpop.f32.mrb[0].mxu0
        %v1958 = vadd.f32 %v1889, %v1957
        %v1959 = vpop.f32.mrb[0].mxu0
        %v1960 = vpop.f32.mrb[0].mxu0
        %v1961 = vadd.f32 %v1890, %v1960
        %v1962 = vpop.f32.mrb[0].mxu0
        %1963 = vdwg.mxu0
        %1966 = vrot.lane.b32.xlu0 %v1873, 96
        %v1967 = vpop.permute.xlu0 %1966
        %1968 = vrot.lane.b32.xlu0 %v1874, 96
        %v1969 = vpop.permute.xlu0 %1968
        %1972 = vrot.lane.b32.xlu0 %v1877, 96
        %v1973 = vpop.permute.xlu0 %1972
        %1974 = vrot.lane.b32.xlu0 %v1878, 96
        %v1975 = vpop.permute.xlu0 %1974
        %v1977 = vsel %vm1538, %v1967, 0
        %v1980 = vsel %vm1538, %v1969, 0
        %v1983 = vsel %vm1538, %v1973, 0
        %v1986 = vsel %vm1538, %v1975, 0
        %1988 = vmatprep.subr.bf16.mxu0 0
        %1989 = vmatpush1.bf16.xpose.msra.mxu0 %v1983
        %1990 = vmatprep.subr.bf16.mxu0 0
        %1991 = vmatpush1.bf16.xpose.msra.mxu0 %v1986
        %1992 = vmatprep.subr.bf16.mxu0 0
        %1993 = vmatpush1.bf16.xpose.msra.mxu0 0
        %1994 = vmatprep.subr.bf16.mxu0 0
        %1995 = vmatpush1.bf16.xpose.msra.mxu0 0
        %1996 = vmatprep.subr.bf16.mxu0 0
        %1997 = vmatpush1.bf16.xpose.msra.mxu0 0
        %1998 = vmatprep.subr.bf16.mxu0 0
        %1999 = vmatpush1.bf16.xpose.msra.mxu0 0
        %2000 = vmatprep.subr.bf16.mxu0 0
        %2001 = vmatpush1.bf16.xpose.msra.mxu0 0
        %2002 = vmatprep.subr.bf16.mxu0 0
        %2003 = vmatpush1.bf16.xpose.msra.mxu0 0
        %2004 = vmatprep.subr.bf16.mxu0 0
        %2005 = vmatpush1.bf16.xpose.msra.mxu0 0
        %2006 = vmatprep.subr.bf16.mxu0 0
        %2007 = vmatpush1.bf16.xpose.msra.mxu0 0
        %2008 = vmatprep.subr.bf16.mxu0 0
        %2009 = vmatpush1.bf16.xpose.msra.mxu0 0
        %2010 = vmatprep.subr.bf16.mxu0 0
        %2011 = vmatpush1.bf16.xpose.msra.mxu0 0
        %2012 = vmatprep.subr.bf16.mxu0 0
        %2013 = vmatpush1.bf16.xpose.msra.mxu0 0
        %2014 = vmatprep.subr.bf16.mxu0 0
        %2015 = vmatpush1.bf16.xpose.msra.mxu0 0
        %2016 = vmatprep.subr.bf16.mxu0 0
        %2017 = vmatpush1.bf16.xpose.msra.mxu0 0
        %2018 = vmatprep.subr.bf16.mxu0 0
        %2019 = vmatpush1.bf16.xpose.msra.mxu0 0
        %2020 = vmatprep.mubr.bf16.mxu0 0
        %2021 = vmatmul.mubr.bf16.gmra.mrb[0].mxu0 %v1977
        %v2022 = vpop.f32.mrb[0].mxu0
        %v2023 = vadd.f32 %v1887, %v2022
        %v2024 = vpop.f32.mrb[0].mxu0
        %v2025 = vpop.f32.mrb[0].mxu0
        %v2026 = vadd.f32 %v1888, %v2025
        %v2027 = vpop.f32.mrb[0].mxu0
        %2028 = vmatprep.mubr.bf16.mxu0 0
        %2029 = vmatmul.mubr.bf16.gmra.mrb[0].mxu0 %v1980
        %v2030 = vpop.f32.mrb[0].mxu0
        %v2031 = vadd.f32 %v1889, %v2030
        %v2032 = vpop.f32.mrb[0].mxu0
        %v2033 = vpop.f32.mrb[0].mxu0
        %v2034 = vadd.f32 %v1890, %v2033
        %v2035 = vpop.f32.mrb[0].mxu0
        %2036 = vdwg.mxu0
        %v2037 = vsel %vm1538, %v1950, -inf
        %2038 = vmax.xlane.f32.xlu0 %v2037
        %v2039 = vpop.xlane.xlu0 %2038
        %v2040 = vsel %vm1538, %v1953, -inf
        %2041 = vmax.xlane.f32.xlu0 %v2040
        %v2042 = vpop.xlane.xlu0 %2041
        %v2043 = vsel %vm1538, %v1958, -inf
        %2044 = vmax.xlane.f32.xlu0 %v2043
        %v2045 = vpop.xlane.xlu0 %2044
        %v2046 = vsel %vm1538, %v1961, -inf
        %2047 = vmax.xlane.f32.xlu0 %v2046
        %v2048 = vpop.xlane.xlu0 %2047
        %v2049 = vsel %vm1538, %v2023, -inf
        %2050 = vmax.xlane.f32.xlu0 %v2049
        %v2051 = vpop.xlane.xlu0 %2050
        %v2052 = vsel %vm1538, %v2026, -inf
        %2053 = vmax.xlane.f32.xlu0 %v2052
        %v2054 = vpop.xlane.xlu0 %2053
        %v2055 = vsel %vm1538, %v2031, -inf
        %2056 = vmax.xlane.f32.xlu0 %v2055
        %v2057 = vpop.xlane.xlu0 %2056
        %v2058 = vsel %vm1538, %v2034, -inf
        %2059 = vmax.xlane.f32.xlu0 %v2058
        %v2060 = vpop.xlane.xlu0 %2059
        %v2061 = vsub.f32 %v1950, %v2039
        %v2062 = vsub.f32 %v1953, %v2042
        %v2063 = vsub.f32 %v1958, %v2045
        %v2064 = vsub.f32 %v1961, %v2048
        %v2065 = vsub.f32 %v2023, %v2051
        %v2066 = vsub.f32 %v2026, %v2054
        %v2067 = vsub.f32 %v2031, %v2057
        %v2068 = vsub.f32 %v2034, %v2060
        %v2069 = vmul.f32 %v2061, 1.442695
        %v2070 = vpow.pop %v2069
        %v2071 = vmul.f32 %v2062, 1.442695
        %v2072 = vpow.pop %v2071
        %v2073 = vmul.f32 %v2063, 1.442695
        %v2074 = vpow.pop %v2073
        %v2075 = vmul.f32 %v2064, 1.442695
        %v2076 = vpow.pop %v2075
        %v2077 = vmul.f32 %v2065, 1.442695
        %v2078 = vpow.pop %v2077
        %v2079 = vmul.f32 %v2066, 1.442695
        %v2080 = vpow.pop %v2079
        %v2081 = vmul.f32 %v2067, 1.442695
        %v2082 = vpow.pop %v2081
        %v2083 = vmul.f32 %v2068, 1.442695
        %v2084 = vpow.pop %v2083
        %v2085 = vsel %vm1538, %v2070, 0.0
        %2086 = vadd.xlane.f32.xlu0 %v2085
        %v2087 = vpop.xlane.xlu0 %2086
        %v2088 = vsel %vm1538, %v2072, 0.0
        %2089 = vadd.xlane.f32.xlu0 %v2088
        %v2090 = vpop.xlane.xlu0 %2089
        %v2091 = vsel %vm1538, %v2074, 0.0
        %2092 = vadd.xlane.f32.xlu0 %v2091
        %v2093 = vpop.xlane.xlu0 %2092
        %v2094 = vsel %vm1538, %v2076, 0.0
        %2095 = vadd.xlane.f32.xlu0 %v2094
        %v2096 = vpop.xlane.xlu0 %2095
        %v2097 = vsel %vm1538, %v2078, 0.0
        %2098 = vadd.xlane.f32.xlu0 %v2097
        %v2099 = vpop.xlane.xlu0 %2098
        %v2100 = vsel %vm1538, %v2080, 0.0
        %2101 = vadd.xlane.f32.xlu0 %v2100
        %v2102 = vpop.xlane.xlu0 %2101
        %v2103 = vsel %vm1538, %v2082, 0.0
        %2104 = vadd.xlane.f32.xlu0 %v2103
        %v2105 = vpop.xlane.xlu0 %2104
        %v2106 = vsel %vm1538, %v2084, 0.0
        %2107 = vadd.xlane.f32.xlu0 %v2106
        %v2108 = vpop.xlane.xlu0 %2107
        %v2109 = vrcp.pop %v2087
        %v2110 = vrcp.pop %v2090
        %v2111 = vrcp.pop %v2093
        %v2112 = vrcp.pop %v2096
        %v2113 = vrcp.pop %v2099
        %v2114 = vrcp.pop %v2102
        %v2115 = vrcp.pop %v2105
        %v2116 = vrcp.pop %v2108
        %v2117 = vmul.f32 %v2070, %v2109
        %v2118 = vmul.f32 %v2072, %v2110
        %v2119 = vmul.f32 %v2074, %v2111
        %v2120 = vmul.f32 %v2076, %v2112
        %v2121 = vmul.f32 %v2078, %v2113
        %v2122 = vmul.f32 %v2080, %v2114
        %v2123 = vmul.f32 %v2082, %v2115
        %v2124 = vmul.f32 %v2084, %v2116
        %v2125 = vpack.c.bf16 %v2118, %v2117
        %v2126 = vpack.c.bf16 %v2120, %v2119
        %v2127 = vpack.c.bf16 %v2122, %v2121
        %v2128 = vpack.c.bf16 %v2124, %v2123
        %2131 = vrot.lane.b32.xlu0 %v1879, 96
        %v2132 = vpop.permute.xlu0 %2131
        %2133 = vrot.lane.b32.xlu0 %v1880, 96
        %v2134 = vpop.permute.xlu0 %2133
        %v2138 = vsel %vm1538, %v2125, 0
        %v2141 = vsel %vm1538, %v2126, 0
        %2143 = vmatprep.subr.bf16.mxu0 0
        %2144 = vmatpush1.bf16.msra.mxu0 %v2132
        %2145 = vmatprep.subr.bf16.mxu0 0
        %2146 = vmatpush1.bf16.msra.mxu0 %v2134
        %2147 = vmatprep.subr.bf16.mxu0 0
        %2148 = vmatpush1.bf16.msra.mxu0 0
        %2149 = vmatprep.subr.bf16.mxu0 0
        %2150 = vmatpush1.bf16.msra.mxu0 0
        %2151 = vmatprep.subr.bf16.mxu0 0
        %2152 = vmatpush1.bf16.msra.mxu0 0
        %2153 = vmatprep.subr.bf16.mxu0 0
        %2154 = vmatpush1.bf16.msra.mxu0 0
        %2155 = vmatprep.subr.bf16.mxu0 0
        %2156 = vmatpush1.bf16.msra.mxu0 0
        %2157 = vmatprep.subr.bf16.mxu0 0
        %2158 = vmatpush1.bf16.msra.mxu0 0
        %2159 = vmatprep.subr.bf16.mxu0 0
        %2160 = vmatpush1.bf16.msra.mxu0 0
        %2161 = vmatprep.subr.bf16.mxu0 0
        %2162 = vmatpush1.bf16.msra.mxu0 0
        %2163 = vmatprep.subr.bf16.mxu0 0
        %2164 = vmatpush1.bf16.msra.mxu0 0
        %2165 = vmatprep.subr.bf16.mxu0 0
        %2166 = vmatpush1.bf16.msra.mxu0 0
        %2167 = vmatprep.subr.bf16.mxu0 0
        %2168 = vmatpush1.bf16.msra.mxu0 0
        %2169 = vmatprep.subr.bf16.mxu0 0
        %2170 = vmatpush1.bf16.msra.mxu0 0
        %2171 = vmatprep.subr.bf16.mxu0 0
        %2172 = vmatpush1.bf16.msra.mxu0 0
        %2173 = vmatprep.subr.bf16.mxu0 0
        %2174 = vmatpush1.bf16.msra.mxu0 0
        %2175 = vmatprep.mubr.bf16.mxu0 0
        %2176 = vmatmul.mubr.bf16.gmra.mrb[0].mxu0 %v2138
        %v2177 = vpop.f32.mrb[0].mxu0
        %v2178 = vadd.f32 0.0, %v2177
        %v2179 = vpop.f32.mrb[0].mxu0
        %v2180 = vpop.f32.mrb[0].mxu0
        %v2181 = vadd.f32 0.0, %v2180
        %v2182 = vpop.f32.mrb[0].mxu0
        %2183 = vmatprep.mubr.bf16.mxu0 0
        %2184 = vmatmul.mubr.bf16.gmra.mrb[0].mxu0 %v2141
        %v2185 = vpop.f32.mrb[0].mxu0
        %v2186 = vadd.f32 0.0, %v2185
        %v2187 = vpop.f32.mrb[0].mxu0
        %v2188 = vpop.f32.mrb[0].mxu0
        %v2189 = vadd.f32 0.0, %v2188
        %v2190 = vpop.f32.mrb[0].mxu0
        %2191 = vdwg.mxu0
        %2194 = vrot.lane.b32.xlu0 %v1881, 96
        %v2195 = vpop.permute.xlu0 %2194
        %2196 = vrot.lane.b32.xlu0 %v1882, 96
        %v2197 = vpop.permute.xlu0 %2196
        %v2201 = vsel %vm1538, %v2127, 0
        %v2204 = vsel %vm1538, %v2128, 0
        %2206 = vmatprep.subr.bf16.mxu0 0
        %2207 = vmatpush1.bf16.msra.mxu0 %v2195
        %2208 = vmatprep.subr.bf16.mxu0 0
        %2209 = vmatpush1.bf16.msra.mxu0 %v2197
        %2210 = vmatprep.subr.bf16.mxu0 0
        %2211 = vmatpush1.bf16.msra.mxu0 0
        %2212 = vmatprep.subr.bf16.mxu0 0
        %2213 = vmatpush1.bf16.msra.mxu0 0
        %2214 = vmatprep.subr.bf16.mxu0 0
        %2215 = vmatpush1.bf16.msra.mxu0 0
        %2216 = vmatprep.subr.bf16.mxu0 0
        %2217 = vmatpush1.bf16.msra.mxu0 0
        %2218 = vmatprep.subr.bf16.mxu0 0
        %2219 = vmatpush1.bf16.msra.mxu0 0
        %2220 = vmatprep.subr.bf16.mxu0 0
        %2221 = vmatpush1.bf16.msra.mxu0 0
        %2222 = vmatprep.subr.bf16.mxu0 0
        %2223 = vmatpush1.bf16.msra.mxu0 0
        %2224 = vmatprep.subr.bf16.mxu0 0
        %2225 = vmatpush1.bf16.msra.mxu0 0
        %2226 = vmatprep.subr.bf16.mxu0 0
        %2227 = vmatpush1.bf16.msra.mxu0 0
        %2228 = vmatprep.subr.bf16.mxu0 0
        %2229 = vmatpush1.bf16.msra.mxu0 0
        %2230 = vmatprep.subr.bf16.mxu0 0
        %2231 = vmatpush1.bf16.msra.mxu0 0
        %2232 = vmatprep.subr.bf16.mxu0 0
        %2233 = vmatpush1.bf16.msra.mxu0 0
        %2234 = vmatprep.subr.bf16.mxu0 0
        %2235 = vmatpush1.bf16.msra.mxu0 0
        %2236 = vmatprep.subr.bf16.mxu0 0
        %2237 = vmatpush1.bf16.msra.mxu0 0
        %2238 = vmatprep.mubr.bf16.mxu0 0
        %2239 = vmatmul.mubr.bf16.gmra.mrb[0].mxu0 %v2201
        %v2240 = vpop.f32.mrb[0].mxu0
        %v2241 = vadd.f32 0.0, %v2240
        %v2242 = vpop.f32.mrb[0].mxu0
        %v2243 = vpop.f32.mrb[0].mxu0
        %v2244 = vadd.f32 0.0, %v2243
        %v2245 = vpop.f32.mrb[0].mxu0
        %2246 = vmatprep.mubr.bf16.mxu0 0
        %2247 = vmatmul.mubr.bf16.gmra.mrb[0].mxu0 %v2204
        %v2248 = vpop.f32.mrb[0].mxu0
        %v2249 = vadd.f32 0.0, %v2248
        %v2250 = vpop.f32.mrb[0].mxu0
        %v2251 = vpop.f32.mrb[0].mxu0
        %v2252 = vadd.f32 0.0, %v2251
        %v2253 = vpop.f32.mrb[0].mxu0
        %2254 = vdwg.mxu0
        %v2255 = vpack.c.bf16 %v2181, %v2178
        %v2256 = vpack.c.bf16 %v2189, %v2186
        %v2257 = vpack.c.bf16 %v2244, %v2241
        %v2258 = vpack.c.bf16 %v2252, %v2249
        %2263 = vrot.lane.b32.xlu0 %v2255, 32
        %v2264 = vpop.permute.xlu0 %2263
        %2265 = vrot.lane.b32.xlu0 %v2256, 32
        %v2266 = vpop.permute.xlu0 %2265
        %2267 = vrot.lane.b32.xlu0 %v2257, 32
        %v2268 = vpop.permute.xlu0 %2267
        %2269 = vrot.lane.b32.xlu0 %v2258, 32
        %v2270 = vpop.permute.xlu0 %2269
        %vm2275 = vcmask 523520
        %2276 = vst.msk [vmem:[#allocation4] sm:$0xff] %vm2275, %v2264
        %2277 = vst.msk [vmem:[#allocation4 + $0x8] sm:$0xff] %vm2275, %v2266
        %2278 = vst.msk [vmem:[#allocation4 + $0x10] sm:$0xff] %vm2275, %v2268
        %2279 = vst.msk [vmem:[#allocation4 + $0x18] sm:$0xff] %vm2275, %v2270
        %v2280 = vld [vmem:[#allocation3] sm:$0xff]
        %v2281 = vld [vmem:[#allocation3 + $0x18] sm:$0xff]
        %v2282 = vld [vmem:[#allocation3 + $0x30] sm:$0xff]
        %v2283 = vld [vmem:[#allocation3 + $0x48] sm:$0xff]
        %v2284 = vld [vmem:[#allocation3 + $0x8] sm:$0xff]
        %v2285 = vld [vmem:[#allocation3 + $0x20] sm:$0xff]
        %v2286 = vld [vmem:[#allocation3 + $0x38] sm:$0xff]
        %v2287 = vld [vmem:[#allocation3 + $0x50] sm:$0xff]
        %v2288 = vld [vmem:[#allocation3 + $0x10] sm:$0xff]
        %v2289 = vld [vmem:[#allocation3 + $0x28] sm:$0xff]
        %v2290 = vld [vmem:[#allocation3 + $0x40] sm:$0xff]
        %v2291 = vld [vmem:[#allocation3 + $0x58] sm:$0xff]
        %v2292 = vld [vmem:[%s816] sm:$0xf]
        %v2293 = vld [vmem:[%s816 + $0x4] sm:$0xf]
        %v2294 = vld [vmem:[%s816 + $0x8] sm:$0xf]
        %v2295 = vld [vmem:[%s816 + $0xc] sm:$0xf]
        %v2296 = vunpack.c.l.bf16 %v2292
        %v2297 = vunpack.c.l.bf16 %v2293
        %v2298 = vunpack.c.l.bf16 %v2294
        %v2299 = vunpack.c.l.bf16 %v2295
        %2302 = vrot.lane.b32.xlu0 %v2280, 64
        %v2303 = vpop.permute.xlu0 %2302
        %2304 = vrot.lane.b32.xlu0 %v2281, 64
        %v2305 = vpop.permute.xlu0 %2304
        %2308 = vrot.lane.b32.xlu0 %v2284, 64
        %v2309 = vpop.permute.xlu0 %2308
        %2310 = vrot.lane.b32.xlu0 %v2285, 64
        %v2311 = vpop.permute.xlu0 %2310
        %v2313 = vsel %vm1538, %v2303, 0
        %v2316 = vsel %vm1538, %v2305, 0
        %v2319 = vsel %vm1538, %v2309, 0
        %v2322 = vsel %vm1538, %v2311, 0
        %2324 = vmatprep.subr.bf16.mxu0 0
        %2325 = vmatpush1.bf16.xpose.msra.mxu0 %v2319
        %2326 = vmatprep.subr.bf16.mxu0 0
        %2327 = vmatpush1.bf16.xpose.msra.mxu0 %v2322
        %2328 = vmatprep.subr.bf16.mxu0 0
        %2329 = vmatpush1.bf16.xpose.msra.mxu0 0
        %2330 = vmatprep.subr.bf16.mxu0 0
        %2331 = vmatpush1.bf16.xpose.msra.mxu0 0
        %2332 = vmatprep.subr.bf16.mxu0 0
        %2333 = vmatpush1.bf16.xpose.msra.mxu0 0
        %2334 = vmatprep.subr.bf16.mxu0 0
        %2335 = vmatpush1.bf16.xpose.msra.mxu0 0
        %2336 = vmatprep.subr.bf16.mxu0 0
        %2337 = vmatpush1.bf16.xpose.msra.mxu0 0
        %2338 = vmatprep.subr.bf16.mxu0 0
        %2339 = vmatpush1.bf16.xpose.msra.mxu0 0
        %2340 = vmatprep.subr.bf16.mxu0 0
        %2341 = vmatpush1.bf16.xpose.msra.mxu0 0
        %2342 = vmatprep.subr.bf16.mxu0 0
        %2343 = vmatpush1.bf16.xpose.msra.mxu0 0
        %2344 = vmatprep.subr.bf16.mxu0 0
        %2345 = vmatpush1.bf16.xpose.msra.mxu0 0
        %2346 = vmatprep.subr.bf16.mxu0 0
        %2347 = vmatpush1.bf16.xpose.msra.mxu0 0
        %2348 = vmatprep.subr.bf16.mxu0 0
        %2349 = vmatpush1.bf16.xpose.msra.mxu0 0
        %2350 = vmatprep.subr.bf16.mxu0 0
        %2351 = vmatpush1.bf16.xpose.msra.mxu0 0
        %2352 = vmatprep.subr.bf16.mxu0 0
        %2353 = vmatpush1.bf16.xpose.msra.mxu0 0
        %2354 = vmatprep.subr.bf16.mxu0 0
        %2355 = vmatpush1.bf16.xpose.msra.mxu0 0
        %2356 = vmatprep.mubr.bf16.mxu0 0
        %2357 = vmatmul.mubr.bf16.gmra.mrb[0].mxu0 %v2313
        %v2358 = vpop.f32.mrb[0].mxu0
        %v2359 = vadd.f32 %v2296, %v2358
        %v2360 = vpop.f32.mrb[0].mxu0
        %v2361 = vpop.f32.mrb[0].mxu0
        %v2362 = vadd.f32 %v2297, %v2361
        %v2363 = vpop.f32.mrb[0].mxu0
        %2364 = vmatprep.mubr.bf16.mxu0 0
        %2365 = vmatmul.mubr.bf16.gmra.mrb[0].mxu0 %v2316
        %v2366 = vpop.f32.mrb[0].mxu0
        %v2367 = vadd.f32 %v2298, %v2366
        %v2368 = vpop.f32.mrb[0].mxu0
        %v2369 = vpop.f32.mrb[0].mxu0
        %v2370 = vadd.f32 %v2299, %v2369
        %v2371 = vpop.f32.mrb[0].mxu0
        %2372 = vdwg.mxu0
        %2375 = vrot.lane.b32.xlu0 %v2282, 64
        %v2376 = vpop.permute.xlu0 %2375
        %2377 = vrot.lane.b32.xlu0 %v2283, 64
        %v2378 = vpop.permute.xlu0 %2377
        %2381 = vrot.lane.b32.xlu0 %v2286, 64
        %v2382 = vpop.permute.xlu0 %2381
        %2383 = vrot.lane.b32.xlu0 %v2287, 64
        %v2384 = vpop.permute.xlu0 %2383
        %v2386 = vsel %vm1538, %v2376, 0
        %v2389 = vsel %vm1538, %v2378, 0
        %v2392 = vsel %vm1538, %v2382, 0
        %v2395 = vsel %vm1538, %v2384, 0
        %2397 = vmatprep.subr.bf16.mxu0 0
        %2398 = vmatpush1.bf16.xpose.msra.mxu0 %v2392
        %2399 = vmatprep.subr.bf16.mxu0 0
        %2400 = vmatpush1.bf16.xpose.msra.mxu0 %v2395
        %2401 = vmatprep.subr.bf16.mxu0 0
        %2402 = vmatpush1.bf16.xpose.msra.mxu0 0
        %2403 = vmatprep.subr.bf16.mxu0 0
        %2404 = vmatpush1.bf16.xpose.msra.mxu0 0
        %2405 = vmatprep.subr.bf16.mxu0 0
        %2406 = vmatpush1.bf16.xpose.msra.mxu0 0
        %2407 = vmatprep.subr.bf16.mxu0 0
        %2408 = vmatpush1.bf16.xpose.msra.mxu0 0
        %2409 = vmatprep.subr.bf16.mxu0 0
        %2410 = vmatpush1.bf16.xpose.msra.mxu0 0
        %2411 = vmatprep.subr.bf16.mxu0 0
        %2412 = vmatpush1.bf16.xpose.msra.mxu0 0
        %2413 = vmatprep.subr.bf16.mxu0 0
        %2414 = vmatpush1.bf16.xpose.msra.mxu0 0
        %2415 = vmatprep.subr.bf16.mxu0 0
        %2416 = vmatpush1.bf16.xpose.msra.mxu0 0
        %2417 = vmatprep.subr.bf16.mxu0 0
        %2418 = vmatpush1.bf16.xpose.msra.mxu0 0
        %2419 = vmatprep.subr.bf16.mxu0 0
        %2420 = vmatpush1.bf16.xpose.msra.mxu0 0
        %2421 = vmatprep.subr.bf16.mxu0 0
        %2422 = vmatpush1.bf16.xpose.msra.mxu0 0
        %2423 = vmatprep.subr.bf16.mxu0 0
        %2424 = vmatpush1.bf16.xpose.msra.mxu0 0
        %2425 = vmatprep.subr.bf16.mxu0 0
        %2426 = vmatpush1.bf16.xpose.msra.mxu0 0
        %2427 = vmatprep.subr.bf16.mxu0 0
        %2428 = vmatpush1.bf16.xpose.msra.mxu0 0
        %2429 = vmatprep.mubr.bf16.mxu0 0
        %2430 = vmatmul.mubr.bf16.gmra.mrb[0].mxu0 %v2386
        %v2431 = vpop.f32.mrb[0].mxu0
        %v2432 = vadd.f32 %v2296, %v2431
        %v2433 = vpop.f32.mrb[0].mxu0
        %v2434 = vpop.f32.mrb[0].mxu0
        %v2435 = vadd.f32 %v2297, %v2434
        %v2436 = vpop.f32.mrb[0].mxu0
        %2437 = vmatprep.mubr.bf16.mxu0 0
        %2438 = vmatmul.mubr.bf16.gmra.mrb[0].mxu0 %v2389
        %v2439 = vpop.f32.mrb[0].mxu0
        %v2440 = vadd.f32 %v2298, %v2439
        %v2441 = vpop.f32.mrb[0].mxu0
        %v2442 = vpop.f32.mrb[0].mxu0
        %v2443 = vadd.f32 %v2299, %v2442
        %v2444 = vpop.f32.mrb[0].mxu0
        %2445 = vdwg.mxu0
        %v2446 = vsel %vm1538, %v2359, -inf
        %2447 = vmax.xlane.f32.xlu0 %v2446
        %v2448 = vpop.xlane.xlu0 %2447
        %v2449 = vsel %vm1538, %v2362, -inf
        %2450 = vmax.xlane.f32.xlu0 %v2449
        %v2451 = vpop.xlane.xlu0 %2450
        %v2452 = vsel %vm1538, %v2367, -inf
        %2453 = vmax.xlane.f32.xlu0 %v2452
        %v2454 = vpop.xlane.xlu0 %2453
        %v2455 = vsel %vm1538, %v2370, -inf
        %2456 = vmax.xlane.f32.xlu0 %v2455
        %v2457 = vpop.xlane.xlu0 %2456
        %v2458 = vsel %vm1538, %v2432, -inf
        %2459 = vmax.xlane.f32.xlu0 %v2458
        %v2460 = vpop.xlane.xlu0 %2459
        %v2461 = vsel %vm1538, %v2435, -inf
        %2462 = vmax.xlane.f32.xlu0 %v2461
        %v2463 = vpop.xlane.xlu0 %2462
        %v2464 = vsel %vm1538, %v2440, -inf
        %2465 = vmax.xlane.f32.xlu0 %v2464
        %v2466 = vpop.xlane.xlu0 %2465
        %v2467 = vsel %vm1538, %v2443, -inf
        %2468 = vmax.xlane.f32.xlu0 %v2467
        %v2469 = vpop.xlane.xlu0 %2468
        %v2470 = vsub.f32 %v2359, %v2448
        %v2471 = vsub.f32 %v2362, %v2451
        %v2472 = vsub.f32 %v2367, %v2454
        %v2473 = vsub.f32 %v2370, %v2457
        %v2474 = vsub.f32 %v2432, %v2460
        %v2475 = vsub.f32 %v2435, %v2463
        %v2476 = vsub.f32 %v2440, %v2466
        %v2477 = vsub.f32 %v2443, %v2469
        %v2478 = vmul.f32 %v2470, 1.442695
        %v2479 = vpow.pop %v2478
        %v2480 = vmul.f32 %v2471, 1.442695
        %v2481 = vpow.pop %v2480
        %v2482 = vmul.f32 %v2472, 1.442695
        %v2483 = vpow.pop %v2482
        %v2484 = vmul.f32 %v2473, 1.442695
        %v2485 = vpow.pop %v2484
        %v2486 = vmul.f32 %v2474, 1.442695
        %v2487 = vpow.pop %v2486
        %v2488 = vmul.f32 %v2475, 1.442695
        %v2489 = vpow.pop %v2488
        %v2490 = vmul.f32 %v2476, 1.442695
        %v2491 = vpow.pop %v2490
        %v2492 = vmul.f32 %v2477, 1.442695
        %v2493 = vpow.pop %v2492
        %v2494 = vsel %vm1538, %v2479, 0.0
        %2495 = vadd.xlane.f32.xlu0 %v2494
        %v2496 = vpop.xlane.xlu0 %2495
        %v2497 = vsel %vm1538, %v2481, 0.0
        %2498 = vadd.xlane.f32.xlu0 %v2497
        %v2499 = vpop.xlane.xlu0 %2498
        %v2500 = vsel %vm1538, %v2483, 0.0
        %2501 = vadd.xlane.f32.xlu0 %v2500
        %v2502 = vpop.xlane.xlu0 %2501
        %v2503 = vsel %vm1538, %v2485, 0.0
        %2504 = vadd.xlane.f32.xlu0 %v2503
        %v2505 = vpop.xlane.xlu0 %2504
        %v2506 = vsel %vm1538, %v2487, 0.0
        %2507 = vadd.xlane.f32.xlu0 %v2506
        %v2508 = vpop.xlane.xlu0 %2507
        %v2509 = vsel %vm1538, %v2489, 0.0
        %2510 = vadd.xlane.f32.xlu0 %v2509
        %v2511 = vpop.xlane.xlu0 %2510
        %v2512 = vsel %vm1538, %v2491, 0.0
        %2513 = vadd.xlane.f32.xlu0 %v2512
        %v2514 = vpop.xlane.xlu0 %2513
        %v2515 = vsel %vm1538, %v2493, 0.0
        %2516 = vadd.xlane.f32.xlu0 %v2515
        %v2517 = vpop.xlane.xlu0 %2516
        %v2518 = vrcp.pop %v2496
        %v2519 = vrcp.pop %v2499
        %v2520 = vrcp.pop %v2502
        %v2521 = vrcp.pop %v2505
        %v2522 = vrcp.pop %v2508
        %v2523 = vrcp.pop %v2511
        %v2524 = vrcp.pop %v2514
        %v2525 = vrcp.pop %v2517
        %v2526 = vmul.f32 %v2479, %v2518
        %v2527 = vmul.f32 %v2481, %v2519
        %v2528 = vmul.f32 %v2483, %v2520
        %v2529 = vmul.f32 %v2485, %v2521
        %v2530 = vmul.f32 %v2487, %v2522
        %v2531 = vmul.f32 %v2489, %v2523
        %v2532 = vmul.f32 %v2491, %v2524
        %v2533 = vmul.f32 %v2493, %v2525
        %v2534 = vpack.c.bf16 %v2527, %v2526
        %v2535 = vpack.c.bf16 %v2529, %v2528
        %v2536 = vpack.c.bf16 %v2531, %v2530
        %v2537 = vpack.c.bf16 %v2533, %v2532
        %2540 = vrot.lane.b32.xlu0 %v2288, 64
        %v2541 = vpop.permute.xlu0 %2540
        %2542 = vrot.lane.b32.xlu0 %v2289, 64
        %v2543 = vpop.permute.xlu0 %2542
        %v2547 = vsel %vm1538, %v2534, 0
        %v2550 = vsel %vm1538, %v2535, 0
        %2552 = vmatprep.subr.bf16.mxu0 0
        %2553 = vmatpush1.bf16.msra.mxu0 %v2541
        %2554 = vmatprep.subr.bf16.mxu0 0
        %2555 = vmatpush1.bf16.msra.mxu0 %v2543
        %2556 = vmatprep.subr.bf16.mxu0 0
        %2557 = vmatpush1.bf16.msra.mxu0 0
        %2558 = vmatprep.subr.bf16.mxu0 0
        %2559 = vmatpush1.bf16.msra.mxu0 0
        %2560 = vmatprep.subr.bf16.mxu0 0
        %2561 = vmatpush1.bf16.msra.mxu0 0
        %2562 = vmatprep.subr.bf16.mxu0 0
        %2563 = vmatpush1.bf16.msra.mxu0 0
        %2564 = vmatprep.subr.bf16.mxu0 0
        %2565 = vmatpush1.bf16.msra.mxu0 0
        %2566 = vmatprep.subr.bf16.mxu0 0
        %2567 = vmatpush1.bf16.msra.mxu0 0
        %2568 = vmatprep.subr.bf16.mxu0 0
        %2569 = vmatpush1.bf16.msra.mxu0 0
        %2570 = vmatprep.subr.bf16.mxu0 0
        %2571 = vmatpush1.bf16.msra.mxu0 0
        %2572 = vmatprep.subr.bf16.mxu0 0
        %2573 = vmatpush1.bf16.msra.mxu0 0
        %2574 = vmatprep.subr.bf16.mxu0 0
        %2575 = vmatpush1.bf16.msra.mxu0 0
        %2576 = vmatprep.subr.bf16.mxu0 0
        %2577 = vmatpush1.bf16.msra.mxu0 0
        %2578 = vmatprep.subr.bf16.mxu0 0
        %2579 = vmatpush1.bf16.msra.mxu0 0
        %2580 = vmatprep.subr.bf16.mxu0 0
        %2581 = vmatpush1.bf16.msra.mxu0 0
        %2582 = vmatprep.subr.bf16.mxu0 0
        %2583 = vmatpush1.bf16.msra.mxu0 0
        %2584 = vmatprep.mubr.bf16.mxu0 0
        %2585 = vmatmul.mubr.bf16.gmra.mrb[0].mxu0 %v2547
        %v2586 = vpop.f32.mrb[0].mxu0
        %v2587 = vadd.f32 0.0, %v2586
        %v2588 = vpop.f32.mrb[0].mxu0
        %v2589 = vpop.f32.mrb[0].mxu0
        %v2590 = vadd.f32 0.0, %v2589
        %v2591 = vpop.f32.mrb[0].mxu0
        %2592 = vmatprep.mubr.bf16.mxu0 0
        %2593 = vmatmul.mubr.bf16.gmra.mrb[0].mxu0 %v2550
        %v2594 = vpop.f32.mrb[0].mxu0
        %v2595 = vadd.f32 0.0, %v2594
        %v2596 = vpop.f32.mrb[0].mxu0
        %v2597 = vpop.f32.mrb[0].mxu0
        %v2598 = vadd.f32 0.0, %v2597
        %v2599 = vpop.f32.mrb[0].mxu0
        %2600 = vdwg.mxu0
        %2603 = vrot.lane.b32.xlu0 %v2290, 64
        %v2604 = vpop.permute.xlu0 %2603
        %2605 = vrot.lane.b32.xlu0 %v2291, 64
        %v2606 = vpop.permute.xlu0 %2605
        %v2610 = vsel %vm1538, %v2536, 0
        %v2613 = vsel %vm1538, %v2537, 0
        %2615 = vmatprep.subr.bf16.mxu0 0
        %2616 = vmatpush1.bf16.msra.mxu0 %v2604
        %2617 = vmatprep.subr.bf16.mxu0 0
        %2618 = vmatpush1.bf16.msra.mxu0 %v2606
        %2619 = vmatprep.subr.bf16.mxu0 0
        %2620 = vmatpush1.bf16.msra.mxu0 0
        %2621 = vmatprep.subr.bf16.mxu0 0
        %2622 = vmatpush1.bf16.msra.mxu0 0
        %2623 = vmatprep.subr.bf16.mxu0 0
        %2624 = vmatpush1.bf16.msra.mxu0 0
        %2625 = vmatprep.subr.bf16.mxu0 0
        %2626 = vmatpush1.bf16.msra.mxu0 0
        %2627 = vmatprep.subr.bf16.mxu0 0
        %2628 = vmatpush1.bf16.msra.mxu0 0
        %2629 = vmatprep.subr.bf16.mxu0 0
        %2630 = vmatpush1.bf16.msra.mxu0 0
        %2631 = vmatprep.subr.bf16.mxu0 0
        %2632 = vmatpush1.bf16.msra.mxu0 0
        %2633 = vmatprep.subr.bf16.mxu0 0
        %2634 = vmatpush1.bf16.msra.mxu0 0
        %2635 = vmatprep.subr.bf16.mxu0 0
        %2636 = vmatpush1.bf16.msra.mxu0 0
        %2637 = vmatprep.subr.bf16.mxu0 0
        %2638 = vmatpush1.bf16.msra.mxu0 0
        %2639 = vmatprep.subr.bf16.mxu0 0
        %2640 = vmatpush1.bf16.msra.mxu0 0
        %2641 = vmatprep.subr.bf16.mxu0 0
        %2642 = vmatpush1.bf16.msra.mxu0 0
        %2643 = vmatprep.subr.bf16.mxu0 0
        %2644 = vmatpush1.bf16.msra.mxu0 0
        %2645 = vmatprep.subr.bf16.mxu0 0
        %2646 = vmatpush1.bf16.msra.mxu0 0
        %2647 = vmatprep.mubr.bf16.mxu0 0
        %2648 = vmatmul.mubr.bf16.gmra.mrb[0].mxu0 %v2610
        %v2649 = vpop.f32.mrb[0].mxu0
        %v2650 = vadd.f32 0.0, %v2649
        %v2651 = vpop.f32.mrb[0].mxu0
        %v2652 = vpop.f32.mrb[0].mxu0
        %v2653 = vadd.f32 0.0, %v2652
        %v2654 = vpop.f32.mrb[0].mxu0
        %2655 = vmatprep.mubr.bf16.mxu0 0
        %2656 = vmatmul.mubr.bf16.gmra.mrb[0].mxu0 %v2613
        %v2657 = vpop.f32.mrb[0].mxu0
        %v2658 = vadd.f32 0.0, %v2657
        %v2659 = vpop.f32.mrb[0].mxu0
        %v2660 = vpop.f32.mrb[0].mxu0
        %v2661 = vadd.f32 0.0, %v2660
        %v2662 = vpop.f32.mrb[0].mxu0
        %2663 = vdwg.mxu0
        %v2664 = vpack.c.bf16 %v2590, %v2587
        %v2665 = vpack.c.bf16 %v2598, %v2595
        %v2666 = vpack.c.bf16 %v2653, %v2650
        %v2667 = vpack.c.bf16 %v2661, %v2658
        %2672 = vrot.lane.b32.xlu0 %v2664, 64
        %v2673 = vpop.permute.xlu0 %2672
        %2674 = vrot.lane.b32.xlu0 %v2665, 64
        %v2675 = vpop.permute.xlu0 %2674
        %2676 = vrot.lane.b32.xlu0 %v2666, 64
        %v2677 = vpop.permute.xlu0 %2676
        %2678 = vrot.lane.b32.xlu0 %v2667, 64
        %v2679 = vpop.permute.xlu0 %2678
        %vm2684 = vcmask 785920
        %2685 = vst.msk [vmem:[#allocation4] sm:$0xff] %vm2684, %v2673
        %2686 = vst.msk [vmem:[#allocation4 + $0x8] sm:$0xff] %vm2684, %v2675
        %2687 = vst.msk [vmem:[#allocation4 + $0x10] sm:$0xff] %vm2684, %v2677
        %2688 = vst.msk [vmem:[#allocation4 + $0x18] sm:$0xff] %vm2684, %v2679
        %v2689 = vld [vmem:[#allocation3] sm:$0xff]
        %v2690 = vld [vmem:[#allocation3 + $0x18] sm:$0xff]
        %v2691 = vld [vmem:[#allocation3 + $0x30] sm:$0xff]
        %v2692 = vld [vmem:[#allocation3 + $0x48] sm:$0xff]
        %v2693 = vld [vmem:[#allocation3 + $0x8] sm:$0xff]
        %v2694 = vld [vmem:[#allocation3 + $0x20] sm:$0xff]
        %v2695 = vld [vmem:[#allocation3 + $0x38] sm:$0xff]
        %v2696 = vld [vmem:[#allocation3 + $0x50] sm:$0xff]
        %v2697 = vld [vmem:[#allocation3 + $0x10] sm:$0xff]
        %v2698 = vld [vmem:[#allocation3 + $0x28] sm:$0xff]
        %v2699 = vld [vmem:[#allocation3 + $0x40] sm:$0xff]
        %v2700 = vld [vmem:[#allocation3 + $0x58] sm:$0xff]
        %v2701 = vld [vmem:[%s816] sm:$0xf]
        %v2702 = vld [vmem:[%s816 + $0x4] sm:$0xf]
        %v2703 = vld [vmem:[%s816 + $0x8] sm:$0xf]
        %v2704 = vld [vmem:[%s816 + $0xc] sm:$0xf]
        %v2705 = vunpack.c.l.bf16 %v2701
        %v2706 = vunpack.c.l.bf16 %v2702
        %v2707 = vunpack.c.l.bf16 %v2703
        %v2708 = vunpack.c.l.bf16 %v2704
        %2711 = vrot.lane.b32.xlu0 %v2689, 32
        %v2712 = vpop.permute.xlu0 %2711
        %2713 = vrot.lane.b32.xlu0 %v2690, 32
        %v2714 = vpop.permute.xlu0 %2713
        %2717 = vrot.lane.b32.xlu0 %v2693, 32
        %v2718 = vpop.permute.xlu0 %2717
        %2719 = vrot.lane.b32.xlu0 %v2694, 32
        %v2720 = vpop.permute.xlu0 %2719
        %v2722 = vsel %vm1538, %v2712, 0
        %v2725 = vsel %vm1538, %v2714, 0
        %v2728 = vsel %vm1538, %v2718, 0
        %v2731 = vsel %vm1538, %v2720, 0
        %2733 = vmatprep.subr.bf16.mxu0 0
        %2734 = vmatpush1.bf16.xpose.msra.mxu0 %v2728
        %2735 = vmatprep.subr.bf16.mxu0 0
        %2736 = vmatpush1.bf16.xpose.msra.mxu0 %v2731
        %2737 = vmatprep.subr.bf16.mxu0 0
        %2738 = vmatpush1.bf16.xpose.msra.mxu0 0
        %2739 = vmatprep.subr.bf16.mxu0 0
        %2740 = vmatpush1.bf16.xpose.msra.mxu0 0
        %2741 = vmatprep.subr.bf16.mxu0 0
        %2742 = vmatpush1.bf16.xpose.msra.mxu0 0
        %2743 = vmatprep.subr.bf16.mxu0 0
        %2744 = vmatpush1.bf16.xpose.msra.mxu0 0
        %2745 = vmatprep.subr.bf16.mxu0 0
        %2746 = vmatpush1.bf16.xpose.msra.mxu0 0
        %2747 = vmatprep.subr.bf16.mxu0 0
        %2748 = vmatpush1.bf16.xpose.msra.mxu0 0
        %2749 = vmatprep.subr.bf16.mxu0 0
        %2750 = vmatpush1.bf16.xpose.msra.mxu0 0
        %2751 = vmatprep.subr.bf16.mxu0 0
        %2752 = vmatpush1.bf16.xpose.msra.mxu0 0
        %2753 = vmatprep.subr.bf16.mxu0 0
        %2754 = vmatpush1.bf16.xpose.msra.mxu0 0
        %2755 = vmatprep.subr.bf16.mxu0 0
        %2756 = vmatpush1.bf16.xpose.msra.mxu0 0
        %2757 = vmatprep.subr.bf16.mxu0 0
        %2758 = vmatpush1.bf16.xpose.msra.mxu0 0
        %2759 = vmatprep.subr.bf16.mxu0 0
        %2760 = vmatpush1.bf16.xpose.msra.mxu0 0
        %2761 = vmatprep.subr.bf16.mxu0 0
        %2762 = vmatpush1.bf16.xpose.msra.mxu0 0
        %2763 = vmatprep.subr.bf16.mxu0 0
        %2764 = vmatpush1.bf16.xpose.msra.mxu0 0
        %2765 = vmatprep.mubr.bf16.mxu0 0
        %2766 = vmatmul.mubr.bf16.gmra.mrb[0].mxu0 %v2722
        %v2767 = vpop.f32.mrb[0].mxu0
        %v2768 = vadd.f32 %v2705, %v2767
        %v2769 = vpop.f32.mrb[0].mxu0
        %v2770 = vpop.f32.mrb[0].mxu0
        %v2771 = vadd.f32 %v2706, %v2770
        %v2772 = vpop.f32.mrb[0].mxu0
        %2773 = vmatprep.mubr.bf16.mxu0 0
        %2774 = vmatmul.mubr.bf16.gmra.mrb[0].mxu0 %v2725
        %v2775 = vpop.f32.mrb[0].mxu0
        %v2776 = vadd.f32 %v2707, %v2775
        %v2777 = vpop.f32.mrb[0].mxu0
        %v2778 = vpop.f32.mrb[0].mxu0
        %v2779 = vadd.f32 %v2708, %v2778
        %v2780 = vpop.f32.mrb[0].mxu0
        %2781 = vdwg.mxu0
        %2784 = vrot.lane.b32.xlu0 %v2691, 32
        %v2785 = vpop.permute.xlu0 %2784
        %2786 = vrot.lane.b32.xlu0 %v2692, 32
        %v2787 = vpop.permute.xlu0 %2786
        %2790 = vrot.lane.b32.xlu0 %v2695, 32
        %v2791 = vpop.permute.xlu0 %2790
        %2792 = vrot.lane.b32.xlu0 %v2696, 32
        %v2793 = vpop.permute.xlu0 %2792
        %v2795 = vsel %vm1538, %v2785, 0
        %v2798 = vsel %vm1538, %v2787, 0
        %v2801 = vsel %vm1538, %v2791, 0
        %v2804 = vsel %vm1538, %v2793, 0
        %2806 = vmatprep.subr.bf16.mxu0 0
        %2807 = vmatpush1.bf16.xpose.msra.mxu0 %v2801
        %2808 = vmatprep.subr.bf16.mxu0 0
        %2809 = vmatpush1.bf16.xpose.msra.mxu0 %v2804
        %2810 = vmatprep.subr.bf16.mxu0 0
        %2811 = vmatpush1.bf16.xpose.msra.mxu0 0
        %2812 = vmatprep.subr.bf16.mxu0 0
        %2813 = vmatpush1.bf16.xpose.msra.mxu0 0
        %2814 = vmatprep.subr.bf16.mxu0 0
        %2815 = vmatpush1.bf16.xpose.msra.mxu0 0
        %2816 = vmatprep.subr.bf16.mxu0 0
        %2817 = vmatpush1.bf16.xpose.msra.mxu0 0
        %2818 = vmatprep.subr.bf16.mxu0 0
        %2819 = vmatpush1.bf16.xpose.msra.mxu0 0
        %2820 = vmatprep.subr.bf16.mxu0 0
        %2821 = vmatpush1.bf16.xpose.msra.mxu0 0
        %2822 = vmatprep.subr.bf16.mxu0 0
        %2823 = vmatpush1.bf16.xpose.msra.mxu0 0
        %2824 = vmatprep.subr.bf16.mxu0 0
        %2825 = vmatpush1.bf16.xpose.msra.mxu0 0
        %2826 = vmatprep.subr.bf16.mxu0 0
        %2827 = vmatpush1.bf16.xpose.msra.mxu0 0
        %2828 = vmatprep.subr.bf16.mxu0 0
        %2829 = vmatpush1.bf16.xpose.msra.mxu0 0
        %2830 = vmatprep.subr.bf16.mxu0 0
        %2831 = vmatpush1.bf16.xpose.msra.mxu0 0
        %2832 = vmatprep.subr.bf16.mxu0 0
        %2833 = vmatpush1.bf16.xpose.msra.mxu0 0
        %2834 = vmatprep.subr.bf16.mxu0 0
        %2835 = vmatpush1.bf16.xpose.msra.mxu0 0
        %2836 = vmatprep.subr.bf16.mxu0 0
        %2837 = vmatpush1.bf16.xpose.msra.mxu0 0
        %2838 = vmatprep.mubr.bf16.mxu0 0
        %2839 = vmatmul.mubr.bf16.gmra.mrb[0].mxu0 %v2795
        %v2840 = vpop.f32.mrb[0].mxu0
        %v2841 = vadd.f32 %v2705, %v2840
        %v2842 = vpop.f32.mrb[0].mxu0
        %v2843 = vpop.f32.mrb[0].mxu0
        %v2844 = vadd.f32 %v2706, %v2843
        %v2845 = vpop.f32.mrb[0].mxu0
        %2846 = vmatprep.mubr.bf16.mxu0 0
        %2847 = vmatmul.mubr.bf16.gmra.mrb[0].mxu0 %v2798
        %v2848 = vpop.f32.mrb[0].mxu0
        %v2849 = vadd.f32 %v2707, %v2848
        %v2850 = vpop.f32.mrb[0].mxu0
        %v2851 = vpop.f32.mrb[0].mxu0
        %v2852 = vadd.f32 %v2708, %v2851
        %v2853 = vpop.f32.mrb[0].mxu0
        %2854 = vdwg.mxu0
        %v2855 = vsel %vm1538, %v2768, -inf
        %2856 = vmax.xlane.f32.xlu0 %v2855
        %v2857 = vpop.xlane.xlu0 %2856
        %v2858 = vsel %vm1538, %v2771, -inf
        %2859 = vmax.xlane.f32.xlu0 %v2858
        %v2860 = vpop.xlane.xlu0 %2859
        %v2861 = vsel %vm1538, %v2776, -inf
        %2862 = vmax.xlane.f32.xlu0 %v2861
        %v2863 = vpop.xlane.xlu0 %2862
        %v2864 = vsel %vm1538, %v2779, -inf
        %2865 = vmax.xlane.f32.xlu0 %v2864
        %v2866 = vpop.xlane.xlu0 %2865
        %v2867 = vsel %vm1538, %v2841, -inf
        %2868 = vmax.xlane.f32.xlu0 %v2867
        %v2869 = vpop.xlane.xlu0 %2868
        %v2870 = vsel %vm1538, %v2844, -inf
        %2871 = vmax.xlane.f32.xlu0 %v2870
        %v2872 = vpop.xlane.xlu0 %2871
        %v2873 = vsel %vm1538, %v2849, -inf
        %2874 = vmax.xlane.f32.xlu0 %v2873
        %v2875 = vpop.xlane.xlu0 %2874
        %v2876 = vsel %vm1538, %v2852, -inf
        %2877 = vmax.xlane.f32.xlu0 %v2876
        %v2878 = vpop.xlane.xlu0 %2877
        %v2879 = vsub.f32 %v2768, %v2857
        %v2880 = vsub.f32 %v2771, %v2860
        %v2881 = vsub.f32 %v2776, %v2863
        %v2882 = vsub.f32 %v2779, %v2866
        %v2883 = vsub.f32 %v2841, %v2869
        %v2884 = vsub.f32 %v2844, %v2872
        %v2885 = vsub.f32 %v2849, %v2875
        %v2886 = vsub.f32 %v2852, %v2878
        %v2887 = vmul.f32 %v2879, 1.442695
        %v2888 = vpow.pop %v2887
        %v2889 = vmul.f32 %v2880, 1.442695
        %v2890 = vpow.pop %v2889
        %v2891 = vmul.f32 %v2881, 1.442695
        %v2892 = vpow.pop %v2891
        %v2893 = vmul.f32 %v2882, 1.442695
        %v2894 = vpow.pop %v2893
        %v2895 = vmul.f32 %v2883, 1.442695
        %v2896 = vpow.pop %v2895
        %v2897 = vmul.f32 %v2884, 1.442695
        %v2898 = vpow.pop %v2897
        %v2899 = vmul.f32 %v2885, 1.442695
        %v2900 = vpow.pop %v2899
        %v2901 = vmul.f32 %v2886, 1.442695
        %v2902 = vpow.pop %v2901
        %v2903 = vsel %vm1538, %v2888, 0.0
        %2904 = vadd.xlane.f32.xlu0 %v2903
        %v2905 = vpop.xlane.xlu0 %2904
        %v2906 = vsel %vm1538, %v2890, 0.0
        %2907 = vadd.xlane.f32.xlu0 %v2906
        %v2908 = vpop.xlane.xlu0 %2907
        %v2909 = vsel %vm1538, %v2892, 0.0
        %2910 = vadd.xlane.f32.xlu0 %v2909
        %v2911 = vpop.xlane.xlu0 %2910
        %v2912 = vsel %vm1538, %v2894, 0.0
        %2913 = vadd.xlane.f32.xlu0 %v2912
        %v2914 = vpop.xlane.xlu0 %2913
        %v2915 = vsel %vm1538, %v2896, 0.0
        %2916 = vadd.xlane.f32.xlu0 %v2915
        %v2917 = vpop.xlane.xlu0 %2916
        %v2918 = vsel %vm1538, %v2898, 0.0
        %2919 = vadd.xlane.f32.xlu0 %v2918
        %v2920 = vpop.xlane.xlu0 %2919
        %v2921 = vsel %vm1538, %v2900, 0.0
        %2922 = vadd.xlane.f32.xlu0 %v2921
        %v2923 = vpop.xlane.xlu0 %2922
        %v2924 = vsel %vm1538, %v2902, 0.0
        %2925 = vadd.xlane.f32.xlu0 %v2924
        %v2926 = vpop.xlane.xlu0 %2925
        %v2927 = vrcp.pop %v2905
        %v2928 = vrcp.pop %v2908
        %v2929 = vrcp.pop %v2911
        %v2930 = vrcp.pop %v2914
        %v2931 = vrcp.pop %v2917
        %v2932 = vrcp.pop %v2920
        %v2933 = vrcp.pop %v2923
        %v2934 = vrcp.pop %v2926
        %v2935 = vmul.f32 %v2888, %v2927
        %v2936 = vmul.f32 %v2890, %v2928
        %v2937 = vmul.f32 %v2892, %v2929
        %v2938 = vmul.f32 %v2894, %v2930
        %v2939 = vmul.f32 %v2896, %v2931
        %v2940 = vmul.f32 %v2898, %v2932
        %v2941 = vmul.f32 %v2900, %v2933
        %v2942 = vmul.f32 %v2902, %v2934
        %v2943 = vpack.c.bf16 %v2936, %v2935
        %v2944 = vpack.c.bf16 %v2938, %v2937
        %v2945 = vpack.c.bf16 %v2940, %v2939
        %v2946 = vpack.c.bf16 %v2942, %v2941
        %2949 = vrot.lane.b32.xlu0 %v2697, 32
        %v2950 = vpop.permute.xlu0 %2949
        %2951 = vrot.lane.b32.xlu0 %v2698, 32
        %v2952 = vpop.permute.xlu0 %2951
        %v2956 = vsel %vm1538, %v2943, 0
        %v2959 = vsel %vm1538, %v2944, 0
        %2961 = vmatprep.subr.bf16.mxu0 0
        %2962 = vmatpush1.bf16.msra.mxu0 %v2950
        %2963 = vmatprep.subr.bf16.mxu0 0
        %2964 = vmatpush1.bf16.msra.mxu0 %v2952
        %2965 = vmatprep.subr.bf16.mxu0 0
        %2966 = vmatpush1.bf16.msra.mxu0 0
        %2967 = vmatprep.subr.bf16.mxu0 0
        %2968 = vmatpush1.bf16.msra.mxu0 0
        %2969 = vmatprep.subr.bf16.mxu0 0
        %2970 = vmatpush1.bf16.msra.mxu0 0
        %2971 = vmatprep.subr.bf16.mxu0 0
        %2972 = vmatpush1.bf16.msra.mxu0 0
        %2973 = vmatprep.subr.bf16.mxu0 0
        %2974 = vmatpush1.bf16.msra.mxu0 0
        %2975 = vmatprep.subr.bf16.mxu0 0
        %2976 = vmatpush1.bf16.msra.mxu0 0
        %2977 = vmatprep.subr.bf16.mxu0 0
        %2978 = vmatpush1.bf16.msra.mxu0 0
        %2979 = vmatprep.subr.bf16.mxu0 0
        %2980 = vmatpush1.bf16.msra.mxu0 0
        %2981 = vmatprep.subr.bf16.mxu0 0
        %2982 = vmatpush1.bf16.msra.mxu0 0
        %2983 = vmatprep.subr.bf16.mxu0 0
        %2984 = vmatpush1.bf16.msra.mxu0 0
        %2985 = vmatprep.subr.bf16.mxu0 0
        %2986 = vmatpush1.bf16.msra.mxu0 0
        %2987 = vmatprep.subr.bf16.mxu0 0
        %2988 = vmatpush1.bf16.msra.mxu0 0
        %2989 = vmatprep.subr.bf16.mxu0 0
        %2990 = vmatpush1.bf16.msra.mxu0 0
        %2991 = vmatprep.subr.bf16.mxu0 0
        %2992 = vmatpush1.bf16.msra.mxu0 0
        %2993 = vmatprep.mubr.bf16.mxu0 0
        %2994 = vmatmul.mubr.bf16.gmra.mrb[0].mxu0 %v2956
        %v2995 = vpop.f32.mrb[0].mxu0
        %v2996 = vadd.f32 0.0, %v2995
        %v2997 = vpop.f32.mrb[0].mxu0
        %v2998 = vpop.f32.mrb[0].mxu0
        %v2999 = vadd.f32 0.0, %v2998
        %v3000 = vpop.f32.mrb[0].mxu0
        %3001 = vmatprep.mubr.bf16.mxu0 0
        %3002 = vmatmul.mubr.bf16.gmra.mrb[0].mxu0 %v2959
        %v3003 = vpop.f32.mrb[0].mxu0
        %v3004 = vadd.f32 0.0, %v3003
        %v3005 = vpop.f32.mrb[0].mxu0
        %v3006 = vpop.f32.mrb[0].mxu0
        %v3007 = vadd.f32 0.0, %v3006
        %v3008 = vpop.f32.mrb[0].mxu0
        %3009 = vdwg.mxu0
        %3012 = vrot.lane.b32.xlu0 %v2699, 32
        %v3013 = vpop.permute.xlu0 %3012
        %3014 = vrot.lane.b32.xlu0 %v2700, 32
        %v3015 = vpop.permute.xlu0 %3014
        %v3019 = vsel %vm1538, %v2945, 0
        %v3022 = vsel %vm1538, %v2946, 0
        %3024 = vmatprep.subr.bf16.mxu0 0
        %3025 = vmatpush1.bf16.msra.mxu0 %v3013
        %3026 = vmatprep.subr.bf16.mxu0 0
        %3027 = vmatpush1.bf16.msra.mxu0 %v3015
        %3028 = vmatprep.subr.bf16.mxu0 0
        %3029 = vmatpush1.bf16.msra.mxu0 0
        %3030 = vmatprep.subr.bf16.mxu0 0
        %3031 = vmatpush1.bf16.msra.mxu0 0
        %3032 = vmatprep.subr.bf16.mxu0 0
        %3033 = vmatpush1.bf16.msra.mxu0 0
        %3034 = vmatprep.subr.bf16.mxu0 0
        %3035 = vmatpush1.bf16.msra.mxu0 0
        %3036 = vmatprep.subr.bf16.mxu0 0
        %3037 = vmatpush1.bf16.msra.mxu0 0
        %3038 = vmatprep.subr.bf16.mxu0 0
        %3039 = vmatpush1.bf16.msra.mxu0 0
        %3040 = vmatprep.subr.bf16.mxu0 0
        %3041 = vmatpush1.bf16.msra.mxu0 0
        %3042 = vmatprep.subr.bf16.mxu0 0
        %3043 = vmatpush1.bf16.msra.mxu0 0
        %3044 = vmatprep.subr.bf16.mxu0 0
        %3045 = vmatpush1.bf16.msra.mxu0 0
        %3046 = vmatprep.subr.bf16.mxu0 0
        %3047 = vmatpush1.bf16.msra.mxu0 0
        %3048 = vmatprep.subr.bf16.mxu0 0
        %3049 = vmatpush1.bf16.msra.mxu0 0
        %3050 = vmatprep.subr.bf16.mxu0 0
        %3051 = vmatpush1.bf16.msra.mxu0 0
        %3052 = vmatprep.subr.bf16.mxu0 0
        %3053 = vmatpush1.bf16.msra.mxu0 0
        %3054 = vmatprep.subr.bf16.mxu0 0
        %3055 = vmatpush1.bf16.msra.mxu0 0
        %3056 = vmatprep.mubr.bf16.mxu0 0
        %3057 = vmatmul.mubr.bf16.gmra.mrb[0].mxu0 %v3019
        %v3058 = vpop.f32.mrb[0].mxu0
        %v3059 = vadd.f32 0.0, %v3058
        %v3060 = vpop.f32.mrb[0].mxu0
        %v3061 = vpop.f32.mrb[0].mxu0
        %v3062 = vadd.f32 0.0, %v3061
        %v3063 = vpop.f32.mrb[0].mxu0
        %3064 = vmatprep.mubr.bf16.mxu0 0
        %3065 = vmatmul.mubr.bf16.gmra.mrb[0].mxu0 %v3022
        %v3066 = vpop.f32.mrb[0].mxu0
        %v3067 = vadd.f32 0.0, %v3066
        %v3068 = vpop.f32.mrb[0].mxu0
        %v3069 = vpop.f32.mrb[0].mxu0
        %v3070 = vadd.f32 0.0, %v3069
        %v3071 = vpop.f32.mrb[0].mxu0
        %3072 = vdwg.mxu0
        %v3073 = vpack.c.bf16 %v2999, %v2996
        %v3074 = vpack.c.bf16 %v3007, %v3004
        %v3075 = vpack.c.bf16 %v3062, %v3059
        %v3076 = vpack.c.bf16 %v3070, %v3067
        %3081 = vrot.lane.b32.xlu0 %v3073, 96
        %v3082 = vpop.permute.xlu0 %3081
        %3083 = vrot.lane.b32.xlu0 %v3074, 96
        %v3084 = vpop.permute.xlu0 %3083
        %3085 = vrot.lane.b32.xlu0 %v3075, 96
        %v3086 = vpop.permute.xlu0 %3085
        %3087 = vrot.lane.b32.xlu0 %v3076, 96
        %v3088 = vpop.permute.xlu0 %3087
        %vm3093 = vcmask 1048320
        %3094 = vst.msk [vmem:[#allocation4] sm:$0xff] %vm3093, %v3082
        %3095 = vst.msk [vmem:[#allocation4 + $0x8] sm:$0xff] %vm3093, %v3084
        %3096 = vst.msk [vmem:[#allocation4 + $0x10] sm:$0xff] %vm3093, %v3086
        %3097 = vst.msk [vmem:[#allocation4 + $0x18] sm:$0xff] %vm3093, %v3088
        %v3098 = vld [vmem:[#allocation4] sm:$0xff]
        %v3099 = vld [vmem:[#allocation4 + $0x8] sm:$0xff]
        %v3100 = vld [vmem:[#allocation4 + $0x10] sm:$0xff]
        %v3101 = vld [vmem:[#allocation4 + $0x18] sm:$0xff]
        %v3102 = vld [vmem:[%s859] sm:$0xf]
        %v3103 = vld [vmem:[%s859 + $0x4] sm:$0xf]
        %v3104 = vld [vmem:[%s859 + $0x8] sm:$0xf]
        %v3105 = vld [vmem:[%s859 + $0xc] sm:$0xf]
        %v3106 = vld [vmem:[%s859 + $0x10] sm:$0xf]
        %v3107 = vld [vmem:[%s859 + $0x14] sm:$0xf]
        %v3108 = vld [vmem:[%s859 + $0x18] sm:$0xf]
        %v3109 = vld [vmem:[%s859 + $0x1c] sm:$0xf]
        %v3110 = vld [vmem:[%s859 + $0x20] sm:$0xf]
        %v3111 = vld [vmem:[%s859 + $0x24] sm:$0xf]
        %v3112 = vld [vmem:[%s859 + $0x28] sm:$0xf]
        %v3113 = vld [vmem:[%s859 + $0x2c] sm:$0xf]
        %v3114 = vld [vmem:[%s859 + $0x30] sm:$0xf]
        %v3115 = vld [vmem:[%s859 + $0x34] sm:$0xf]
        %v3116 = vld [vmem:[%s859 + $0x38] sm:$0xf]
        %v3117 = vld [vmem:[%s859 + $0x3c] sm:$0xf]
        %v3118 = vld [vmem:[%s867] sm:$0x1]
        %v3120 = vlaneseq
        %v3121 = vshrl.u32 %v3120, 7
        %v3122 = vsub.s32 0, %v3121
        %v3123 = vrot.slane %v3118, %v3122
        %v3141 = vunpack.c.l.b16 %v3102
        %v3142 = vunpack.c.l.b16 %v3103
        %v3143 = vunpack.c.l.b16 %v3104
        %v3144 = vunpack.c.l.b16 %v3105
        %v3145 = vunpack.c.l.b16 %v3106
        %v3146 = vunpack.c.l.b16 %v3107
        %v3147 = vunpack.c.l.b16 %v3108
        %v3148 = vunpack.c.l.b16 %v3109
        %v3149 = vunpack.c.l.b16 %v3110
        %v3150 = vunpack.c.l.b16 %v3111
        %v3151 = vunpack.c.l.b16 %v3112
        %v3152 = vunpack.c.l.b16 %v3113
        %v3153 = vunpack.c.l.b16 %v3114
        %v3154 = vunpack.c.l.b16 %v3115
        %v3155 = vunpack.c.l.b16 %v3116
        %v3156 = vunpack.c.l.b16 %v3117
        %v3157 = vpack.c.b16 %v3142, %v3141
        %v3158 = vpack.c.b16 %v3144, %v3143
        %v3159 = vpack.c.b16 %v3146, %v3145
        %v3160 = vpack.c.b16 %v3148, %v3147
        %v3161 = vpack.c.b16 %v3150, %v3149
        %v3162 = vpack.c.b16 %v3152, %v3151
        %v3163 = vpack.c.b16 %v3154, %v3153
        %v3164 = vpack.c.b16 %v3156, %v3155
        %3173 = vmatprep.subr.bf16.mxu0 0
        %3174 = vmatpush1.bf16.msra.mxu0 %v3157
        %3175 = vmatprep.subr.bf16.mxu0 0
        %3176 = vmatpush1.bf16.msra.mxu0 %v3158
        %3177 = vmatprep.subr.bf16.mxu0 0
        %3178 = vmatpush1.bf16.msra.mxu0 %v3159
        %3179 = vmatprep.subr.bf16.mxu0 0
        %3180 = vmatpush1.bf16.msra.mxu0 %v3160
        %3181 = vmatprep.subr.bf16.mxu0 0
        %3182 = vmatpush1.bf16.msra.mxu0 %v3161
        %3183 = vmatprep.subr.bf16.mxu0 0
        %3184 = vmatpush1.bf16.msra.mxu0 %v3162
        %3185 = vmatprep.subr.bf16.mxu0 0
        %3186 = vmatpush1.bf16.msra.mxu0 %v3163
        %3187 = vmatprep.subr.bf16.mxu0 0
        %3188 = vmatpush1.bf16.msra.mxu0 %v3164
        %3189 = vmatprep.subr.bf16.mxu0 0
        %3190 = vmatpush1.bf16.msra.mxu0 0
        %3191 = vmatprep.subr.bf16.mxu0 0
        %3192 = vmatpush1.bf16.msra.mxu0 0
        %3193 = vmatprep.subr.bf16.mxu0 0
        %3194 = vmatpush1.bf16.msra.mxu0 0
        %3195 = vmatprep.subr.bf16.mxu0 0
        %3196 = vmatpush1.bf16.msra.mxu0 0
        %3197 = vmatprep.subr.bf16.mxu0 0
        %3198 = vmatpush1.bf16.msra.mxu0 0
        %3199 = vmatprep.subr.bf16.mxu0 0
        %3200 = vmatpush1.bf16.msra.mxu0 0
        %3201 = vmatprep.subr.bf16.mxu0 0
        %3202 = vmatpush1.bf16.msra.mxu0 0
        %3203 = vmatprep.subr.bf16.mxu0 0
        %3204 = vmatpush1.bf16.msra.mxu0 0
        %3205 = vmatprep.mubr.bf16.mxu0 0
        %3206 = vmatmul.mubr.bf16.gmra.mrb[0].mxu0 %v3098
        %v3207 = vpop.f32.mrb[0].mxu0
        %v3208 = vadd.f32 %v3123, %v3207
        %v3209 = vpop.f32.mrb[0].mxu0
        %v3210 = vpop.f32.mrb[0].mxu0
        %v3211 = vadd.f32 %v3123, %v3210
        %v3212 = vpop.f32.mrb[0].mxu0
        %3213 = vmatprep.mubr.bf16.mxu0 0
        %3214 = vmatmul.mubr.bf16.gmra.mrb[0].mxu0 %v3099
        %v3215 = vpop.f32.mrb[0].mxu0
        %v3216 = vadd.f32 %v3123, %v3215
        %v3217 = vpop.f32.mrb[0].mxu0
        %v3218 = vpop.f32.mrb[0].mxu0
        %v3219 = vadd.f32 %v3123, %v3218
        %v3220 = vpop.f32.mrb[0].mxu0
        %3221 = vmatprep.mubr.bf16.mxu0 0
        %3222 = vmatmul.mubr.bf16.gmra.mrb[0].mxu0 %v3100
        %v3223 = vpop.f32.mrb[0].mxu0
        %v3224 = vadd.f32 %v3123, %v3223
        %v3225 = vpop.f32.mrb[0].mxu0
        %v3226 = vpop.f32.mrb[0].mxu0
        %v3227 = vadd.f32 %v3123, %v3226
        %v3228 = vpop.f32.mrb[0].mxu0
        %3229 = vmatprep.mubr.bf16.mxu0 0
        %3230 = vmatmul.mubr.bf16.gmra.mrb[0].mxu0 %v3101
        %v3231 = vpop.f32.mrb[0].mxu0
        %v3232 = vadd.f32 %v3123, %v3231
        %v3233 = vpop.f32.mrb[0].mxu0
        %v3234 = vpop.f32.mrb[0].mxu0
        %v3235 = vadd.f32 %v3123, %v3234
        %v3236 = vpop.f32.mrb[0].mxu0
        %3237 = vdwg.mxu0
        %v3238 = vadd.f32 %v1048, %v3208
        %v3239 = vadd.f32 %v1049, %v3211
        %v3240 = vadd.f32 %v1050, %v3216
        %v3241 = vadd.f32 %v1051, %v3219
        %v3242 = vadd.f32 %v1052, %v3224
        %v3243 = vadd.f32 %v1053, %v3227
        %v3244 = vadd.f32 %v1054, %v3232
        %v3245 = vadd.f32 %v1055, %v3235
        %v3246 = vld [vmem:[%s875] sm:$0x1]
        %v3247 = vld [vmem:[%s883] sm:$0x1]
        %3248 = vadd.xlane.f32.xlu0 %v3238
        %v3249 = vpop.xlane.xlu0 %3248
        %3250 = vadd.xlane.f32.xlu0 %v3239
        %v3251 = vpop.xlane.xlu0 %3250
        %3252 = vadd.xlane.f32.xlu0 %v3240
        %v3253 = vpop.xlane.xlu0 %3252
        %3254 = vadd.xlane.f32.xlu0 %v3241
        %v3255 = vpop.xlane.xlu0 %3254
        %3256 = vadd.xlane.f32.xlu0 %v3242
        %v3257 = vpop.xlane.xlu0 %3256
        %3258 = vadd.xlane.f32.xlu0 %v3243
        %v3259 = vpop.xlane.xlu0 %3258
        %3260 = vadd.xlane.f32.xlu0 %v3244
        %v3261 = vpop.xlane.xlu0 %3260
        %3262 = vadd.xlane.f32.xlu0 %v3245
        %v3263 = vpop.xlane.xlu0 %3262
        %v3264 = vmul.f32 %v3249, %v1074
        %v3265 = vmul.f32 %v3251, %v1074
        %v3266 = vmul.f32 %v3253, %v1074
        %v3267 = vmul.f32 %v3255, %v1074
        %v3268 = vmul.f32 %v3257, %v1074
        %v3269 = vmul.f32 %v3259, %v1074
        %v3270 = vmul.f32 %v3261, %v1074
        %v3271 = vmul.f32 %v3263, %v1074
        %v3272 = vsub.f32 %v3238, %v3264
        %v3273 = vsub.f32 %v3239, %v3265
        %v3274 = vsub.f32 %v3240, %v3266
        %v3275 = vsub.f32 %v3241, %v3267
        %v3276 = vsub.f32 %v3242, %v3268
        %v3277 = vsub.f32 %v3243, %v3269
        %v3278 = vsub.f32 %v3244, %v3270
        %v3279 = vsub.f32 %v3245, %v3271
        %v3280 = vmul.f32 %v3272, %v3272
        %v3281 = vmul.f32 %v3273, %v3273
        %v3282 = vmul.f32 %v3274, %v3274
        %v3283 = vmul.f32 %v3275, %v3275
        %v3284 = vmul.f32 %v3276, %v3276
        %v3285 = vmul.f32 %v3277, %v3277
        %v3286 = vmul.f32 %v3278, %v3278
        %v3287 = vmul.f32 %v3279, %v3279
        %3288 = vadd.xlane.f32.xlu0 %v3280
        %v3289 = vpop.xlane.xlu0 %3288
        %3290 = vadd.xlane.f32.xlu0 %v3281
        %v3291 = vpop.xlane.xlu0 %3290
        %3292 = vadd.xlane.f32.xlu0 %v3282
        %v3293 = vpop.xlane.xlu0 %3292
        %3294 = vadd.xlane.f32.xlu0 %v3283
        %v3295 = vpop.xlane.xlu0 %3294
        %3296 = vadd.xlane.f32.xlu0 %v3284
        %v3297 = vpop.xlane.xlu0 %3296
        %3298 = vadd.xlane.f32.xlu0 %v3285
        %v3299 = vpop.xlane.xlu0 %3298
        %3300 = vadd.xlane.f32.xlu0 %v3286
        %v3301 = vpop.xlane.xlu0 %3300
        %3302 = vadd.xlane.f32.xlu0 %v3287
        %v3303 = vpop.xlane.xlu0 %3302
        %v3304 = vmul.f32 %v3289, %v1074
        %v3305 = vmul.f32 %v3291, %v1074
        %v3306 = vmul.f32 %v3293, %v1074
        %v3307 = vmul.f32 %v3295, %v1074
        %v3308 = vmul.f32 %v3297, %v1074
        %v3309 = vmul.f32 %v3299, %v1074
        %v3310 = vmul.f32 %v3301, %v1074
        %v3311 = vmul.f32 %v3303, %v1074
        %v3312 = vadd.f32 %v3304, 1e-05
        %v3313 = vadd.f32 %v3305, 1e-05
        %v3314 = vadd.f32 %v3306, 1e-05
        %v3315 = vadd.f32 %v3307, 1e-05
        %v3316 = vadd.f32 %v3308, 1e-05
        %v3317 = vadd.f32 %v3309, 1e-05
        %v3318 = vadd.f32 %v3310, 1e-05
        %v3319 = vadd.f32 %v3311, 1e-05
        %v3320 = vrsqrt.pop %v3312
        %v3321 = vrsqrt.pop %v3313
        %v3322 = vrsqrt.pop %v3314
        %v3323 = vrsqrt.pop %v3315
        %v3324 = vrsqrt.pop %v3316
        %v3325 = vrsqrt.pop %v3317
        %v3326 = vrsqrt.pop %v3318
        %v3327 = vrsqrt.pop %v3319
        %v3328 = vmul.f32 %v3272, %v3320
        %v3329 = vmul.f32 %v3273, %v3321
        %v3330 = vmul.f32 %v3274, %v3322
        %v3331 = vmul.f32 %v3275, %v3323
        %v3332 = vmul.f32 %v3276, %v3324
        %v3333 = vmul.f32 %v3277, %v3325
        %v3334 = vmul.f32 %v3278, %v3326
        %v3335 = vmul.f32 %v3279, %v3327
        %v3337 = vlaneseq
        %v3338 = vshrl.u32 %v3337, 7
        %v3339 = vsub.s32 0, %v3338
        %v3340 = vrot.slane %v3246, %v3339
        %v3342 = vmul.f32 %v3328, %v3340
        %v3343 = vmul.f32 %v3329, %v3340
        %v3344 = vmul.f32 %v3330, %v3340
        %v3345 = vmul.f32 %v3331, %v3340
        %v3346 = vmul.f32 %v3332, %v3340
        %v3347 = vmul.f32 %v3333, %v3340
        %v3348 = vmul.f32 %v3334, %v3340
        %v3349 = vmul.f32 %v3335, %v3340
        %v3351 = vlaneseq
        %v3352 = vshrl.u32 %v3351, 7
        %v3353 = vsub.s32 0, %v3352
        %v3354 = vrot.slane %v3247, %v3353
        %v3356 = vadd.f32 %v3342, %v3354
        %v3357 = vadd.f32 %v3343, %v3354
        %v3358 = vadd.f32 %v3344, %v3354
        %v3359 = vadd.f32 %v3345, %v3354
        %v3360 = vadd.f32 %v3346, %v3354
        %v3361 = vadd.f32 %v3347, %v3354
        %v3362 = vadd.f32 %v3348, %v3354
        %v3363 = vadd.f32 %v3349, %v3354
        %v3364 = vpack.c.bf16 %v3357, %v3356
        %v3365 = vpack.c.bf16 %v3359, %v3358
        %v3366 = vpack.c.bf16 %v3361, %v3360
        %v3367 = vpack.c.bf16 %v3363, %v3362
        %v3368 = vld [vmem:[%s892] sm:$0xff]
        %v3369 = vld [vmem:[%s892 + $0x8] sm:$0xff]
        %v3370 = vld [vmem:[%s892 + $0x10] sm:$0xff]
        %v3371 = vld [vmem:[%s892 + $0x18] sm:$0xff]
        %v3372 = vld [vmem:[%s892 + $0x20] sm:$0xff]
        %v3373 = vld [vmem:[%s892 + $0x28] sm:$0xff]
        %v3374 = vld [vmem:[%s892 + $0x30] sm:$0xff]
        %v3375 = vld [vmem:[%s892 + $0x38] sm:$0xff]
        %v3376 = vld [vmem:[%s892 + $0x40] sm:$0xff]
        %v3377 = vld [vmem:[%s892 + $0x48] sm:$0xff]
        %v3378 = vld [vmem:[%s892 + $0x50] sm:$0xff]
        %v3379 = vld [vmem:[%s892 + $0x58] sm:$0xff]
        %v3380 = vld [vmem:[%s892 + $0x60] sm:$0xff]
        %v3381 = vld [vmem:[%s892 + $0x68] sm:$0xff]
        %v3382 = vld [vmem:[%s892 + $0x70] sm:$0xff]
        %v3383 = vld [vmem:[%s892 + $0x78] sm:$0xff]
        %v3384 = vld [vmem:[%s892 + $0x80] sm:$0xff]
        %v3385 = vld [vmem:[%s892 + $0x88] sm:$0xff]
        %v3386 = vld [vmem:[%s892 + $0x90] sm:$0xff]
        %v3387 = vld [vmem:[%s892 + $0x98] sm:$0xff]
        %v3388 = vld [vmem:[%s892 + $0xa0] sm:$0xff]
        %v3389 = vld [vmem:[%s892 + $0xa8] sm:$0xff]
        %v3390 = vld [vmem:[%s892 + $0xb0] sm:$0xff]
        %v3391 = vld [vmem:[%s892 + $0xb8] sm:$0xff]
        %v3392 = vld [vmem:[%s892 + $0xc0] sm:$0xff]
        %v3393 = vld [vmem:[%s892 + $0xc8] sm:$0xff]
        %v3394 = vld [vmem:[%s892 + $0xd0] sm:$0xff]
        %v3395 = vld [vmem:[%s892 + $0xd8] sm:$0xff]
        %v3396 = vld [vmem:[%s892 + $0xe0] sm:$0xff]
        %v3397 = vld [vmem:[%s892 + $0xe8] sm:$0xff]
        %v3398 = vld [vmem:[%s892 + $0xf0] sm:$0xff]
        %v3399 = vld [vmem:[%s892 + $0xf8] sm:$0xff]
        %v3400 = vld [vmem:[%s901] sm:$0xf]
        %v3402 = vlaneseq
        %v3403 = vshrl.u32 %v3402, 7
        %v3404 = vsub.s32 0, %v3403
        %v3405 = vrot.slane %v3400, %v3404
        %v3406 = vlaneseq
        %v3407 = vshrl.u32 %v3406, 7
        %v3408 = vsub.s32 1, %v3407
        %v3409 = vrot.slane %v3400, %v3408
        %v3410 = vlaneseq
        %v3411 = vshrl.u32 %v3410, 7
        %v3412 = vsub.s32 2, %v3411
        %v3413 = vrot.slane %v3400, %v3412
        %v3414 = vlaneseq
        %v3415 = vshrl.u32 %v3414, 7
        %v3416 = vsub.s32 3, %v3415
        %v3417 = vrot.slane %v3400, %v3416
        %v3454 = vunpack.c.l.b16 %v3368
        %v3455 = vunpack.c.h.b16 %v3368
        %v3456 = vunpack.c.l.b16 %v3369
        %v3457 = vunpack.c.h.b16 %v3369
        %v3458 = vunpack.c.l.b16 %v3370
        %v3459 = vunpack.c.h.b16 %v3370
        %v3460 = vunpack.c.l.b16 %v3371
        %v3461 = vunpack.c.h.b16 %v3371
        %v3462 = vunpack.c.l.b16 %v3372
        %v3463 = vunpack.c.h.b16 %v3372
        %v3464 = vunpack.c.l.b16 %v3373
        %v3465 = vunpack.c.h.b16 %v3373
        %v3466 = vunpack.c.l.b16 %v3374
        %v3467 = vunpack.c.h.b16 %v3374
        %v3468 = vunpack.c.l.b16 %v3375
        %v3469 = vunpack.c.h.b16 %v3375
        %v3470 = vunpack.c.l.b16 %v3376
        %v3471 = vunpack.c.h.b16 %v3376
        %v3472 = vunpack.c.l.b16 %v3377
        %v3473 = vunpack.c.h.b16 %v3377
        %v3474 = vunpack.c.l.b16 %v3378
        %v3475 = vunpack.c.h.b16 %v3378
        %v3476 = vunpack.c.l.b16 %v3379
        %v3477 = vunpack.c.h.b16 %v3379
        %v3478 = vunpack.c.l.b16 %v3380
        %v3479 = vunpack.c.h.b16 %v3380
        %v3480 = vunpack.c.l.b16 %v3381
        %v3481 = vunpack.c.h.b16 %v3381
        %v3482 = vunpack.c.l.b16 %v3382
        %v3483 = vunpack.c.h.b16 %v3382
        %v3484 = vunpack.c.l.b16 %v3383
        %v3485 = vunpack.c.h.b16 %v3383
        %v3486 = vunpack.c.l.b16 %v3384
        %v3487 = vunpack.c.h.b16 %v3384
        %v3488 = vunpack.c.l.b16 %v3385
        %v3489 = vunpack.c.h.b16 %v3385
        %v3490 = vunpack.c.l.b16 %v3386
        %v3491 = vunpack.c.h.b16 %v3386
        %v3492 = vunpack.c.l.b16 %v3387
        %v3493 = vunpack.c.h.b16 %v3387
        %v3494 = vunpack.c.l.b16 %v3388
        %v3495 = vunpack.c.h.b16 %v3388
        %v3496 = vunpack.c.l.b16 %v3389
        %v3497 = vunpack.c.h.b16 %v3389
        %v3498 = vunpack.c.l.b16 %v3390
        %v3499 = vunpack.c.h.b16 %v3390
        %v3500 = vunpack.c.l.b16 %v3391
        %v3501 = vunpack.c.h.b16 %v3391
        %v3502 = vunpack.c.l.b16 %v3392
        %v3503 = vunpack.c.h.b16 %v3392
        %v3504 = vunpack.c.l.b16 %v3393
        %v3505 = vunpack.c.h.b16 %v3393
        %v3506 = vunpack.c.l.b16 %v3394
        %v3507 = vunpack.c.h.b16 %v3394
        %v3508 = vunpack.c.l.b16 %v3395
        %v3509 = vunpack.c.h.b16 %v3395
        %v3510 = vunpack.c.l.b16 %v3396
        %v3511 = vunpack.c.h.b16 %v3396
        %v3512 = vunpack.c.l.b16 %v3397
        %v3513 = vunpack.c.h.b16 %v3397
        %v3514 = vunpack.c.l.b16 %v3398
        %v3515 = vunpack.c.h.b16 %v3398
        %v3516 = vunpack.c.l.b16 %v3399
        %v3517 = vunpack.c.h.b16 %v3399
        %v3518 = vpack.c.b16 %v3458, %v3454
        %v3519 = vpack.c.b16 %v3459, %v3455
        %v3520 = vpack.c.b16 %v3460, %v3456
        %v3521 = vpack.c.b16 %v3461, %v3457
        %v3522 = vpack.c.b16 %v3466, %v3462
        %v3523 = vpack.c.b16 %v3467, %v3463
        %v3524 = vpack.c.b16 %v3468, %v3464
        %v3525 = vpack.c.b16 %v3469, %v3465
        %v3526 = vpack.c.b16 %v3474, %v3470
        %v3527 = vpack.c.b16 %v3475, %v3471
        %v3528 = vpack.c.b16 %v3476, %v3472
        %v3529 = vpack.c.b16 %v3477, %v3473
        %v3530 = vpack.c.b16 %v3482, %v3478
        %v3531 = vpack.c.b16 %v3483, %v3479
        %v3532 = vpack.c.b16 %v3484, %v3480
        %v3533 = vpack.c.b16 %v3485, %v3481
        %v3534 = vpack.c.b16 %v3490, %v3486
        %v3535 = vpack.c.b16 %v3491, %v3487
        %v3536 = vpack.c.b16 %v3492, %v3488
        %v3537 = vpack.c.b16 %v3493, %v3489
        %v3538 = vpack.c.b16 %v3498, %v3494
        %v3539 = vpack.c.b16 %v3499, %v3495
        %v3540 = vpack.c.b16 %v3500, %v3496
        %v3541 = vpack.c.b16 %v3501, %v3497
        %v3542 = vpack.c.b16 %v3506, %v3502
        %v3543 = vpack.c.b16 %v3507, %v3503
        %v3544 = vpack.c.b16 %v3508, %v3504
        %v3545 = vpack.c.b16 %v3509, %v3505
        %v3546 = vpack.c.b16 %v3514, %v3510
        %v3547 = vpack.c.b16 %v3515, %v3511
        %v3548 = vpack.c.b16 %v3516, %v3512
        %v3549 = vpack.c.b16 %v3517, %v3513
        %3582 = vmatprep.subr.bf16.mxu0 %v3519
        %3583 = vmatpush1.bf16.msra.mxu0 %v3518
        %3584 = vmatprep.subr.bf16.mxu0 %v3523
        %3585 = vmatpush1.bf16.msra.mxu0 %v3522
        %3586 = vmatprep.subr.bf16.mxu0 %v3527
        %3587 = vmatpush1.bf16.msra.mxu0 %v3526
        %3588 = vmatprep.subr.bf16.mxu0 %v3531
        %3589 = vmatpush1.bf16.msra.mxu0 %v3530
        %3590 = vmatprep.subr.bf16.mxu0 %v3535
        %3591 = vmatpush1.bf16.msra.mxu0 %v3534
        %3592 = vmatprep.subr.bf16.mxu0 %v3539
        %3593 = vmatpush1.bf16.msra.mxu0 %v3538
        %3594 = vmatprep.subr.bf16.mxu0 %v3543
        %3595 = vmatpush1.bf16.msra.mxu0 %v3542
        %3596 = vmatprep.subr.bf16.mxu0 %v3547
        %3597 = vmatpush1.bf16.msra.mxu0 %v3546
        %3598 = vmatprep.subr.bf16.mxu0 0
        %3599 = vmatpush1.bf16.msra.mxu0 0
        %3600 = vmatprep.subr.bf16.mxu0 0
        %3601 = vmatpush1.bf16.msra.mxu0 0
        %3602 = vmatprep.subr.bf16.mxu0 0
        %3603 = vmatpush1.bf16.msra.mxu0 0
        %3604 = vmatprep.subr.bf16.mxu0 0
        %3605 = vmatpush1.bf16.msra.mxu0 0
        %3606 = vmatprep.subr.bf16.mxu0 0
        %3607 = vmatpush1.bf16.msra.mxu0 0
        %3608 = vmatprep.subr.bf16.mxu0 0
        %3609 = vmatpush1.bf16.msra.mxu0 0
        %3610 = vmatprep.subr.bf16.mxu0 0
        %3611 = vmatpush1.bf16.msra.mxu0 0
        %3612 = vmatprep.subr.bf16.mxu0 0
        %3613 = vmatpush1.bf16.msra.mxu0 0
        %3614 = vmatprep.mubr.bf16.mxu0 0
        %3615 = vmatmul.mubr.bf16.gmra.mrb[0].mxu0 %v3364
        %v3616 = vpop.f32.mrb[0].mxu0
        %v3617 = vadd.f32 %v3405, %v3616
        %v3618 = vpop.f32.mrb[0].mxu0
        %v3619 = vadd.f32 %v3409, %v3618
        %v3620 = vpop.f32.mrb[0].mxu0
        %v3621 = vadd.f32 %v3405, %v3620
        %v3622 = vpop.f32.mrb[0].mxu0
        %v3623 = vadd.f32 %v3409, %v3622
        %3624 = vmatprep.mubr.bf16.mxu0 0
        %3625 = vmatmul.mubr.bf16.gmra.mrb[0].mxu0 %v3365
        %v3626 = vpop.f32.mrb[0].mxu0
        %v3627 = vadd.f32 %v3405, %v3626
        %v3628 = vpop.f32.mrb[0].mxu0
        %v3629 = vadd.f32 %v3409, %v3628
        %v3630 = vpop.f32.mrb[0].mxu0
        %v3631 = vadd.f32 %v3405, %v3630
        %v3632 = vpop.f32.mrb[0].mxu0
        %v3633 = vadd.f32 %v3409, %v3632
        %3634 = vmatprep.mubr.bf16.mxu0 0
        %3635 = vmatmul.mubr.bf16.gmra.mrb[0].mxu0 %v3366
        %v3636 = vpop.f32.mrb[0].mxu0
        %v3637 = vadd.f32 %v3405, %v3636
        %v3638 = vpop.f32.mrb[0].mxu0
        %v3639 = vadd.f32 %v3409, %v3638
        %v3640 = vpop.f32.mrb[0].mxu0
        %v3641 = vadd.f32 %v3405, %v3640
        %v3642 = vpop.f32.mrb[0].mxu0
        %v3643 = vadd.f32 %v3409, %v3642
        %3644 = vmatprep.mubr.bf16.mxu0 0
        %3645 = vmatmul.mubr.bf16.gmra.mrb[0].mxu0 %v3367
        %v3646 = vpop.f32.mrb[0].mxu0
        %v3647 = vadd.f32 %v3405, %v3646
        %v3648 = vpop.f32.mrb[0].mxu0
        %v3649 = vadd.f32 %v3409, %v3648
        %v3650 = vpop.f32.mrb[0].mxu0
        %v3651 = vadd.f32 %v3405, %v3650
        %v3652 = vpop.f32.mrb[0].mxu0
        %v3653 = vadd.f32 %v3409, %v3652
        %3654 = vdwg.mxu0
        %3655 = vmatprep.subr.bf16.mxu0 %v3521
        %3656 = vmatpush1.bf16.msra.mxu0 %v3520
        %3657 = vmatprep.subr.bf16.mxu0 %v3525
        %3658 = vmatpush1.bf16.msra.mxu0 %v3524
        %3659 = vmatprep.subr.bf16.mxu0 %v3529
        %3660 = vmatpush1.bf16.msra.mxu0 %v3528
        %3661 = vmatprep.subr.bf16.mxu0 %v3533
        %3662 = vmatpush1.bf16.msra.mxu0 %v3532
        %3663 = vmatprep.subr.bf16.mxu0 %v3537
        %3664 = vmatpush1.bf16.msra.mxu0 %v3536
        %3665 = vmatprep.subr.bf16.mxu0 %v3541
        %3666 = vmatpush1.bf16.msra.mxu0 %v3540
        %3667 = vmatprep.subr.bf16.mxu0 %v3545
        %3668 = vmatpush1.bf16.msra.mxu0 %v3544
        %3669 = vmatprep.subr.bf16.mxu0 %v3549
        %3670 = vmatpush1.bf16.msra.mxu0 %v3548
        %3671 = vmatprep.subr.bf16.mxu0 0
        %3672 = vmatpush1.bf16.msra.mxu0 0
        %3673 = vmatprep.subr.bf16.mxu0 0
        %3674 = vmatpush1.bf16.msra.mxu0 0
        %3675 = vmatprep.subr.bf16.mxu0 0
        %3676 = vmatpush1.bf16.msra.mxu0 0
        %3677 = vmatprep.subr.bf16.mxu0 0
        %3678 = vmatpush1.bf16.msra.mxu0 0
        %3679 = vmatprep.subr.bf16.mxu0 0
        %3680 = vmatpush1.bf16.msra.mxu0 0
        %3681 = vmatprep.subr.bf16.mxu0 0
        %3682 = vmatpush1.bf16.msra.mxu0 0
        %3683 = vmatprep.subr.bf16.mxu0 0
        %3684 = vmatpush1.bf16.msra.mxu0 0
        %3685 = vmatprep.subr.bf16.mxu0 0
        %3686 = vmatpush1.bf16.msra.mxu0 0
        %3687 = vmatprep.mubr.bf16.mxu0 0
        %3688 = vmatmul.mubr.bf16.gmra.mrb[0].mxu0 %v3364
        %v3689 = vpop.f32.mrb[0].mxu0
        %v3690 = vadd.f32 %v3413, %v3689
        %v3691 = vpop.f32.mrb[0].mxu0
        %v3692 = vadd.f32 %v3417, %v3691
        %v3693 = vpop.f32.mrb[0].mxu0
        %v3694 = vadd.f32 %v3413, %v3693
        %v3695 = vpop.f32.mrb[0].mxu0
        %v3696 = vadd.f32 %v3417, %v3695
        %3697 = vmatprep.mubr.bf16.mxu0 0
        %3698 = vmatmul.mubr.bf16.gmra.mrb[0].mxu0 %v3365
        %v3699 = vpop.f32.mrb[0].mxu0
        %v3700 = vadd.f32 %v3413, %v3699
        %v3701 = vpop.f32.mrb[0].mxu0
        %v3702 = vadd.f32 %v3417, %v3701
        %v3703 = vpop.f32.mrb[0].mxu0
        %v3704 = vadd.f32 %v3413, %v3703
        %v3705 = vpop.f32.mrb[0].mxu0
        %v3706 = vadd.f32 %v3417, %v3705
        %3707 = vmatprep.mubr.bf16.mxu0 0
        %3708 = vmatmul.mubr.bf16.gmra.mrb[0].mxu0 %v3366
        %v3709 = vpop.f32.mrb[0].mxu0
        %v3710 = vadd.f32 %v3413, %v3709
        %v3711 = vpop.f32.mrb[0].mxu0
        %v3712 = vadd.f32 %v3417, %v3711
        %v3713 = vpop.f32.mrb[0].mxu0
        %v3714 = vadd.f32 %v3413, %v3713
        %v3715 = vpop.f32.mrb[0].mxu0
        %v3716 = vadd.f32 %v3417, %v3715
        %3717 = vmatprep.mubr.bf16.mxu0 0
        %3718 = vmatmul.mubr.bf16.gmra.mrb[0].mxu0 %v3367
        %v3719 = vpop.f32.mrb[0].mxu0
        %v3720 = vadd.f32 %v3413, %v3719
        %v3721 = vpop.f32.mrb[0].mxu0
        %v3722 = vadd.f32 %v3417, %v3721
        %v3723 = vpop.f32.mrb[0].mxu0
        %v3724 = vadd.f32 %v3413, %v3723
        %v3725 = vpop.f32.mrb[0].mxu0
        %v3726 = vadd.f32 %v3417, %v3725
        %3727 = vdwg.mxu0
        %v3728 = vmul.f32 %v3617, 0.5
        %v3729 = vmul.f32 %v3619, 0.5
        %v3730 = vmul.f32 %v3690, 0.5
        %v3731 = vmul.f32 %v3692, 0.5
        %v3732 = vmul.f32 %v3621, 0.5
        %v3733 = vmul.f32 %v3623, 0.5
        %v3734 = vmul.f32 %v3694, 0.5
        %v3735 = vmul.f32 %v3696, 0.5
        %v3736 = vmul.f32 %v3627, 0.5
        %v3737 = vmul.f32 %v3629, 0.5
        %v3738 = vmul.f32 %v3700, 0.5
        %v3739 = vmul.f32 %v3702, 0.5
        %v3740 = vmul.f32 %v3631, 0.5
        %v3741 = vmul.f32 %v3633, 0.5
        %v3742 = vmul.f32 %v3704, 0.5
        %v3743 = vmul.f32 %v3706, 0.5
        %v3744 = vmul.f32 %v3637, 0.5
        %v3745 = vmul.f32 %v3639, 0.5
        %v3746 = vmul.f32 %v3710, 0.5
        %v3747 = vmul.f32 %v3712, 0.5
        %v3748 = vmul.f32 %v3641, 0.5
        %v3749 = vmul.f32 %v3643, 0.5
        %v3750 = vmul.f32 %v3714, 0.5
        %v3751 = vmul.f32 %v3716, 0.5
        %v3752 = vmul.f32 %v3647, 0.5
        %v3753 = vmul.f32 %v3649, 0.5
        %v3754 = vmul.f32 %v3720, 0.5
        %v3755 = vmul.f32 %v3722, 0.5
        %v3756 = vmul.f32 %v3651, 0.5
        %v3757 = vmul.f32 %v3653, 0.5
        %v3758 = vmul.f32 %v3724, 0.5
        %v3759 = vmul.f32 %v3726, 0.5
        %v3760 = vmul.f32 %v3617, 0.7978846
        %v3761 = vmul.f32 %v3619, 0.7978846
        %v3762 = vmul.f32 %v3690, 0.7978846
        %v3763 = vmul.f32 %v3692, 0.7978846
        %v3764 = vmul.f32 %v3621, 0.7978846
        %v3765 = vmul.f32 %v3623, 0.7978846
        %v3766 = vmul.f32 %v3694, 0.7978846
        %v3767 = vmul.f32 %v3696, 0.7978846
        %v3768 = vmul.f32 %v3627, 0.7978846
        %v3769 = vmul.f32 %v3629, 0.7978846
        %v3770 = vmul.f32 %v3700, 0.7978846
        %v3771 = vmul.f32 %v3702, 0.7978846
        %v3772 = vmul.f32 %v3631, 0.7978846
        %v3773 = vmul.f32 %v3633, 0.7978846
        %v3774 = vmul.f32 %v3704, 0.7978846
        %v3775 = vmul.f32 %v3706, 0.7978846
        %v3776 = vmul.f32 %v3637, 0.7978846
        %v3777 = vmul.f32 %v3639, 0.7978846
        %v3778 = vmul.f32 %v3710, 0.7978846
        %v3779 = vmul.f32 %v3712, 0.7978846
        %v3780 = vmul.f32 %v3641, 0.7978846
        %v3781 = vmul.f32 %v3643, 0.7978846
        %v3782 = vmul.f32 %v3714, 0.7978846
        %v3783 = vmul.f32 %v3716, 0.7978846
        %v3784 = vmul.f32 %v3647, 0.7978846
        %v3785 = vmul.f32 %v3649, 0.7978846
        %v3786 = vmul.f32 %v3720, 0.7978846
        %v3787 = vmul.f32 %v3722, 0.7978846
        %v3788 = vmul.f32 %v3651, 0.7978846
        %v3789 = vmul.f32 %v3653, 0.7978846
        %v3790 = vmul.f32 %v3724, 0.7978846
        %v3791 = vmul.f32 %v3726, 0.7978846
        %v3792 = vmul.f32 %v3617, 0.044715
        %v3793 = vmul.f32 %v3619, 0.044715
        %v3794 = vmul.f32 %v3690, 0.044715
        %v3795 = vmul.f32 %v3692, 0.044715
        %v3796 = vmul.f32 %v3621, 0.044715
        %v3797 = vmul.f32 %v3623, 0.044715
        %v3798 = vmul.f32 %v3694, 0.044715
        %v3799 = vmul.f32 %v3696, 0.044715
        %v3800 = vmul.f32 %v3627, 0.044715
        %v3801 = vmul.f32 %v3629, 0.044715
        %v3802 = vmul.f32 %v3700, 0.044715
        %v3803 = vmul.f32 %v3702, 0.044715
        %v3804 = vmul.f32 %v3631, 0.044715
        %v3805 = vmul.f32 %v3633, 0.044715
        %v3806 = vmul.f32 %v3704, 0.044715
        %v3807 = vmul.f32 %v3706, 0.044715
        %v3808 = vmul.f32 %v3637, 0.044715
        %v3809 = vmul.f32 %v3639, 0.044715
        %v3810 = vmul.f32 %v3710, 0.044715
        %v3811 = vmul.f32 %v3712, 0.044715
        %v3812 = vmul.f32 %v3641, 0.044715
        %v3813 = vmul.f32 %v3643, 0.044715
        %v3814 = vmul.f32 %v3714, 0.044715
        %v3815 = vmul.f32 %v3716, 0.044715
        %v3816 = vmul.f32 %v3647, 0.044715
        %v3817 = vmul.f32 %v3649, 0.044715
        %v3818 = vmul.f32 %v3720, 0.044715
        %v3819 = vmul.f32 %v3722, 0.044715
        %v3820 = vmul.f32 %v3651, 0.044715
        %v3821 = vmul.f32 %v3653, 0.044715
        %v3822 = vmul.f32 %v3724, 0.044715
        %v3823 = vmul.f32 %v3726, 0.044715
        %v3824 = vmul.f32 %v3792, %v3617
        %v3825 = vmul.f32 %v3793, %v3619
        %v3826 = vmul.f32 %v3794, %v3690
        %v3827 = vmul.f32 %v3795, %v3692
        %v3828 = vmul.f32 %v3796, %v3621
        %v3829 = vmul.f32 %v3797, %v3623
        %v3830 = vmul.f32 %v3798, %v3694
        %v3831 = vmul.f32 %v3799, %v3696
        %v3832 = vmul.f32 %v3800, %v3627
        %v3833 = vmul.f32 %v3801, %v3629
        %v3834 = vmul.f32 %v3802, %v3700
        %v3835 = vmul.f32 %v3803, %v3702
        %v3836 = vmul.f32 %v3804, %v3631
        %v3837 = vmul.f32 %v3805, %v3633
        %v3838 = vmul.f32 %v3806, %v3704
        %v3839 = vmul.f32 %v3807, %v3706
        %v3840 = vmul.f32 %v3808, %v3637
        %v3841 = vmul.f32 %v3809, %v3639
        %v3842 = vmul.f32 %v3810, %v3710
        %v3843 = vmul.f32 %v3811, %v3712
        %v3844 = vmul.f32 %v3812, %v3641
        %v3845 = vmul.f32 %v3813, %v3643
        %v3846 = vmul.f32 %v3814, %v3714
        %v3847 = vmul.f32 %v3815, %v3716
        %v3848 = vmul.f32 %v3816, %v3647
        %v3849 = vmul.f32 %v3817, %v3649
        %v3850 = vmul.f32 %v3818, %v3720
        %v3851 = vmul.f32 %v3819, %v3722
        %v3852 = vmul.f32 %v3820, %v3651
        %v3853 = vmul.f32 %v3821, %v3653
        %v3854 = vmul.f32 %v3822, %v3724
        %v3855 = vmul.f32 %v3823, %v3726
        %v3856 = vadd.f32 %v3824, 1.0
        %v3857 = vadd.f32 %v3825, 1.0
        %v3858 = vadd.f32 %v3826, 1.0
        %v3859 = vadd.f32 %v3827, 1.0
        %v3860 = vadd.f32 %v3828, 1.0
        %v3861 = vadd.f32 %v3829, 1.0
        %v3862 = vadd.f32 %v3830, 1.0
        %v3863 = vadd.f32 %v3831, 1.0
        %v3864 = vadd.f32 %v3832, 1.0
        %v3865 = vadd.f32 %v3833, 1.0
        %v3866 = vadd.f32 %v3834, 1.0
        %v3867 = vadd.f32 %v3835, 1.0
        %v3868 = vadd.f32 %v3836, 1.0
        %v3869 = vadd.f32 %v3837, 1.0
        %v3870 = vadd.f32 %v3838, 1.0
        %v3871 = vadd.f32 %v3839, 1.0
        %v3872 = vadd.f32 %v3840, 1.0
        %v3873 = vadd.f32 %v3841, 1.0
        %v3874 = vadd.f32 %v3842, 1.0
        %v3875 = vadd.f32 %v3843, 1.0
        %v3876 = vadd.f32 %v3844, 1.0
        %v3877 = vadd.f32 %v3845, 1.0
        %v3878 = vadd.f32 %v3846, 1.0
        %v3879 = vadd.f32 %v3847, 1.0
        %v3880 = vadd.f32 %v3848, 1.0
        %v3881 = vadd.f32 %v3849, 1.0
        %v3882 = vadd.f32 %v3850, 1.0
        %v3883 = vadd.f32 %v3851, 1.0
        %v3884 = vadd.f32 %v3852, 1.0
        %v3885 = vadd.f32 %v3853, 1.0
        %v3886 = vadd.f32 %v3854, 1.0
        %v3887 = vadd.f32 %v3855, 1.0
        %v3888 = vmul.f32 %v3760, %v3856
        %v3889 = vmul.f32 %v3761, %v3857
        %v3890 = vmul.f32 %v3762, %v3858
        %v3891 = vmul.f32 %v3763, %v3859
        %v3892 = vmul.f32 %v3764, %v3860
        %v3893 = vmul.f32 %v3765, %v3861
        %v3894 = vmul.f32 %v3766, %v3862
        %v3895 = vmul.f32 %v3767, %v3863
        %v3896 = vmul.f32 %v3768, %v3864
        %v3897 = vmul.f32 %v3769, %v3865
        %v3898 = vmul.f32 %v3770, %v3866
        %v3899 = vmul.f32 %v3771, %v3867
        %v3900 = vmul.f32 %v3772, %v3868
        %v3901 = vmul.f32 %v3773, %v3869
        %v3902 = vmul.f32 %v3774, %v3870
        %v3903 = vmul.f32 %v3775, %v3871
        %v3904 = vmul.f32 %v3776, %v3872
        %v3905 = vmul.f32 %v3777, %v3873
        %v3906 = vmul.f32 %v3778, %v3874
        %v3907 = vmul.f32 %v3779, %v3875
        %v3908 = vmul.f32 %v3780, %v3876
        %v3909 = vmul.f32 %v3781, %v3877
        %v3910 = vmul.f32 %v3782, %v3878
        %v3911 = vmul.f32 %v3783, %v3879
        %v3912 = vmul.f32 %v3784, %v3880
        %v3913 = vmul.f32 %v3785, %v3881
        %v3914 = vmul.f32 %v3786, %v3882
        %v3915 = vmul.f32 %v3787, %v3883
        %v3916 = vmul.f32 %v3788, %v3884
        %v3917 = vmul.f32 %v3789, %v3885
        %v3918 = vmul.f32 %v3790, %v3886
        %v3919 = vmul.f32 %v3791, %v3887
        %v3920 = vtanh.pop %v3888
        %v3921 = vtanh.pop %v3889
        %v3922 = vtanh.pop %v3890
        %v3923 = vtanh.pop %v3891
        %v3924 = vtanh.pop %v3892
        %v3925 = vtanh.pop %v3893
        %v3926 = vtanh.pop %v3894
        %v3927 = vtanh.pop %v3895
        %v3928 = vtanh.pop %v3896
        %v3929 = vtanh.pop %v3897
        %v3930 = vtanh.pop %v3898
        %v3931 = vtanh.pop %v3899
        %v3932 = vtanh.pop %v3900
        %v3933 = vtanh.pop %v3901
        %v3934 = vtanh.pop %v3902
        %v3935 = vtanh.pop %v3903
        %v3936 = vtanh.pop %v3904
        %v3937 = vtanh.pop %v3905
        %v3938 = vtanh.pop %v3906
        %v3939 = vtanh.pop %v3907
        %v3940 = vtanh.pop %v3908
        %v3941 = vtanh.pop %v3909
        %v3942 = vtanh.pop %v3910
        %v3943 = vtanh.pop %v3911
        %v3944 = vtanh.pop %v3912
        %v3945 = vtanh.pop %v3913
        %v3946 = vtanh.pop %v3914
        %v3947 = vtanh.pop %v3915
        %v3948 = vtanh.pop %v3916
        %v3949 = vtanh.pop %v3917
        %v3950 = vtanh.pop %v3918
        %v3951 = vtanh.pop %v3919
        %v3952 = vadd.f32 %v3920, 1.0
        %v3953 = vadd.f32 %v3921, 1.0
        %v3954 = vadd.f32 %v3922, 1.0
        %v3955 = vadd.f32 %v3923, 1.0
        %v3956 = vadd.f32 %v3924, 1.0
        %v3957 = vadd.f32 %v3925, 1.0
        %v3958 = vadd.f32 %v3926, 1.0
        %v3959 = vadd.f32 %v3927, 1.0
        %v3960 = vadd.f32 %v3928, 1.0
        %v3961 = vadd.f32 %v3929, 1.0
        %v3962 = vadd.f32 %v3930, 1.0
        %v3963 = vadd.f32 %v3931, 1.0
        %v3964 = vadd.f32 %v3932, 1.0
        %v3965 = vadd.f32 %v3933, 1.0
        %v3966 = vadd.f32 %v3934, 1.0
        %v3967 = vadd.f32 %v3935, 1.0
        %v3968 = vadd.f32 %v3936, 1.0
        %v3969 = vadd.f32 %v3937, 1.0
        %v3970 = vadd.f32 %v3938, 1.0
        %v3971 = vadd.f32 %v3939, 1.0
        %v3972 = vadd.f32 %v3940, 1.0
        %v3973 = vadd.f32 %v3941, 1.0
        %v3974 = vadd.f32 %v3942, 1.0
        %v3975 = vadd.f32 %v3943, 1.0
        %v3976 = vadd.f32 %v3944, 1.0
        %v3977 = vadd.f32 %v3945, 1.0
        %v3978 = vadd.f32 %v3946, 1.0
        %v3979 = vadd.f32 %v3947, 1.0
        %v3980 = vadd.f32 %v3948, 1.0
        %v3981 = vadd.f32 %v3949, 1.0
        %v3982 = vadd.f32 %v3950, 1.0
        %v3983 = vadd.f32 %v3951, 1.0
        %v3984 = vmul.f32 %v3728, %v3952
        %v3985 = vmul.f32 %v3729, %v3953
        %v3986 = vmul.f32 %v3730, %v3954
        %v3987 = vmul.f32 %v3731, %v3955
        %v3988 = vmul.f32 %v3732, %v3956
        %v3989 = vmul.f32 %v3733, %v3957
        %v3990 = vmul.f32 %v3734, %v3958
        %v3991 = vmul.f32 %v3735, %v3959
        %v3992 = vmul.f32 %v3736, %v3960
        %v3993 = vmul.f32 %v3737, %v3961
        %v3994 = vmul.f32 %v3738, %v3962
        %v3995 = vmul.f32 %v3739, %v3963
        %v3996 = vmul.f32 %v3740, %v3964
        %v3997 = vmul.f32 %v3741, %v3965
        %v3998 = vmul.f32 %v3742, %v3966
        %v3999 = vmul.f32 %v3743, %v3967
        %v4000 = vmul.f32 %v3744, %v3968
        %v4001 = vmul.f32 %v3745, %v3969
        %v4002 = vmul.f32 %v3746, %v3970
        %v4003 = vmul.f32 %v3747, %v3971
        %v4004 = vmul.f32 %v3748, %v3972
        %v4005 = vmul.f32 %v3749, %v3973
        %v4006 = vmul.f32 %v3750, %v3974
        %v4007 = vmul.f32 %v3751, %v3975
        %v4008 = vmul.f32 %v3752, %v3976
        %v4009 = vmul.f32 %v3753, %v3977
        %v4010 = vmul.f32 %v3754, %v3978
        %v4011 = vmul.f32 %v3755, %v3979
        %v4012 = vmul.f32 %v3756, %v3980
        %v4013 = vmul.f32 %v3757, %v3981
        %v4014 = vmul.f32 %v3758, %v3982
        %v4015 = vmul.f32 %v3759, %v3983
        %v4016 = vpack.c.bf16 %v3988, %v3984
        %v4017 = vpack.c.bf16 %v3989, %v3985
        %v4018 = vpack.c.bf16 %v3990, %v3986
        %v4019 = vpack.c.bf16 %v3991, %v3987
        %v4020 = vpack.c.bf16 %v3996, %v3992
        %v4021 = vpack.c.bf16 %v3997, %v3993
        %v4022 = vpack.c.bf16 %v3998, %v3994
        %v4023 = vpack.c.bf16 %v3999, %v3995
        %v4024 = vpack.c.bf16 %v4004, %v4000
        %v4025 = vpack.c.bf16 %v4005, %v4001
        %v4026 = vpack.c.bf16 %v4006, %v4002
        %v4027 = vpack.c.bf16 %v4007, %v4003
        %v4028 = vpack.c.bf16 %v4012, %v4008
        %v4029 = vpack.c.bf16 %v4013, %v4009
        %v4030 = vpack.c.bf16 %v4014, %v4010
        %v4031 = vpack.c.bf16 %v4015, %v4011
        %v4032 = vld [vmem:[%s910] sm:$0xf]
        %v4033 = vld [vmem:[%s910 + $0x4] sm:$0xf]
        %v4034 = vld [vmem:[%s910 + $0x8] sm:$0xf]
        %v4035 = vld [vmem:[%s910 + $0xc] sm:$0xf]
        %v4036 = vld [vmem:[%s910 + $0x10] sm:$0xf]
        %v4037 = vld [vmem:[%s910 + $0x14] sm:$0xf]
        %v4038 = vld [vmem:[%s910 + $0x18] sm:$0xf]
        %v4039 = vld [vmem:[%s910 + $0x1c] sm:$0xf]
        %v4040 = vld [vmem:[%s910 + $0x20] sm:$0xf]
        %v4041 = vld [vmem:[%s910 + $0x24] sm:$0xf]
        %v4042 = vld [vmem:[%s910 + $0x28] sm:$0xf]
        %v4043 = vld [vmem:[%s910 + $0x2c] sm:$0xf]
        %v4044 = vld [vmem:[%s910 + $0x30] sm:$0xf]
        %v4045 = vld [vmem:[%s910 + $0x34] sm:$0xf]
        %v4046 = vld [vmem:[%s910 + $0x38] sm:$0xf]
        %v4047 = vld [vmem:[%s910 + $0x3c] sm:$0xf]
        %v4048 = vld [vmem:[%s910 + $0x40] sm:$0xf]
        %v4049 = vld [vmem:[%s910 + $0x44] sm:$0xf]
        %v4050 = vld [vmem:[%s910 + $0x48] sm:$0xf]
        %v4051 = vld [vmem:[%s910 + $0x4c] sm:$0xf]
        %v4052 = vld [vmem:[%s910 + $0x50] sm:$0xf]
        %v4053 = vld [vmem:[%s910 + $0x54] sm:$0xf]
        %v4054 = vld [vmem:[%s910 + $0x58] sm:$0xf]
        %v4055 = vld [vmem:[%s910 + $0x5c] sm:$0xf]
        %v4056 = vld [vmem:[%s910 + $0x60] sm:$0xf]
        %v4057 = vld [vmem:[%s910 + $0x64] sm:$0xf]
        %v4058 = vld [vmem:[%s910 + $0x68] sm:$0xf]
        %v4059 = vld [vmem:[%s910 + $0x6c] sm:$0xf]
        %v4060 = vld [vmem:[%s910 + $0x70] sm:$0xf]
        %v4061 = vld [vmem:[%s910 + $0x74] sm:$0xf]
        %v4062 = vld [vmem:[%s910 + $0x78] sm:$0xf]
        %v4063 = vld [vmem:[%s910 + $0x7c] sm:$0xf]
        %v4064 = vld [vmem:[%s910 + $0x80] sm:$0xf]
        %v4065 = vld [vmem:[%s910 + $0x84] sm:$0xf]
        %v4066 = vld [vmem:[%s910 + $0x88] sm:$0xf]
        %v4067 = vld [vmem:[%s910 + $0x8c] sm:$0xf]
        %v4068 = vld [vmem:[%s910 + $0x90] sm:$0xf]
        %v4069 = vld [vmem:[%s910 + $0x94] sm:$0xf]
        %v4070 = vld [vmem:[%s910 + $0x98] sm:$0xf]
        %v4071 = vld [vmem:[%s910 + $0x9c] sm:$0xf]
        %v4072 = vld [vmem:[%s910 + $0xa0] sm:$0xf]
        %v4073 = vld [vmem:[%s910 + $0xa4] sm:$0xf]
        %v4074 = vld [vmem:[%s910 + $0xa8] sm:$0xf]
        %v4075 = vld [vmem:[%s910 + $0xac] sm:$0xf]
        %v4076 = vld [vmem:[%s910 + $0xb0] sm:$0xf]
        %v4077 = vld [vmem:[%s910 + $0xb4] sm:$0xf]
        %v4078 = vld [vmem:[%s910 + $0xb8] sm:$0xf]
        %v4079 = vld [vmem:[%s910 + $0xbc] sm:$0xf]
        %v4080 = vld [vmem:[%s910 + $0xc0] sm:$0xf]
        %v4081 = vld [vmem:[%s910 + $0xc4] sm:$0xf]
        %v4082 = vld [vmem:[%s910 + $0xc8] sm:$0xf]
        %v4083 = vld [vmem:[%s910 + $0xcc] sm:$0xf]
        %v4084 = vld [vmem:[%s910 + $0xd0] sm:$0xf]
        %v4085 = vld [vmem:[%s910 + $0xd4] sm:$0xf]
        %v4086 = vld [vmem:[%s910 + $0xd8] sm:$0xf]
        %v4087 = vld [vmem:[%s910 + $0xdc] sm:$0xf]
        %v4088 = vld [vmem:[%s910 + $0xe0] sm:$0xf]
        %v4089 = vld [vmem:[%s910 + $0xe4] sm:$0xf]
        %v4090 = vld [vmem:[%s910 + $0xe8] sm:$0xf]
        %v4091 = vld [vmem:[%s910 + $0xec] sm:$0xf]
        %v4092 = vld [vmem:[%s910 + $0xf0] sm:$0xf]
        %v4093 = vld [vmem:[%s910 + $0xf4] sm:$0xf]
        %v4094 = vld [vmem:[%s910 + $0xf8] sm:$0xf]
        %v4095 = vld [vmem:[%s910 + $0xfc] sm:$0xf]
        %v4096 = vld [vmem:[%s918] sm:$0x1]
        %v4098 = vlaneseq
        %v4099 = vshrl.u32 %v4098, 7
        %v4100 = vsub.s32 0, %v4099
        %v4101 = vrot.slane %v4096, %v4100
        %v4167 = vunpack.c.l.b16 %v4032
        %v4168 = vunpack.c.l.b16 %v4033
        %v4169 = vunpack.c.l.b16 %v4034
        %v4170 = vunpack.c.l.b16 %v4035
        %v4171 = vunpack.c.l.b16 %v4036
        %v4172 = vunpack.c.l.b16 %v4037
        %v4173 = vunpack.c.l.b16 %v4038
        %v4174 = vunpack.c.l.b16 %v4039
        %v4175 = vunpack.c.l.b16 %v4040
        %v4176 = vunpack.c.l.b16 %v4041
        %v4177 = vunpack.c.l.b16 %v4042
        %v4178 = vunpack.c.l.b16 %v4043
        %v4179 = vunpack.c.l.b16 %v4044
        %v4180 = vunpack.c.l.b16 %v4045
        %v4181 = vunpack.c.l.b16 %v4046
        %v4182 = vunpack.c.l.b16 %v4047
        %v4183 = vunpack.c.l.b16 %v4048
        %v4184 = vunpack.c.l.b16 %v4049
        %v4185 = vunpack.c.l.b16 %v4050
        %v4186 = vunpack.c.l.b16 %v4051
        %v4187 = vunpack.c.l.b16 %v4052
        %v4188 = vunpack.c.l.b16 %v4053
        %v4189 = vunpack.c.l.b16 %v4054
        %v4190 = vunpack.c.l.b16 %v4055
        %v4191 = vunpack.c.l.b16 %v4056
        %v4192 = vunpack.c.l.b16 %v4057
        %v4193 = vunpack.c.l.b16 %v4058
        %v4194 = vunpack.c.l.b16 %v4059
        %v4195 = vunpack.c.l.b16 %v4060
        %v4196 = vunpack.c.l.b16 %v4061
        %v4197 = vunpack.c.l.b16 %v4062
        %v4198 = vunpack.c.l.b16 %v4063
        %v4199 = vunpack.c.l.b16 %v4064
        %v4200 = vunpack.c.l.b16 %v4065
        %v4201 = vunpack.c.l.b16 %v4066
        %v4202 = vunpack.c.l.b16 %v4067
        %v4203 = vunpack.c.l.b16 %v4068
        %v4204 = vunpack.c.l.b16 %v4069
        %v4205 = vunpack.c.l.b16 %v4070
        %v4206 = vunpack.c.l.b16 %v4071
        %v4207 = vunpack.c.l.b16 %v4072
        %v4208 = vunpack.c.l.b16 %v4073
        %v4209 = vunpack.c.l.b16 %v4074
        %v4210 = vunpack.c.l.b16 %v4075
        %v4211 = vunpack.c.l.b16 %v4076
        %v4212 = vunpack.c.l.b16 %v4077
        %v4213 = vunpack.c.l.b16 %v4078
        %v4214 = vunpack.c.l.b16 %v4079
        %v4215 = vunpack.c.l.b16 %v4080
        %v4216 = vunpack.c.l.b16 %v4081
        %v4217 = vunpack.c.l.b16 %v4082
        %v4218 = vunpack.c.l.b16 %v4083
        %v4219 = vunpack.c.l.b16 %v4084
        %v4220 = vunpack.c.l.b16 %v4085
        %v4221 = vunpack.c.l.b16 %v4086
        %v4222 = vunpack.c.l.b16 %v4087
        %v4223 = vunpack.c.l.b16 %v4088
        %v4224 = vunpack.c.l.b16 %v4089
        %v4225 = vunpack.c.l.b16 %v4090
        %v4226 = vunpack.c.l.b16 %v4091
        %v4227 = vunpack.c.l.b16 %v4092
        %v4228 = vunpack.c.l.b16 %v4093
        %v4229 = vunpack.c.l.b16 %v4094
        %v4230 = vunpack.c.l.b16 %v4095
        %v4231 = vpack.c.b16 %v4168, %v4167
        %v4232 = vpack.c.b16 %v4170, %v4169
        %v4233 = vpack.c.b16 %v4172, %v4171
        %v4234 = vpack.c.b16 %v4174, %v4173
        %v4235 = vpack.c.b16 %v4176, %v4175
        %v4236 = vpack.c.b16 %v4178, %v4177
        %v4237 = vpack.c.b16 %v4180, %v4179
        %v4238 = vpack.c.b16 %v4182, %v4181
        %v4239 = vpack.c.b16 %v4184, %v4183
        %v4240 = vpack.c.b16 %v4186, %v4185
        %v4241 = vpack.c.b16 %v4188, %v4187
        %v4242 = vpack.c.b16 %v4190, %v4189
        %v4243 = vpack.c.b16 %v4192, %v4191
        %v4244 = vpack.c.b16 %v4194, %v4193
        %v4245 = vpack.c.b16 %v4196, %v4195
        %v4246 = vpack.c.b16 %v4198, %v4197
        %v4247 = vpack.c.b16 %v4200, %v4199
        %v4248 = vpack.c.b16 %v4202, %v4201
        %v4249 = vpack.c.b16 %v4204, %v4203
        %v4250 = vpack.c.b16 %v4206, %v4205
        %v4251 = vpack.c.b16 %v4208, %v4207
        %v4252 = vpack.c.b16 %v4210, %v4209
        %v4253 = vpack.c.b16 %v4212, %v4211
        %v4254 = vpack.c.b16 %v4214, %v4213
        %v4255 = vpack.c.b16 %v4216, %v4215
        %v4256 = vpack.c.b16 %v4218, %v4217
        %v4257 = vpack.c.b16 %v4220, %v4219
        %v4258 = vpack.c.b16 %v4222, %v4221
        %v4259 = vpack.c.b16 %v4224, %v4223
        %v4260 = vpack.c.b16 %v4226, %v4225
        %v4261 = vpack.c.b16 %v4228, %v4227
        %v4262 = vpack.c.b16 %v4230, %v4229
        %4295 = vmatprep.subr.bf16.mxu0 0
        %4296 = vmatpush1.bf16.msra.mxu0 %v4231
        %4297 = vmatprep.subr.bf16.mxu0 0
        %4298 = vmatpush1.bf16.msra.mxu0 %v4232
        %4299 = vmatprep.subr.bf16.mxu0 0
        %4300 = vmatpush1.bf16.msra.mxu0 %v4233
        %4301 = vmatprep.subr.bf16.mxu0 0
        %4302 = vmatpush1.bf16.msra.mxu0 %v4234
        %4303 = vmatprep.subr.bf16.mxu0 0
        %4304 = vmatpush1.bf16.msra.mxu0 %v4235
        %4305 = vmatprep.subr.bf16.mxu0 0
        %4306 = vmatpush1.bf16.msra.mxu0 %v4236
        %4307 = vmatprep.subr.bf16.mxu0 0
        %4308 = vmatpush1.bf16.msra.mxu0 %v4237
        %4309 = vmatprep.subr.bf16.mxu0 0
        %4310 = vmatpush1.bf16.msra.mxu0 %v4238
        %4311 = vmatprep.subr.bf16.mxu0 0
        %4312 = vmatpush1.bf16.msra.mxu0 %v4239
        %4313 = vmatprep.subr.bf16.mxu0 0
        %4314 = vmatpush1.bf16.msra.mxu0 %v4240
        %4315 = vmatprep.subr.bf16.mxu0 0
        %4316 = vmatpush1.bf16.msra.mxu0 %v4241
        %4317 = vmatprep.subr.bf16.mxu0 0
        %4318 = vmatpush1.bf16.msra.mxu0 %v4242
        %4319 = vmatprep.subr.bf16.mxu0 0
        %4320 = vmatpush1.bf16.msra.mxu0 %v4243
        %4321 = vmatprep.subr.bf16.mxu0 0
        %4322 = vmatpush1.bf16.msra.mxu0 %v4244
        %4323 = vmatprep.subr.bf16.mxu0 0
        %4324 = vmatpush1.bf16.msra.mxu0 %v4245
        %4325 = vmatprep.subr.bf16.mxu0 0
        %4326 = vmatpush1.bf16.msra.mxu0 %v4246
        %4327 = vmatprep.mubr.bf16.mxu0 %v4017
        %4328 = vmatmul.mubr.bf16.gmra.mrb[0].mxu0 %v4016
        %v4329 = vpop.f32.mrb[0].mxu0
        %v4330 = vadd.f32 %v4101, %v4329
        %v4331 = vpop.f32.mrb[0].mxu0
        %v4332 = vpop.f32.mrb[0].mxu0
        %v4333 = vadd.f32 %v4101, %v4332
        %v4334 = vpop.f32.mrb[0].mxu0
        %4335 = vmatprep.mubr.bf16.mxu0 %v4021
        %4336 = vmatmul.mubr.bf16.gmra.mrb[0].mxu0 %v4020
        %v4337 = vpop.f32.mrb[0].mxu0
        %v4338 = vadd.f32 %v4101, %v4337
        %v4339 = vpop.f32.mrb[0].mxu0
        %v4340 = vpop.f32.mrb[0].mxu0
        %v4341 = vadd.f32 %v4101, %v4340
        %v4342 = vpop.f32.mrb[0].mxu0
        %4343 = vmatprep.mubr.bf16.mxu0 %v4025
        %4344 = vmatmul.mubr.bf16.gmra.mrb[0].mxu0 %v4024
        %v4345 = vpop.f32.mrb[0].mxu0
        %v4346 = vadd.f32 %v4101, %v4345
        %v4347 = vpop.f32.mrb[0].mxu0
        %v4348 = vpop.f32.mrb[0].mxu0
        %v4349 = vadd.f32 %v4101, %v4348
        %v4350 = vpop.f32.mrb[0].mxu0
        %4351 = vmatprep.mubr.bf16.mxu0 %v4029
        %4352 = vmatmul.mubr.bf16.gmra.mrb[0].mxu0 %v4028
        %v4353 = vpop.f32.mrb[0].mxu0
        %v4354 = vadd.f32 %v4101, %v4353
        %v4355 = vpop.f32.mrb[0].mxu0
        %v4356 = vpop.f32.mrb[0].mxu0
        %v4357 = vadd.f32 %v4101, %v4356
        %v4358 = vpop.f32.mrb[0].mxu0
        %4359 = vdwg.mxu0
        %4360 = vmatprep.subr.bf16.mxu0 0
        %4361 = vmatpush1.bf16.msra.mxu0 %v4247
        %4362 = vmatprep.subr.bf16.mxu0 0
        %4363 = vmatpush1.bf16.msra.mxu0 %v4248
        %4364 = vmatprep.subr.bf16.mxu0 0
        %4365 = vmatpush1.bf16.msra.mxu0 %v4249
        %4366 = vmatprep.subr.bf16.mxu0 0
        %4367 = vmatpush1.bf16.msra.mxu0 %v4250
        %4368 = vmatprep.subr.bf16.mxu0 0
        %4369 = vmatpush1.bf16.msra.mxu0 %v4251
        %4370 = vmatprep.subr.bf16.mxu0 0
        %4371 = vmatpush1.bf16.msra.mxu0 %v4252
        %4372 = vmatprep.subr.bf16.mxu0 0
        %4373 = vmatpush1.bf16.msra.mxu0 %v4253
        %4374 = vmatprep.subr.bf16.mxu0 0
        %4375 = vmatpush1.bf16.msra.mxu0 %v4254
        %4376 = vmatprep.subr.bf16.mxu0 0
        %4377 = vmatpush1.bf16.msra.mxu0 %v4255
        %4378 = vmatprep.subr.bf16.mxu0 0
        %4379 = vmatpush1.bf16.msra.mxu0 %v4256
        %4380 = vmatprep.subr.bf16.mxu0 0
        %4381 = vmatpush1.bf16.msra.mxu0 %v4257
        %4382 = vmatprep.subr.bf16.mxu0 0
        %4383 = vmatpush1.bf16.msra.mxu0 %v4258
        %4384 = vmatprep.subr.bf16.mxu0 0
        %4385 = vmatpush1.bf16.msra.mxu0 %v4259
        %4386 = vmatprep.subr.bf16.mxu0 0
        %4387 = vmatpush1.bf16.msra.mxu0 %v4260
        %4388 = vmatprep.subr.bf16.mxu0 0
        %4389 = vmatpush1.bf16.msra.mxu0 %v4261
        %4390 = vmatprep.subr.bf16.mxu0 0
        %4391 = vmatpush1.bf16.msra.mxu0 %v4262
        %4392 = vmatprep.mubr.bf16.mxu0 %v4019
        %4393 = vmatmul.mubr.bf16.gmra.mrb[0].mxu0 %v4018
        %v4394 = vpop.f32.mrb[0].mxu0
        %v4395 = vadd.f32 %v4330, %v4394
        %v4396 = vpop.f32.mrb[0].mxu0
        %v4397 = vpop.f32.mrb[0].mxu0
        %v4398 = vadd.f32 %v4333, %v4397
        %v4399 = vpop.f32.mrb[0].mxu0
        %4400 = vmatprep.mubr.bf16.mxu0 %v4023
        %4401 = vmatmul.mubr.bf16.gmra.mrb[0].mxu0 %v4022
        %v4402 = vpop.f32.mrb[0].mxu0
        %v4403 = vadd.f32 %v4338, %v4402
        %v4404 = vpop.f32.mrb[0].mxu0
        %v4405 = vpop.f32.mrb[0].mxu0
        %v4406 = vadd.f32 %v4341, %v4405
        %v4407 = vpop.f32.mrb[0].mxu0
        %4408 = vmatprep.mubr.bf16.mxu0 %v4027
        %4409 = vmatmul.mubr.bf16.gmra.mrb[0].mxu0 %v4026
        %v4410 = vpop.f32.mrb[0].mxu0
        %v4411 = vadd.f32 %v4346, %v4410
        %v4412 = vpop.f32.mrb[0].mxu0
        %v4413 = vpop.f32.mrb[0].mxu0
        %v4414 = vadd.f32 %v4349, %v4413
        %v4415 = vpop.f32.mrb[0].mxu0
        %4416 = vmatprep.mubr.bf16.mxu0 %v4031
        %4417 = vmatmul.mubr.bf16.gmra.mrb[0].mxu0 %v4030
        %v4418 = vpop.f32.mrb[0].mxu0
        %v4419 = vadd.f32 %v4354, %v4418
        %v4420 = vpop.f32.mrb[0].mxu0
        %v4421 = vpop.f32.mrb[0].mxu0
        %v4422 = vadd.f32 %v4357, %v4421
        %v4423 = vpop.f32.mrb[0].mxu0
        %4424 = vdwg.mxu0
        %v4425 = vadd.f32 %v3238, %v4395
        %v4426 = vadd.f32 %v3239, %v4398
        %v4427 = vadd.f32 %v3240, %v4403
        %v4428 = vadd.f32 %v3241, %v4406
        %v4429 = vadd.f32 %v3242, %v4411
        %v4430 = vadd.f32 %v3243, %v4414
        %v4431 = vadd.f32 %v3244, %v4419
        %v4432 = vadd.f32 %v3245, %v4422
        %4433 = vst [vmem:[#allocation2] sm:$0xff] %v4425
        %4434 = vst [vmem:[#allocation2 + $0x8] sm:$0xff] %v4426
        %4435 = vst [vmem:[#allocation2 + $0x10] sm:$0xff] %v4427
        %4436 = vst [vmem:[#allocation2 + $0x18] sm:$0xff] %v4428
        %4437 = vst [vmem:[#allocation2 + $0x20] sm:$0xff] %v4429
        %4438 = vst [vmem:[#allocation2 + $0x28] sm:$0xff] %v4430
        %4439 = vst [vmem:[#allocation2 + $0x30] sm:$0xff] %v4431
        %4440 = vst [vmem:[#allocation2 + $0x38] sm:$0xff] %v4432
        %p4441 = scmp.eq.s32.totalorder %s61, 1
        // Predicated region
        $region153: #{tpu_custom_call.1} parent=83 // pred_check
          %p4442 = pneg %p4441
        $region154: #{tpu_custom_call.1} parent=83 // pred_check_branch
          %4444 = sbr.rel (%p4442) target = $region156
        $region155: #{tpu_custom_call.1} parent=83 // pred_region
          %v4445 = vld [vmem:[#allocation30] sm:$0x1]
          %v4446 = vld [vmem:[#allocation31] sm:$0x1]
          %4447 = vadd.xlane.f32.xlu0 %v4425
          %v4448 = vpop.xlane.xlu0 %4447
          %4449 = vadd.xlane.f32.xlu0 %v4426
          %v4450 = vpop.xlane.xlu0 %4449
          %4451 = vadd.xlane.f32.xlu0 %v4427
          %v4452 = vpop.xlane.xlu0 %4451
          %4453 = vadd.xlane.f32.xlu0 %v4428
          %v4454 = vpop.xlane.xlu0 %4453
          %4455 = vadd.xlane.f32.xlu0 %v4429
          %v4456 = vpop.xlane.xlu0 %4455
          %4457 = vadd.xlane.f32.xlu0 %v4430
          %v4458 = vpop.xlane.xlu0 %4457
          %4459 = vadd.xlane.f32.xlu0 %v4431
          %v4460 = vpop.xlane.xlu0 %4459
          %4461 = vadd.xlane.f32.xlu0 %v4432
          %v4462 = vpop.xlane.xlu0 %4461
          %v4463 = vmul.f32 %v4448, %v1074
          %v4464 = vmul.f32 %v4450, %v1074
          %v4465 = vmul.f32 %v4452, %v1074
          %v4466 = vmul.f32 %v4454, %v1074
          %v4467 = vmul.f32 %v4456, %v1074
          %v4468 = vmul.f32 %v4458, %v1074
          %v4469 = vmul.f32 %v4460, %v1074
          %v4470 = vmul.f32 %v4462, %v1074
          %v4471 = vsub.f32 %v4425, %v4463
          %v4472 = vsub.f32 %v4426, %v4464
          %v4473 = vsub.f32 %v4427, %v4465
          %v4474 = vsub.f32 %v4428, %v4466
          %v4475 = vsub.f32 %v4429, %v4467
          %v4476 = vsub.f32 %v4430, %v4468
          %v4477 = vsub.f32 %v4431, %v4469
          %v4478 = vsub.f32 %v4432, %v4470
          %v4479 = vmul.f32 %v4471, %v4471
          %v4480 = vmul.f32 %v4472, %v4472
          %v4481 = vmul.f32 %v4473, %v4473
          %v4482 = vmul.f32 %v4474, %v4474
          %v4483 = vmul.f32 %v4475, %v4475
          %v4484 = vmul.f32 %v4476, %v4476
          %v4485 = vmul.f32 %v4477, %v4477
          %v4486 = vmul.f32 %v4478, %v4478
          %4487 = vadd.xlane.f32.xlu0 %v4479
          %v4488 = vpop.xlane.xlu0 %4487
          %4489 = vadd.xlane.f32.xlu0 %v4480
          %v4490 = vpop.xlane.xlu0 %4489
          %4491 = vadd.xlane.f32.xlu0 %v4481
          %v4492 = vpop.xlane.xlu0 %4491
          %4493 = vadd.xlane.f32.xlu0 %v4482
          %v4494 = vpop.xlane.xlu0 %4493
          %4495 = vadd.xlane.f32.xlu0 %v4483
          %v4496 = vpop.xlane.xlu0 %4495
          %4497 = vadd.xlane.f32.xlu0 %v4484
          %v4498 = vpop.xlane.xlu0 %4497
          %4499 = vadd.xlane.f32.xlu0 %v4485
          %v4500 = vpop.xlane.xlu0 %4499
          %4501 = vadd.xlane.f32.xlu0 %v4486
          %v4502 = vpop.xlane.xlu0 %4501
          %v4503 = vmul.f32 %v4488, %v1074
          %v4504 = vmul.f32 %v4490, %v1074
          %v4505 = vmul.f32 %v4492, %v1074
          %v4506 = vmul.f32 %v4494, %v1074
          %v4507 = vmul.f32 %v4496, %v1074
          %v4508 = vmul.f32 %v4498, %v1074
          %v4509 = vmul.f32 %v4500, %v1074
          %v4510 = vmul.f32 %v4502, %v1074
          %v4511 = vadd.f32 %v4503, 1e-05
          %v4512 = vadd.f32 %v4504, 1e-05
          %v4513 = vadd.f32 %v4505, 1e-05
          %v4514 = vadd.f32 %v4506, 1e-05
          %v4515 = vadd.f32 %v4507, 1e-05
          %v4516 = vadd.f32 %v4508, 1e-05
          %v4517 = vadd.f32 %v4509, 1e-05
          %v4518 = vadd.f32 %v4510, 1e-05
          %v4519 = vrsqrt.pop %v4511
          %v4520 = vrsqrt.pop %v4512
          %v4521 = vrsqrt.pop %v4513
          %v4522 = vrsqrt.pop %v4514
          %v4523 = vrsqrt.pop %v4515
          %v4524 = vrsqrt.pop %v4516
          %v4525 = vrsqrt.pop %v4517
          %v4526 = vrsqrt.pop %v4518
          %v4527 = vmul.f32 %v4471, %v4519
          %v4528 = vmul.f32 %v4472, %v4520
          %v4529 = vmul.f32 %v4473, %v4521
          %v4530 = vmul.f32 %v4474, %v4522
          %v4531 = vmul.f32 %v4475, %v4523
          %v4532 = vmul.f32 %v4476, %v4524
          %v4533 = vmul.f32 %v4477, %v4525
          %v4534 = vmul.f32 %v4478, %v4526
          %v4536 = vlaneseq
          %v4537 = vshrl.u32 %v4536, 7
          %v4538 = vsub.s32 0, %v4537
          %v4539 = vrot.slane %v4445, %v4538
          %v4541 = vmul.f32 %v4527, %v4539
          %v4542 = vmul.f32 %v4528, %v4539
          %v4543 = vmul.f32 %v4529, %v4539
          %v4544 = vmul.f32 %v4530, %v4539
          %v4545 = vmul.f32 %v4531, %v4539
          %v4546 = vmul.f32 %v4532, %v4539
          %v4547 = vmul.f32 %v4533, %v4539
          %v4548 = vmul.f32 %v4534, %v4539
          %v4550 = vlaneseq
          %v4551 = vshrl.u32 %v4550, 7
          %v4552 = vsub.s32 0, %v4551
          %v4553 = vrot.slane %v4446, %v4552
          %v4555 = vadd.f32 %v4541, %v4553
          %v4556 = vadd.f32 %v4542, %v4553
          %v4557 = vadd.f32 %v4543, %v4553
          %v4558 = vadd.f32 %v4544, %v4553
          %v4559 = vadd.f32 %v4545, %v4553
          %v4560 = vadd.f32 %v4546, %v4553
          %v4561 = vadd.f32 %v4547, %v4553
          %v4562 = vadd.f32 %v4548, %v4553
          %4563 = vst [vmem:[#allocation33] sm:$0xff] %v4555
          %4564 = vst [vmem:[#allocation33 + $0x8] sm:$0xff] %v4556
          %4565 = vst [vmem:[#allocation33 + $0x10] sm:$0xff] %v4557
          %4566 = vst [vmem:[#allocation33 + $0x18] sm:$0xff] %v4558
          %4567 = vst [vmem:[#allocation33 + $0x20] sm:$0xff] %v4559
          %4568 = vst [vmem:[#allocation33 + $0x28] sm:$0xff] %v4560
          %4569 = vst [vmem:[#allocation33 + $0x30] sm:$0xff] %v4561
          %4570 = vst [vmem:[#allocation33 + $0x38] sm:$0xff] %v4562
        $region156: #{tpu_custom_call.1} parent=83 // pred_fallthru
          _
        // Predicated region
        $region157: #{tpu_custom_call.1} parent=83 // pred_check
          %p4571 = pneg %p494
        $region158: #{tpu_custom_call.1} parent=83 // pred_check_branch
          %4573 = sbr.rel (%p4571) target = $region160
        $region159: #{tpu_custom_call.1} parent=83 // pred_region
          %s4574 = smul.u32 2, %s60
          %s4576 = ssub.s32 1024, 1024
          %4577 = vsyncadd [#allocation9], %s4576
          %s4578 = smul.addr %s4574, 4
          %s4579 = smul.addr %s4578, 128
          %s4580 = scalar_lea.hbm %s17, %s4579
          %s4581 = sshll.u32 [#allocation33], 4
          %s4582 = int_to_ptr.vmem [resolvable:$true] %s4581
          %4587 = dma.vmem_to_hbm [thread:$0]  %s4582, 1024, %s4580, [#allocation9], 128, 128, 8
        $region160: #{tpu_custom_call.1} parent=83 // pred_fallthru
          _
        // Predicated region
        $region161: #{tpu_custom_call.1} parent=83 // pred_check
          %p4588 = pneg %p494
        $region162: #{tpu_custom_call.1} parent=83 // pred_check_branch
          %4590 = sbr.rel (%p4588) target = $region164
        $region163: #{tpu_custom_call.1} parent=83 // pred_region
          %4591 = dma.done [#allocation9], 1024
        $region164: #{tpu_custom_call.1} parent=83 // pred_fallthru
          _
      $region84: #{tpu_custom_call.1} parent=5 // pred_fallthru
        _
      %p4592 = scmp.le.s32.totalorder 2, %s51
      // Predicated region
      $region165: #{tpu_custom_call.1} parent=5 // pred_check
        %p4593 = pneg %p4592
      $region166: #{tpu_custom_call.1} parent=5 // pred_check_branch
        %4595 = sbr.rel (%p4593) target = $region168
      $region167: #{tpu_custom_call.1} parent=5 // pred_region
        %s4596 = ssub.s32 %s51, 2
      $region168: #{tpu_custom_call.1} parent=5 // pred_fallthru
        _
    $region6: #{tpu_custom_call.1} parent=1 // loop_footer
      %s55 = sadd.s32 1, %s51
    $region7: #{tpu_custom_call.1} parent=1 // loop_footer_branch
      %50 = sbr.rel target = $region3
    $region8: #{tpu_custom_call.1} parent=1 // loop_exit
      _
    %4597 = vsyncpa [#allocation8], 1
    %s4598 = scalar_lea.sflag [#allocation8], 1
    %4599 = vsyncpa %s4598, 1
    %4600 = vsyncpa [#allocation11], 1
    %s4601 = scalar_lea.sflag [#allocation11], 1
    %4602 = vsyncpa %s4601, 1
    %4603 = vsyncpa [#allocation14], 1
    %s4604 = scalar_lea.sflag [#allocation14], 1
    %4605 = vsyncpa %s4604, 1
    %4606 = vsyncpa [#allocation17], 1
    %s4607 = scalar_lea.sflag [#allocation17], 1
    %4608 = vsyncpa %s4607, 1
    %4609 = vsyncpa [#allocation20], 1
    %s4610 = scalar_lea.sflag [#allocation20], 1
    %4611 = vsyncpa %s4610, 1
    %4612 = vsyncpa [#allocation23], 1
    %s4613 = scalar_lea.sflag [#allocation23], 1
    %4614 = vsyncpa %s4613, 1
    %4615 = vsyncpa [#allocation26], 1
    %s4616 = scalar_lea.sflag [#allocation26], 1
    %4617 = vsyncpa %s4616, 1
    %4618 = vsyncpa [#allocation29], 1
    %s4619 = scalar_lea.sflag [#allocation29], 1
    %4620 = vsyncpa %s4619, 1
    %4621 = vsyncpa [#allocation32], 1
    %4622 = vsyncpa [#allocation9], 1
    %s4623 = scalar_lea.sflag [#allocation9], 1
    %4624 = vsyncpa %s4623, 1

</llo_original>
